<compile_context>
chip_gen: v5e
topology: v5e:2x2
jax: 0.10.0
libtpu: 0.0.40
codegen_flags: <defaults>
</compile_context>

<pallas_src>
import numpy as np

import jax
import jax.numpy as jnp
from jax.experimental import pallas as pl
from jax.experimental.pallas import tpu as pltpu


# ---------------------------------------------------------------------------
# Pallas kernel: whole VisionFfModel forward for one tile of batch rows.
# ---------------------------------------------------------------------------
def _vision_ff_kernel(cam_ref, rs_ref,
                      m1_ref, b1_ref, m2_ref, b2_ref,
                      rsw1_ref, rsb1_ref, rsw2_ref, rsb2_ref,
                      hw1r_ref, hw1c_ref, hb1_ref, hw2_ref, hb2_ref,
                      out_ref):
    def mm(x, w_ref):
        # MXU matmul: bf16 operands (weights AND activations), f32 accumulation.
        return jnp.dot(x.astype(w_ref.dtype), w_ref[...],
                       preferred_element_type=jnp.float32)

    # Conv trunk: each conv layer == one dense matmul (zero padding + stride-2
    # im2col folded into m1/m2 at init time).  Bias-add / ReLU in f32 (VPU).
    c1 = jnp.maximum(mm(cam_ref[...], m1_ref) + b1_ref[...], 0.0)   # (tm, 640)
    c2 = jnp.maximum(mm(c1, m2_ref) + b2_ref[...], 0.0)             # (tm, 384)

    # robot_state MLP: Linear+ReLU, Linear.
    r1 = jnp.maximum(mm(rs_ref[...], rsw1_ref) + rsb1_ref[...], 0.0)
    r2 = mm(r1, rsw2_ref) + rsb2_ref[...]                           # (tm, 256)

    # mu/value heads, first layers fused along N (N = 512, lane dense).
    # head_in = [r2 | cnn_out]  ->  two partial matmuls summed (no concat).
    h = jnp.maximum(mm(r2, hw1r_ref) + mm(c2, hw1c_ref) + hb1_ref[...], 0.0)

    # Second layers fused block-diagonally and zero-padded to one lane-dense
    # (512, 128) matmul: cols [0:A] = mu, col A = value, rest = 0.
    out_ref[...] = mm(h, hw2_ref) + hb2_ref[...]                     # (tm, 128)


# ---------------------------------------------------------------------------
# Tiling / VMEM helpers
# ---------------------------------------------------------------------------
def _vmem_capacity_bytes():
    """Physical VMEM of the attached TPU (fallback: v7x's 64 MiB per core)."""
    try:
        cap = getattr(pltpu.get_tpu_info(), "vmem_capacity_bytes", None)
        if cap:
            return int(cap)
    except Exception:
        pass
    return 64 << 20


def _row_tile(B):
    """Row tile so the grid has >= 2 'parallel' blocks for any non-tiny batch
    (v7x has 2 TensorCores), multiples of 8 sublanes / 256 MXU M rows."""
    if B <= 16:
        return B                                  # launch-overhead regime
    half = -(-B // 2)
    if half > 256:
        return min(512, -(-half // 256) * 256)
    return -(-half // 8) * 8


def _weight_spec(arr):
    # Weight blocks have a constant block index; a second pipeline buffer is
    # pure VMEM waste, so single-buffer them when the API is available.
    if hasattr(pl, "Buffered"):
        return pl.BlockSpec(arr.shape, lambda i: (0, 0),
                            pipeline_mode=pl.Buffered(1))
    return pl.BlockSpec(arr.shape, lambda i: (0, 0))


# ---------------------------------------------------------------------------
# Fused forward (single pallas_call)
# ---------------------------------------------------------------------------
def _fused_forward(params, cam_flat, robot_state):
    B, cam_cols = cam_flat.shape
    rs_cols = robot_state.shape[1]
    out_cols = params["hw2"].shape[1]                      # 128 (lane dense)

    weights = (params["m1"], params["b1"], params["m2"], params["b2"],
               params["rs_w1"], params["rs_b1"], params["rs_w2"], params["rs_b2"],
               params["hw1_rs"], params["hw1_cnn"], params["hb1"],
               params["hw2"], params["hb2"])

    weight_bytes = sum(int(np.prod(w.shape)) * w.dtype.itemsize for w in weights)
    vmem_cap = _vmem_capacity_bytes()
    budget = (vmem_cap * 3) // 4
    # Guard: the dense conv fold keeps every weight VMEM-resident; m1 grows
    # ~quartically with camera size, so fail loudly instead of spilling.
    if 2 * weight_bytes > budget:
        raise ValueError(
            f"Folded VisionFf weights need {2 * weight_bytes / 2**20:.1f} MiB of "
            f"VMEM but only ~{budget / 2**20:.0f} MiB is available on this TPU; "
            "the dense conv fold does not scale to this camera size - use a "
            "blocked conv trunk instead.")

    # Per-row VMEM: double-buffered in/out tiles + f32 intermediates.
    inter_cols = (params["m1"].shape[1] + params["m2"].shape[1]
                  + params["rs_w1"].shape[1] + params["rs_w2"].shape[1]
                  + params["hw1_rs"].shape[1] + out_cols)
    row_bytes = (2 * (cam_cols * cam_flat.dtype.itemsize
                      + rs_cols * robot_state.dtype.itemsize)
                 + 2 * out_cols * 4 + inter_cols * 4)

    tm = _row_tile(B)
    while tm > 8 and 2 * weight_bytes + tm * row_bytes > budget:
        tm = max(8, ((tm // 2) // 8) * 8)
    grid = (pl.cdiv(B, tm),)

    vmem_limit = int(min(max(2 * weight_bytes + tm * row_bytes + (8 << 20),
                             32 << 20), 56 << 20))

    def rows(n_cols):
        return pl.BlockSpec((tm, n_cols), lambda i: (i, 0))

    in_specs = [rows(cam_cols), rows(rs_cols)] + [_weight_spec(w) for w in weights]
    out_specs = rows(out_cols)

    flops_per_row = 2 * (
        cam_cols * params["m1"].shape[1]
        + params["m1"].shape[1] * params["m2"].shape[1]
        + rs_cols * params["rs_w1"].shape[1]
        + params["rs_w1"].shape[1] * params["rs_w2"].shape[1]
        + params["rs_w2"].shape[1] * params["hw1_rs"].shape[1]
        + params["m2"].shape[1] * params["hw1_cnn"].shape[1]
        + params["hw1_rs"].shape[1] * params["hw2"].shape[1])
    in_bytes = sum(int(np.prod(x.shape)) * x.dtype.itemsize
                   for x in (cam_flat, robot_state) + weights)
    cost = pl.CostEstimate(flops=int(B * flops_per_row), transcendentals=0,
                           bytes_accessed=int(in_bytes + B * out_cols * 4))

    return pl.pallas_call(
        _vision_ff_kernel,
        out_shape=jax.ShapeDtypeStruct((B, out_cols), jnp.float32),
        grid=grid,
        in_specs=in_specs,
        out_specs=out_specs,
        compiler_params=pltpu.CompilerParams(
            dimension_semantics=("parallel",),
            vmem_limit_bytes=vmem_limit),
        cost_estimate=cost,
    )(cam_flat, robot_state, *weights)


@jax.jit
def vision_ff_forward(params, camera, robot_state):
    """camera: [B, C, H, W] (NCHW), robot_state: [B, RS]. Returns (mu, log_std, v).

    TODO(synk): rlpyt's infer/restore_leading_dims ([T, B] / [] leading dims)
    is assumed handled by the caller (inputs pre-flattened to [T*B, ...]).
    """
    B = camera.shape[0]
    A = params["log_std"].shape[0]
    wd = params["m1"].dtype
    # bf16 camera/robot_state into the kernel (halves the dominant HBM read
    # when the obs buffer is already bf16 upstream; no-op cast in that case).
    cam_flat = camera.reshape(B, -1).astype(wd)      # torch .view (NCHW) order
    rs = robot_state.astype(wd)
    out = _fused_forward(params, cam_flat, rs)       # (B, 128) lane-dense
    mu = out[:, :A]
    v = out[:, A]
    log_std = jnp.broadcast_to(params["log_std"][None, :], (B, A))
    return mu, log_std, v


# ---------------------------------------------------------------------------
# Init-time weight folding (conv -> dense matmul, head fusions, permutations)
# ---------------------------------------------------------------------------
def conv_out_hw(h, w, k=3, s=2, p=1):
    return (h + 2 * p - k) // s + 1, (w + 2 * p - k) // s + 1


def _fold_conv(w, b, H, W, *, stride=2, pad=1, in_order):
    """Fold a KxK conv (+zero padding +stride-2 im2col) into one dense matmul.

    conv(x) (pre-activation) == x_flat @ M + bias, where x_flat is the input
    flattened in `in_order` ("nchw" or "nhwc") and output columns are ordered
    (ho, wo, cout) (NHWC flatten).  w is torch-layout [Cout, Cin, kh, kw].
    """
    w = np.asarray(w, np.float32)
    b = np.asarray(b, np.float32)
    Cout, Cin, K, _ = w.shape
    Ho = (H + 2 * pad - K) // stride + 1
    Wo = (W + 2 * pad - K) // stride + 1
    M = np.zeros((Cin * H * W, Ho * Wo * Cout), np.float32)
    for ho in range(Ho):
        for wo in range(Wo):
            col = (ho * Wo + wo) * Cout
            for kh in range(K):
                h = stride * ho + kh - pad
                if h < 0 or h >= H:
                    continue
                for kw in range(K):
                    x_w = stride * wo + kw - pad
                    if x_w < 0 or x_w >= W:
                        continue
                    for c in range(Cin):
                        if in_order == "nchw":
                            q = (c * H + h) * W + x_w
                        else:  # "nhwc"
                            q = (h * W + x_w) * Cin + c
                        M[q, col:col + Cout] = w[:, c, kh, kw]
    bias = np.tile(b, Ho * Wo)
    return M, bias, Ho, Wo


def init_native_params(key, channels, height, width, robot_state_size,
                       action_size, init_log_std=0.0):
    """Synthetic parameters in torch-native layouts (conv: [Cout, Cin, kh, kw])."""
    def uni(k, shape, fan_in):
        s = 1.0 / np.sqrt(fan_in)
        return jax.random.uniform(k, shape, jnp.float32, -s, s)

    ks = jax.random.split(key, 16)
    h1, w1 = conv_out_hw(height, width)
    h2, w2 = conv_out_hw(h1, w1)
    conv_out_size = 18 * h2 * w2
    head_in = 256 + conv_out_size
    return dict(
        conv1_w=uni(ks[0], (9, channels, 3, 3), channels * 9),
        conv1_b=uni(ks[1], (9,), channels * 9),
        conv2_w=uni(ks[2], (18, 9, 3, 3), 9 * 9),
        conv2_b=uni(ks[3], (18,), 9 * 9),
        rs_w1=uni(ks[4], (robot_state_size, 256), robot_state_size),
        rs_b1=uni(ks[5], (256,), robot_state_size),
        rs_w2=uni(ks[6], (256, 256), 256),
        rs_b2=uni(ks[7], (256,), 256),
        mu_w1=uni(ks[8], (head_in, 256), head_in),
        mu_b1=uni(ks[9], (256,), head_in),
        mu_w2=uni(ks[10], (256, action_size), 256),
        mu_b2=uni(ks[11], (action_size,), 256),
        v_w1=uni(ks[12], (head_in, 256), head_in),
        v_b1=uni(ks[13], (256,), head_in),
        v_w2=uni(ks[14], (256, 1), 256),
        v_b2=uni(ks[15], (1,), 256),
        log_std=init_log_std * jnp.ones((action_size,), jnp.float32),
    )


def _pad2d(a, rows, cols):
    out = np.zeros((rows, cols), np.float32)
    out[:a.shape[0], :a.shape[1]] = a
    return out


def prepare_params(native, channels, height, width, weight_dtype=jnp.bfloat16):
    """Fold convs / flatten permutation / head fusions into kernel weights.

    All matmul output widths are zero-padded to multiples of 128 lanes
    (conv1: 576 -> 640, conv2: 288 -> 384, heads: action_size+1 -> 128) so
    every activation vreg and MXU tile in the kernel is full.
    """
    lane = lambda n: -(-n // 128) * 128

    m1, b1, h1, w1 = _fold_conv(native["conv1_w"], native["conv1_b"],
                                height, width, in_order="nchw")
    m2, b2, h2, w2 = _fold_conv(native["conv2_w"], native["conv2_b"],
                                h1, w1, in_order="nhwc")
    c2 = native["conv2_w"].shape[0]
    conv_out = c2 * h2 * w2                      # 288 real conv-2 features
    rs_out = native["rs_w2"].shape[1]            # 256
    n1, n2 = lane(m1.shape[1]), lane(conv_out)   # 640, 384

    m1p = _pad2d(m1, m1.shape[0], n1)
    b1p = np.zeros((n1,), np.float32); b1p[:b1.shape[0]] = b1
    m2p = _pad2d(m2, n1, n2)                     # zero rows/cols for padding
    b2p = np.zeros((n2,), np.float32); b2p[:b2.shape[0]] = b2

    # Permute head rows so the kernel's NHWC-ordered cnn features line up with
    # the torch NCHW flatten order the head weights are defined over.
    idx = np.arange(conv_out)
    o = idx % c2
    sp = idx // c2
    wo = sp % w2
    ho = sp // w2
    perm = (o * h2 + ho) * w2 + wo

    w1_cat = np.concatenate([np.asarray(native["mu_w1"]),
                             np.asarray(native["v_w1"])], axis=1)   # (rs+cnn, 512)
    b1_cat = np.concatenate([np.asarray(native["mu_b1"]),
                             np.asarray(native["v_b1"])])
    hw1_cnn = _pad2d(w1_cat[rs_out:][perm], n2, w1_cat.shape[1])    # (384, 512)

    # Second head layers fused block-diagonally and zero-padded to 128 output
    # lanes: columns [0:A] = mu, column A = value, columns [A+1:128] = 0.
    act = native["mu_w2"].shape[1]
    hid_mu = native["mu_w2"].shape[0]
    hid2 = hid_mu + native["v_w2"].shape[0]                          # 512
    out_cols = lane(act + 1)
    w2_blk = np.zeros((hid2, out_cols), np.float32)
    w2_blk[:hid_mu, :act] = np.asarray(native["mu_w2"])
    w2_blk[hid_mu:, act] = np.asarray(native["v_w2"])[:, 0]
    b2_blk = np.zeros((out_cols,), np.float32)
    b2_blk[:act] = np.asarray(native["mu_b2"])
    b2_blk[act] = np.asarray(native["v_b2"])[0]

    wd = weight_dtype
    row = lambda x: jnp.asarray(x, jnp.float32).reshape(1, -1)
    return dict(
        m1=jnp.asarray(m1p, wd), b1=row(b1p),
        m2=jnp.asarray(m2p, wd), b2=row(b2p),
        rs_w1=jnp.asarray(native["rs_w1"], wd), rs_b1=row(native["rs_b1"]),
        rs_w2=jnp.asarray(native["rs_w2"], wd), rs_b2=row(native["rs_b2"]),
        hw1_rs=jnp.asarray(w1_cat[:rs_out], wd),
        hw1_cnn=jnp.asarray(hw1_cnn, wd),
        hb1=row(b1_cat),
        hw2=jnp.asarray(w2_blk, wd), hb2=row(b2_blk),
        log_std=jnp.asarray(native["log_std"], jnp.float32),
    )


# ---------------------------------------------------------------------------
# Pure-JAX reference of the torch module (f32, no Pallas) for verification.
# ---------------------------------------------------------------------------
def reference_forward(native, camera, robot_state):
    B = camera.shape[0]
    x = camera
    for w, b in ((native["conv1_w"], native["conv1_b"]),
                 (native["conv2_w"], native["conv2_b"])):
        x = jax.lax.conv_general_dilated(
            x, w, window_strides=(2, 2), padding=((1, 1), (1, 1)),
            dimension_numbers=("NCHW", "OIHW", "NCHW"),
            precision=jax.lax.Precision.HIGHEST)
        x = jax.nn.relu(x + b[None, :, None, None])
    cnn_out = x.reshape(B, -1)
    rs = jax.nn.relu(robot_state @ native["rs_w1"] + native["rs_b1"])
    rs = rs @ native["rs_w2"] + native["rs_b2"]
    head_in = jnp.concatenate([rs, cnn_out], axis=-1)
    mu = (jax.nn.relu(head_in @ native["mu_w1"] + native["mu_b1"])
          @ native["mu_w2"] + native["mu_b2"])
    v = (jax.nn.relu(head_in @ native["v_w1"] + native["v_b1"])
         @ native["v_w2"] + native["v_b2"])[:, 0]
    log_std = jnp.broadcast_to(native["log_std"][None, :],
                               (B, native["log_std"].shape[0]))
    return mu, log_std, v


if __name__ == "__main__":
    C, H, W = 4, 16, 16            # camera obs (H, W, C) = (16, 16, 4)
    RS, A = 8, 4                   # robot_state size 8, action_size 4

    key = jax.random.PRNGKey(0)
    k_params, k_cam, k_rs = jax.random.split(key, 3)
    native = init_native_params(k_params, C, H, W, RS, A)
    params = prepare_params(native, C, H, W)

    # ---- small demo batch (B=2): single grid block --------------------------
    B = 2
    camera = jax.random.normal(k_cam, (B, C, H, W), jnp.float32)
    robot_state = jax.random.normal(k_rs, (B, RS), jnp.float32)

    mu, log_std, v = vision_ff_forward(params, camera, robot_state)
    jax.block_until_ready((mu, log_std, v))
    assert mu.shape == (B, A) and log_std.shape == (B, A) and v.shape == (B,)

    # bf16 weights AND bf16 matmul activations (f32 accumulation) -> 5e-2 tol
    # vs the f32 torch reference (activation+weight quantization).
    mu_r, ls_r, v_r = reference_forward(native, camera, robot_state)
    assert jnp.allclose(mu, mu_r, rtol=5e-2, atol=5e-2), (mu, mu_r)
    assert jnp.allclose(v, v_r, rtol=5e-2, atol=5e-2), (v, v_r)
    assert jnp.allclose(log_std, ls_r)

    # ---- larger, non-multiple-of-tile batch: two "parallel" grid blocks with
    # a clamped edge block (exercises the multi-core / edge-row path). --------
    B2 = 100
    k_cam2, k_rs2 = jax.random.split(jax.random.PRNGKey(1), 2)
    camera2 = jax.random.normal(k_cam2, (B2, C, H, W), jnp.float32)
    robot2 = jax.random.normal(k_rs2, (B2, RS), jnp.float32)
    mu2, ls2, v2 = vision_ff_forward(params, camera2, robot2)
    jax.block_until_ready((mu2, ls2, v2))
    assert mu2.shape == (B2, A) and v2.shape == (B2,)
    mu2_r, ls2_r, v2_r = reference_forward(native, camera2, robot2)
    assert jnp.allclose(mu2, mu2_r, rtol=1e-1, atol=1e-1)
    assert jnp.allclose(v2, v2_r, rtol=1e-1, atol=1e-1)

    print("KERNEL_OK")
</pallas_src>

<mosaic_0001>
module attributes {stable_mosaic.version = 11 : i64} {
  func.func @_vision_ff_kernel(%arg0: i32, %arg1: memref<2x1024xbf16, #tpu.memory_space<vmem>>, %arg2: memref<2x8xbf16, #tpu.memory_space<vmem>>, %arg3: memref<1024x640xbf16, #tpu.memory_space<vmem>>, %arg4: memref<1x640xf32, #tpu.memory_space<vmem>>, %arg5: memref<640x384xbf16, #tpu.memory_space<vmem>>, %arg6: memref<1x384xf32, #tpu.memory_space<vmem>>, %arg7: memref<8x256xbf16, #tpu.memory_space<vmem>>, %arg8: memref<1x256xf32, #tpu.memory_space<vmem>>, %arg9: memref<256x256xbf16, #tpu.memory_space<vmem>>, %arg10: memref<1x256xf32, #tpu.memory_space<vmem>>, %arg11: memref<256x512xbf16, #tpu.memory_space<vmem>>, %arg12: memref<384x512xbf16, #tpu.memory_space<vmem>>, %arg13: memref<1x512xf32, #tpu.memory_space<vmem>>, %arg14: memref<512x128xbf16, #tpu.memory_space<vmem>>, %arg15: memref<1x128xf32, #tpu.memory_space<vmem>>, %arg16: memref<2x128xf32, #tpu.memory_space<vmem>>) attributes {dimension_semantics = [#tpu.dimension_semantics<parallel>], iteration_bounds = array<i64: 1>, scalar_prefetch = 0 : i64, scratch_operands = 0 : i64, tpu.core_type = #tpu.core_type<tc>, window_params = [{transform_indices = @transform_0, window_bounds = array<i64: 2, 1024>}, {transform_indices = @transform_1, window_bounds = array<i64: 2, 8>}, {pipeline_mode = #tpu.pipeline_mode<synchronous>, transform_indices = @transform_2, window_bounds = array<i64: 1024, 640>}, {pipeline_mode = #tpu.pipeline_mode<synchronous>, transform_indices = @transform_3, window_bounds = array<i64: 1, 640>}, {pipeline_mode = #tpu.pipeline_mode<synchronous>, transform_indices = @transform_4, window_bounds = array<i64: 640, 384>}, {pipeline_mode = #tpu.pipeline_mode<synchronous>, transform_indices = @transform_5, window_bounds = array<i64: 1, 384>}, {pipeline_mode = #tpu.pipeline_mode<synchronous>, transform_indices = @transform_6, window_bounds = array<i64: 8, 256>}, {pipeline_mode = #tpu.pipeline_mode<synchronous>, transform_indices = @transform_7, window_bounds = array<i64: 1, 256>}, {pipeline_mode = #tpu.pipeline_mode<synchronous>, transform_indices = @transform_8, window_bounds = array<i64: 256, 256>}, {pipeline_mode = #tpu.pipeline_mode<synchronous>, transform_indices = @transform_9, window_bounds = array<i64: 1, 256>}, {pipeline_mode = #tpu.pipeline_mode<synchronous>, transform_indices = @transform_10, window_bounds = array<i64: 256, 512>}, {pipeline_mode = #tpu.pipeline_mode<synchronous>, transform_indices = @transform_11, window_bounds = array<i64: 384, 512>}, {pipeline_mode = #tpu.pipeline_mode<synchronous>, transform_indices = @transform_12, window_bounds = array<i64: 1, 512>}, {pipeline_mode = #tpu.pipeline_mode<synchronous>, transform_indices = @transform_13, window_bounds = array<i64: 512, 128>}, {pipeline_mode = #tpu.pipeline_mode<synchronous>, transform_indices = @transform_14, window_bounds = array<i64: 1, 128>}, {transform_indices = @transform_15, window_bounds = array<i64: 2, 128>}]} {
    %c0 = arith.constant 0 : index
    %c0_0 = arith.constant 0 : index
    %0 = vector.load %arg1[%c0, %c0_0] : memref<2x1024xbf16, #tpu.memory_space<vmem>>, vector<2x1024xbf16>
    %c0_1 = arith.constant 0 : index
    %c0_2 = arith.constant 0 : index
    %1 = vector.load %arg3[%c0_1, %c0_2] : memref<1024x640xbf16, #tpu.memory_space<vmem>>, vector<1024x640xbf16>
    %cst = arith.constant dense<0.000000e+00> : vector<2x640xf32>
    %2 = tpu.matmul %0, %1, %cst {dimension_numbers = #tpu.dot_dimension_numbers<[1], [0], [0], [1], [0, 0, 1, 1], [], []>} : vector<2x1024xbf16>, vector<1024x640xbf16>, vector<2x640xf32> -> vector<2x640xf32>
    %c0_3 = arith.constant 0 : index
    %c0_4 = arith.constant 0 : index
    %3 = vector.load %arg4[%c0_3, %c0_4] : memref<1x640xf32, #tpu.memory_space<vmem>>, vector<1x640xf32>
    %4 = vector.broadcast %3 : vector<1x640xf32> to vector<2x640xf32>
    %5 = arith.addf %2, %4 : vector<2x640xf32>
    %cst_5 = arith.constant 0.000000e+00 : f32
    %6 = vector.broadcast %cst_5 : f32 to vector<2x640xf32>
    %7 = arith.maximumf %5, %6 : vector<2x640xf32>
    %8 = arith.truncf %7 : vector<2x640xf32> to vector<2x640xbf16>
    %c0_6 = arith.constant 0 : index
    %c0_7 = arith.constant 0 : index
    %9 = vector.load %arg5[%c0_6, %c0_7] : memref<640x384xbf16, #tpu.memory_space<vmem>>, vector<640x384xbf16>
    %cst_8 = arith.constant dense<0.000000e+00> : vector<2x384xf32>
    %10 = tpu.matmul %8, %9, %cst_8 {dimension_numbers = #tpu.dot_dimension_numbers<[1], [0], [0], [1], [0, 0, 1, 1], [], []>} : vector<2x640xbf16>, vector<640x384xbf16>, vector<2x384xf32> -> vector<2x384xf32>
    %c0_9 = arith.constant 0 : index
    %c0_10 = arith.constant 0 : index
    %11 = vector.load %arg6[%c0_9, %c0_10] : memref<1x384xf32, #tpu.memory_space<vmem>>, vector<1x384xf32>
    %12 = vector.broadcast %11 : vector<1x384xf32> to vector<2x384xf32>
    %13 = arith.addf %10, %12 : vector<2x384xf32>
    %cst_11 = arith.constant 0.000000e+00 : f32
    %14 = vector.broadcast %cst_11 : f32 to vector<2x384xf32>
    %15 = arith.maximumf %13, %14 : vector<2x384xf32>
    %c0_12 = arith.constant 0 : index
    %c0_13 = arith.constant 0 : index
    %16 = vector.load %arg2[%c0_12, %c0_13] : memref<2x8xbf16, #tpu.memory_space<vmem>>, vector<2x8xbf16>
    %c0_14 = arith.constant 0 : index
    %c0_15 = arith.constant 0 : index
    %17 = vector.load %arg7[%c0_14, %c0_15] : memref<8x256xbf16, #tpu.memory_space<vmem>>, vector<8x256xbf16>
    %cst_16 = arith.constant dense<0.000000e+00> : vector<2x256xf32>
    %18 = tpu.matmul %16, %17, %cst_16 {dimension_numbers = #tpu.dot_dimension_numbers<[1], [0], [0], [1], [0, 0, 1, 1], [], []>} : vector<2x8xbf16>, vector<8x256xbf16>, vector<2x256xf32> -> vector<2x256xf32>
    %c0_17 = arith.constant 0 : index
    %c0_18 = arith.constant 0 : index
    %19 = vector.load %arg8[%c0_17, %c0_18] : memref<1x256xf32, #tpu.memory_space<vmem>>, vector<1x256xf32>
    %20 = vector.broadcast %19 : vector<1x256xf32> to vector<2x256xf32>
    %21 = arith.addf %18, %20 : vector<2x256xf32>
    %cst_19 = arith.constant 0.000000e+00 : f32
    %22 = vector.broadcast %cst_19 : f32 to vector<2x256xf32>
    %23 = arith.maximumf %21, %22 : vector<2x256xf32>
    %24 = arith.truncf %23 : vector<2x256xf32> to vector<2x256xbf16>
    %c0_20 = arith.constant 0 : index
    %c0_21 = arith.constant 0 : index
    %25 = vector.load %arg9[%c0_20, %c0_21] : memref<256x256xbf16, #tpu.memory_space<vmem>>, vector<256x256xbf16>
    %cst_22 = arith.constant dense<0.000000e+00> : vector<2x256xf32>
    %26 = tpu.matmul %24, %25, %cst_22 {dimension_numbers = #tpu.dot_dimension_numbers<[1], [0], [0], [1], [0, 0, 1, 1], [], []>} : vector<2x256xbf16>, vector<256x256xbf16>, vector<2x256xf32> -> vector<2x256xf32>
    %c0_23 = arith.constant 0 : index
    %c0_24 = arith.constant 0 : index
    %27 = vector.load %arg10[%c0_23, %c0_24] : memref<1x256xf32, #tpu.memory_space<vmem>>, vector<1x256xf32>
    %28 = vector.broadcast %27 : vector<1x256xf32> to vector<2x256xf32>
    %29 = arith.addf %26, %28 : vector<2x256xf32>
    %30 = arith.truncf %29 : vector<2x256xf32> to vector<2x256xbf16>
    %c0_25 = arith.constant 0 : index
    %c0_26 = arith.constant 0 : index
    %31 = vector.load %arg11[%c0_25, %c0_26] : memref<256x512xbf16, #tpu.memory_space<vmem>>, vector<256x512xbf16>
    %cst_27 = arith.constant dense<0.000000e+00> : vector<2x512xf32>
    %32 = tpu.matmul %30, %31, %cst_27 {dimension_numbers = #tpu.dot_dimension_numbers<[1], [0], [0], [1], [0, 0, 1, 1], [], []>} : vector<2x256xbf16>, vector<256x512xbf16>, vector<2x512xf32> -> vector<2x512xf32>
    %33 = arith.truncf %15 : vector<2x384xf32> to vector<2x384xbf16>
    %c0_28 = arith.constant 0 : index
    %c0_29 = arith.constant 0 : index
    %34 = vector.load %arg12[%c0_28, %c0_29] : memref<384x512xbf16, #tpu.memory_space<vmem>>, vector<384x512xbf16>
    %cst_30 = arith.constant dense<0.000000e+00> : vector<2x512xf32>
    %35 = tpu.matmul %33, %34, %cst_30 {dimension_numbers = #tpu.dot_dimension_numbers<[1], [0], [0], [1], [0, 0, 1, 1], [], []>} : vector<2x384xbf16>, vector<384x512xbf16>, vector<2x512xf32> -> vector<2x512xf32>
    %36 = arith.addf %32, %35 : vector<2x512xf32>
    %c0_31 = arith.constant 0 : index
    %c0_32 = arith.constant 0 : index
    %37 = vector.load %arg13[%c0_31, %c0_32] : memref<1x512xf32, #tpu.memory_space<vmem>>, vector<1x512xf32>
    %38 = vector.broadcast %37 : vector<1x512xf32> to vector<2x512xf32>
    %39 = arith.addf %36, %38 : vector<2x512xf32>
    %cst_33 = arith.constant 0.000000e+00 : f32
    %40 = vector.broadcast %cst_33 : f32 to vector<2x512xf32>
    %41 = arith.maximumf %39, %40 : vector<2x512xf32>
    %42 = arith.truncf %41 : vector<2x512xf32> to vector<2x512xbf16>
    %c0_34 = arith.constant 0 : index
    %c0_35 = arith.constant 0 : index
    %43 = vector.load %arg14[%c0_34, %c0_35] : memref<512x128xbf16, #tpu.memory_space<vmem>>, vector<512x128xbf16>
    %cst_36 = arith.constant dense<0.000000e+00> : vector<2x128xf32>
    %44 = tpu.matmul %42, %43, %cst_36 {dimension_numbers = #tpu.dot_dimension_numbers<[1], [0], [0], [1], [0, 0, 1, 1], [], []>} : vector<2x512xbf16>, vector<512x128xbf16>, vector<2x128xf32> -> vector<2x128xf32>
    %c0_37 = arith.constant 0 : index
    %c0_38 = arith.constant 0 : index
    %45 = vector.load %arg15[%c0_37, %c0_38] : memref<1x128xf32, #tpu.memory_space<vmem>>, vector<1x128xf32>
    %46 = vector.broadcast %45 : vector<1x128xf32> to vector<2x128xf32>
    %47 = arith.addf %44, %46 : vector<2x128xf32>
    %c0_39 = arith.constant 0 : index
    %c0_40 = arith.constant 0 : index
    %48 = vector.load %arg16[%c0_39, %c0_40] : memref<2x128xf32, #tpu.memory_space<vmem>>, vector<2x128xf32>
    tpu.vector_store %arg16[%c0_39, %c0_40], %47 {strides = array<i32>} : memref<2x128xf32, #tpu.memory_space<vmem>>, vector<2x128xf32>,
    return
  }
  func.func @transform_0(%arg0: i32) -> (i32, i32) {
    %c0_i32 = arith.constant 0 : i32
    %c0_i32_0 = arith.constant 0 : i32
    return %arg0, %c0_i32 : i32, i32
  }
  func.func @transform_1(%arg0: i32) -> (i32, i32) {
    %c0_i32 = arith.constant 0 : i32
    %c0_i32_0 = arith.constant 0 : i32
    return %arg0, %c0_i32 : i32, i32
  }
  func.func @transform_2(%arg0: i32) -> (i32, i32) {
    %c0_i32 = arith.constant 0 : i32
    %c0_i32_0 = arith.constant 0 : i32
    %c0_i32_1 = arith.constant 0 : i32
    return %c0_i32, %c0_i32_0 : i32, i32
  }
  func.func @transform_3(%arg0: i32) -> (i32, i32) {
    %c0_i32 = arith.constant 0 : i32
    %c0_i32_0 = arith.constant 0 : i32
    %c0_i32_1 = arith.constant 0 : i32
    return %c0_i32, %c0_i32_0 : i32, i32
  }
  func.func @transform_4(%arg0: i32) -> (i32, i32) {
    %c0_i32 = arith.constant 0 : i32
    %c0_i32_0 = arith.constant 0 : i32
    %c0_i32_1 = arith.constant 0 : i32
    return %c0_i32, %c0_i32_0 : i32, i32
  }
  func.func @transform_5(%arg0: i32) -> (i32, i32) {
    %c0_i32 = arith.constant 0 : i32
    %c0_i32_0 = arith.constant 0 : i32
    %c0_i32_1 = arith.constant 0 : i32
    return %c0_i32, %c0_i32_0 : i32, i32
  }
  func.func @transform_6(%arg0: i32) -> (i32, i32) {
    %c0_i32 = arith.constant 0 : i32
    %c0_i32_0 = arith.constant 0 : i32
    %c0_i32_1 = arith.constant 0 : i32
    return %c0_i32, %c0_i32_0 : i32, i32
  }
  func.func @transform_7(%arg0: i32) -> (i32, i32) {
    %c0_i32 = arith.constant 0 : i32
    %c0_i32_0 = arith.constant 0 : i32
    %c0_i32_1 = arith.constant 0 : i32
    return %c0_i32, %c0_i32_0 : i32, i32
  }
  func.func @transform_8(%arg0: i32) -> (i32, i32) {
    %c0_i32 = arith.constant 0 : i32
    %c0_i32_0 = arith.constant 0 : i32
    %c0_i32_1 = arith.constant 0 : i32
    return %c0_i32, %c0_i32_0 : i32, i32
  }
  func.func @transform_9(%arg0: i32) -> (i32, i32) {
    %c0_i32 = arith.constant 0 : i32
    %c0_i32_0 = arith.constant 0 : i32
    %c0_i32_1 = arith.constant 0 : i32
    return %c0_i32, %c0_i32_0 : i32, i32
  }
  func.func @transform_10(%arg0: i32) -> (i32, i32) {
    %c0_i32 = arith.constant 0 : i32
    %c0_i32_0 = arith.constant 0 : i32
    %c0_i32_1 = arith.constant 0 : i32
    return %c0_i32, %c0_i32_0 : i32, i32
  }
  func.func @transform_11(%arg0: i32) -> (i32, i32) {
    %c0_i32 = arith.constant 0 : i32
    %c0_i32_0 = arith.constant 0 : i32
    %c0_i32_1 = arith.constant 0 : i32
    return %c0_i32, %c0_i32_0 : i32, i32
  }
  func.func @transform_12(%arg0: i32) -> (i32, i32) {
    %c0_i32 = arith.constant 0 : i32
    %c0_i32_0 = arith.constant 0 : i32
    %c0_i32_1 = arith.constant 0 : i32
    return %c0_i32, %c0_i32_0 : i32, i32
  }
  func.func @transform_13(%arg0: i32) -> (i32, i32) {
    %c0_i32 = arith.constant 0 : i32
    %c0_i32_0 = arith.constant 0 : i32
    %c0_i32_1 = arith.constant 0 : i32
    return %c0_i32, %c0_i32_0 : i32, i32
  }
  func.func @transform_14(%arg0: i32) -> (i32, i32) {
    %c0_i32 = arith.constant 0 : i32
    %c0_i32_0 = arith.constant 0 : i32
    %c0_i32_1 = arith.constant 0 : i32
    return %c0_i32, %c0_i32_0 : i32, i32
  }
  func.func @transform_15(%arg0: i32) -> (i32, i32) {
    %c0_i32 = arith.constant 0 : i32
    %c0_i32_0 = arith.constant 0 : i32
    return %arg0, %c0_i32 : i32, i32
  }
}

</mosaic_0001>

<llo_original>
// kernel: vision_ff_forward.1
$region0: #{vision_ff_forward.1}
  #allocation0 [shape = 'u32[]', space=smem, size = 0x4, offset = 0x4, fixed_abs, tag = 'smem constant byte address 0x4 - core index']
  #allocation1 [shape = 'u32[72,128]{1,0:T(1,128)}', space=vmem, size = 0x9000, scoped, tag = 'internal scratch']
  %s0 = inlined_call_operand.vmem [shape: bf16[2,1024], index: 0, kind: input, shape index: {}]
  %s1 = inlined_call_operand.vmem [shape: bf16[2,8], index: 1, kind: input, shape index: {}]
  %s2 = inlined_call_operand.hbm [shape: bf16[1024,640], index: 2, kind: input, shape index: {}]
  %s3 = inlined_call_operand.hbm [shape: f32[1,640], index: 3, kind: input, shape index: {}]
  %s4 = inlined_call_operand.hbm [shape: bf16[640,384], index: 4, kind: input, shape index: {}]
  %s5 = inlined_call_operand.hbm [shape: f32[1,384], index: 5, kind: input, shape index: {}]
  %s6 = inlined_call_operand.hbm [shape: bf16[8,256], index: 6, kind: input, shape index: {}]
  %s7 = inlined_call_operand.hbm [shape: f32[1,256], index: 7, kind: input, shape index: {}]
  %s8 = inlined_call_operand.hbm [shape: bf16[256,256], index: 8, kind: input, shape index: {}]
  %s9 = inlined_call_operand.hbm [shape: f32[1,256], index: 9, kind: input, shape index: {}]
  %s10 = inlined_call_operand.hbm [shape: bf16[256,512], index: 10, kind: input, shape index: {}]
  %s11 = inlined_call_operand.hbm [shape: bf16[384,512], index: 11, kind: input, shape index: {}]
  %s12 = inlined_call_operand.hbm [shape: f32[1,512], index: 12, kind: input, shape index: {}]
  %s13 = inlined_call_operand.hbm [shape: bf16[512,128], index: 13, kind: input, shape index: {}]
  %s14 = inlined_call_operand.hbm [shape: f32[1,128], index: 14, kind: input, shape index: {}]
  %s15 = inlined_call_operand.vmem [shape: f32[2,128], index: 15, kind: output, shape index: {}]
  %s16 = sld [smem:[#allocation0]]
  $region122: #{vision_ff_forward.1} parent=0
    _
  %s18 = ssub.s32 1, %s16
  %s19 = scalar_select 0, %s18, %s16
  $region1: #{vision_ff_forward.1} parent=0
    #allocation2 [shape = 'u8[1310720]{0}', space=vmem, size = 0x140000, scoped, tag = 'input window, operand 2, single buffered']
    #allocation3 [shape = 's32[1]{0}', space=sflag, size = 0x4, scoped, tag = 'scoped memory for vision_ff_forward.1']
    #allocation4 [shape = 'u8[2560]{0}', space=vmem, size = 0xc00, scoped, tag = 'input window, operand 3, single buffered']
    #allocation5 [shape = 's32[1]{0}', space=sflag, size = 0x4, scoped, tag = 'scoped memory for vision_ff_forward.1']
    #allocation6 [shape = 'u8[491520]{0}', space=vmem, size = 0x78000, scoped, tag = 'input window, operand 4, single buffered']
    #allocation7 [shape = 'u8[1536]{0}', space=vmem, size = 0x800, scoped, tag = 'input window, operand 5, single buffered']
    #allocation8 [shape = 's32[1]{0}', space=sflag, size = 0x4, scoped, tag = 'scoped memory for vision_ff_forward.1']
    #allocation9 [shape = 'u8[4096]{0}', space=vmem, size = 0x1000, scoped, tag = 'input window, operand 6, single buffered']
    #allocation10 [shape = 'u8[1024]{0}', space=vmem, size = 0x400, scoped, tag = 'input window, operand 7, single buffered']
    #allocation11 [shape = 's32[1]{0}', space=sflag, size = 0x4, scoped, tag = 'scoped memory for vision_ff_forward.1']
    #allocation12 [shape = 'u8[131072]{0}', space=vmem, size = 0x20000, scoped, tag = 'input window, operand 8, single buffered']
    #allocation13 [shape = 'u8[1024]{0}', space=vmem, size = 0x400, scoped, tag = 'input window, operand 9, single buffered']
    #allocation14 [shape = 's32[1]{0}', space=sflag, size = 0x4, scoped, tag = 'scoped memory for vision_ff_forward.1']
    #allocation15 [shape = 'u8[262144]{0}', space=vmem, size = 0x40000, scoped, tag = 'input window, operand 10, single buffered']
    #allocation16 [shape = 'u8[393216]{0}', space=vmem, size = 0x60000, scoped, tag = 'input window, operand 11, single buffered']
    #allocation17 [shape = 's32[1]{0}', space=sflag, size = 0x4, scoped, tag = 'scoped memory for vision_ff_forward.1']
    #allocation18 [shape = 'u8[2048]{0}', space=vmem, size = 0x800, scoped, tag = 'input window, operand 12, single buffered']
    #allocation19 [shape = 'u8[131072]{0}', space=vmem, size = 0x20000, scoped, tag = 'input window, operand 13, single buffered']
    #allocation20 [shape = 's32[1]{0}', space=sflag, size = 0x4, scoped, tag = 'scoped memory for vision_ff_forward.1']
    #allocation21 [shape = 'u8[512]{0}', space=vmem, size = 0x400, scoped, tag = 'input window, operand 14, single buffered']
    %20 = vsyncpa [#allocation3], 0
    %21 = vsyncpa [#allocation5], 0
    %22 = vsyncpa [#allocation8], 0
    %23 = vsyncpa [#allocation11], 0
    %24 = vsyncpa [#allocation14], 0
    %25 = vsyncpa [#allocation17], 0
    %26 = vsyncpa [#allocation20], 0
    // Predicated region
    $region2: #{vision_ff_forward.1} parent=1 // pred_check
      _
    $region3: #{vision_ff_forward.1} parent=1 // pred_check_branch
      %28 = sbr.rel (0) target = $region5
    $region4: #{vision_ff_forward.1} parent=1 // pred_region
      _
    $region5: #{vision_ff_forward.1} parent=1 // pred_fallthru
      _
    // Predicated region
    $region6: #{vision_ff_forward.1} parent=1 // pred_check
      _
    $region7: #{vision_ff_forward.1} parent=1 // pred_check_branch
      %30 = sbr.rel (0) target = $region9
    $region8: #{vision_ff_forward.1} parent=1 // pred_region
      _
    $region9: #{vision_ff_forward.1} parent=1 // pred_fallthru
      _
    // Predicated region
    $region10: #{vision_ff_forward.1} parent=1 // pred_check
      _
    $region11: #{vision_ff_forward.1} parent=1 // pred_check_branch
      %32 = sbr.rel (0) target = $region13
    $region12: #{vision_ff_forward.1} parent=1 // pred_region
      %34 = vsyncadd [#allocation3], 0
      %s35 = sshll.u32 %s2, 4
      %s36 = int_to_ptr.hbm [resolvable:$true] %s35
      %s37 = sshll.u32 [#allocation2], 4
      %s38 = int_to_ptr.vmem [resolvable:$true] %s37
      %43 = dma.hbm_to_vmem [thread:$0]  %s36, 40960, %s38, [#allocation3], 320, 320, 20
    $region13: #{vision_ff_forward.1} parent=1 // pred_fallthru
      _
    // Predicated region
    $region14: #{vision_ff_forward.1} parent=1 // pred_check
      _
    $region15: #{vision_ff_forward.1} parent=1 // pred_check_branch
      %45 = sbr.rel (0) target = $region17
    $region16: #{vision_ff_forward.1} parent=1 // pred_region
      %47 = vsyncadd [#allocation5], 0
      %s49 = sshll.u32 %s3, 4
      %s50 = int_to_ptr.hbm [resolvable:$true] %s49
      %s51 = sshll.u32 [#allocation4], 4
      %s52 = int_to_ptr.vmem [resolvable:$true] %s51
      %54 = dma.hbm_to_vmem [thread:$0]  %s50, 80, %s52, [#allocation5]
    $region17: #{vision_ff_forward.1} parent=1 // pred_fallthru
      _
    // Predicated region
    $region18: #{vision_ff_forward.1} parent=1 // pred_check
      _
    $region19: #{vision_ff_forward.1} parent=1 // pred_check_branch
      %56 = sbr.rel (0) target = $region21
    $region20: #{vision_ff_forward.1} parent=1 // pred_region
      %58 = vsyncadd [#allocation5], 0
      %s59 = sshll.u32 %s4, 4
      %s60 = int_to_ptr.hbm [resolvable:$true] %s59
      %s61 = sshll.u32 [#allocation6], 4
      %s62 = int_to_ptr.vmem [resolvable:$true] %s61
      %67 = dma.hbm_to_vmem [thread:$0]  %s60, 15360, %s62, [#allocation5], 192, 192, 12
    $region21: #{vision_ff_forward.1} parent=1 // pred_fallthru
      _
    // Predicated region
    $region22: #{vision_ff_forward.1} parent=1 // pred_check
      _
    $region23: #{vision_ff_forward.1} parent=1 // pred_check_branch
      %69 = sbr.rel (0) target = $region25
    $region24: #{vision_ff_forward.1} parent=1 // pred_region
      %71 = vsyncadd [#allocation8], 0
      %s73 = sshll.u32 %s5, 4
      %s74 = int_to_ptr.hbm [resolvable:$true] %s73
      %s75 = sshll.u32 [#allocation7], 4
      %s76 = int_to_ptr.vmem [resolvable:$true] %s75
      %78 = dma.hbm_to_vmem [thread:$0]  %s74, 48, %s76, [#allocation8]
    $region25: #{vision_ff_forward.1} parent=1 // pred_fallthru
      _
    // Predicated region
    $region26: #{vision_ff_forward.1} parent=1 // pred_check
      _
    $region27: #{vision_ff_forward.1} parent=1 // pred_check_branch
      %80 = sbr.rel (0) target = $region29
    $region28: #{vision_ff_forward.1} parent=1 // pred_region
      %82 = vsyncadd [#allocation8], 0
      %s84 = sshll.u32 %s6, 4
      %s85 = int_to_ptr.hbm [resolvable:$true] %s84
      %s86 = sshll.u32 [#allocation9], 4
      %s87 = int_to_ptr.vmem [resolvable:$true] %s86
      %89 = dma.hbm_to_vmem [thread:$0]  %s85, 128, %s87, [#allocation8]
    $region29: #{vision_ff_forward.1} parent=1 // pred_fallthru
      _
    // Predicated region
    $region30: #{vision_ff_forward.1} parent=1 // pred_check
      _
    $region31: #{vision_ff_forward.1} parent=1 // pred_check_branch
      %91 = sbr.rel (0) target = $region33
    $region32: #{vision_ff_forward.1} parent=1 // pred_region
      %93 = vsyncadd [#allocation11], 0
      %s95 = sshll.u32 %s7, 4
      %s96 = int_to_ptr.hbm [resolvable:$true] %s95
      %s97 = sshll.u32 [#allocation10], 4
      %s98 = int_to_ptr.vmem [resolvable:$true] %s97
      %100 = dma.hbm_to_vmem [thread:$0]  %s96, 32, %s98, [#allocation11]
    $region33: #{vision_ff_forward.1} parent=1 // pred_fallthru
      _
    // Predicated region
    $region34: #{vision_ff_forward.1} parent=1 // pred_check
      _
    $region35: #{vision_ff_forward.1} parent=1 // pred_check_branch
      %102 = sbr.rel (0) target = $region37
    $region36: #{vision_ff_forward.1} parent=1 // pred_region
      %104 = vsyncadd [#allocation11], 0
      %s105 = sshll.u32 %s8, 4
      %s106 = int_to_ptr.hbm [resolvable:$true] %s105
      %s107 = sshll.u32 [#allocation12], 4
      %s108 = int_to_ptr.vmem [resolvable:$true] %s107
      %113 = dma.hbm_to_vmem [thread:$0]  %s106, 4096, %s108, [#allocation11], 128, 128, 8
    $region37: #{vision_ff_forward.1} parent=1 // pred_fallthru
      _
    // Predicated region
    $region38: #{vision_ff_forward.1} parent=1 // pred_check
      _
    $region39: #{vision_ff_forward.1} parent=1 // pred_check_branch
      %115 = sbr.rel (0) target = $region41
    $region40: #{vision_ff_forward.1} parent=1 // pred_region
      %117 = vsyncadd [#allocation14], 0
      %s119 = sshll.u32 %s9, 4
      %s120 = int_to_ptr.hbm [resolvable:$true] %s119
      %s121 = sshll.u32 [#allocation13], 4
      %s122 = int_to_ptr.vmem [resolvable:$true] %s121
      %124 = dma.hbm_to_vmem [thread:$0]  %s120, 32, %s122, [#allocation14]
    $region41: #{vision_ff_forward.1} parent=1 // pred_fallthru
      _
    // Predicated region
    $region42: #{vision_ff_forward.1} parent=1 // pred_check
      _
    $region43: #{vision_ff_forward.1} parent=1 // pred_check_branch
      %126 = sbr.rel (0) target = $region45
    $region44: #{vision_ff_forward.1} parent=1 // pred_region
      %128 = vsyncadd [#allocation14], 0
      %s129 = sshll.u32 %s10, 4
      %s130 = int_to_ptr.hbm [resolvable:$true] %s129
      %s131 = sshll.u32 [#allocation15], 4
      %s132 = int_to_ptr.vmem [resolvable:$true] %s131
      %137 = dma.hbm_to_vmem [thread:$0]  %s130, 8192, %s132, [#allocation14], 256, 256, 16
    $region45: #{vision_ff_forward.1} parent=1 // pred_fallthru
      _
    // Predicated region
    $region46: #{vision_ff_forward.1} parent=1 // pred_check
      _
    $region47: #{vision_ff_forward.1} parent=1 // pred_check_branch
      %139 = sbr.rel (0) target = $region49
    $region48: #{vision_ff_forward.1} parent=1 // pred_region
      %141 = vsyncadd [#allocation17], 0
      %s142 = sshll.u32 %s11, 4
      %s143 = int_to_ptr.hbm [resolvable:$true] %s142
      %s144 = sshll.u32 [#allocation16], 4
      %s145 = int_to_ptr.vmem [resolvable:$true] %s144
      %150 = dma.hbm_to_vmem [thread:$0]  %s143, 12288, %s145, [#allocation17], 256, 256, 16
    $region49: #{vision_ff_forward.1} parent=1 // pred_fallthru
      _
    // Predicated region
    $region50: #{vision_ff_forward.1} parent=1 // pred_check
      _
    $region51: #{vision_ff_forward.1} parent=1 // pred_check_branch
      %152 = sbr.rel (0) target = $region53
    $region52: #{vision_ff_forward.1} parent=1 // pred_region
      %154 = vsyncadd [#allocation17], 0
      %s156 = sshll.u32 %s12, 4
      %s157 = int_to_ptr.hbm [resolvable:$true] %s156
      %s158 = sshll.u32 [#allocation18], 4
      %s159 = int_to_ptr.vmem [resolvable:$true] %s158
      %161 = dma.hbm_to_vmem [thread:$0]  %s157, 64, %s159, [#allocation17]
    $region53: #{vision_ff_forward.1} parent=1 // pred_fallthru
      _
    // Predicated region
    $region54: #{vision_ff_forward.1} parent=1 // pred_check
      _
    $region55: #{vision_ff_forward.1} parent=1 // pred_check_branch
      %163 = sbr.rel (0) target = $region57
    $region56: #{vision_ff_forward.1} parent=1 // pred_region
      %165 = vsyncadd [#allocation20], 0
      %s166 = sshll.u32 %s13, 4
      %s167 = int_to_ptr.hbm [resolvable:$true] %s166
      %s168 = sshll.u32 [#allocation19], 4
      %s169 = int_to_ptr.vmem [resolvable:$true] %s168
      %174 = dma.hbm_to_vmem [thread:$0]  %s167, 4096, %s169, [#allocation20], 64, 64, 4
    $region57: #{vision_ff_forward.1} parent=1 // pred_fallthru
      _
    // Predicated region
    $region58: #{vision_ff_forward.1} parent=1 // pred_check
      _
    $region59: #{vision_ff_forward.1} parent=1 // pred_check_branch
      %176 = sbr.rel (0) target = $region61
    $region60: #{vision_ff_forward.1} parent=1 // pred_region
      %178 = vsyncadd [#allocation20], 0
      %s180 = sshll.u32 %s14, 4
      %s181 = int_to_ptr.hbm [resolvable:$true] %s180
      %s182 = sshll.u32 [#allocation21], 4
      %s183 = int_to_ptr.vmem [resolvable:$true] %s182
      %185 = dma.hbm_to_vmem [thread:$0]  %s181, 16, %s183, [#allocation20]
    $region61: #{vision_ff_forward.1} parent=1 // pred_fallthru
      _
    // Predicated region
    $region62: #{vision_ff_forward.1} parent=1 // pred_check
      _
    $region63: #{vision_ff_forward.1} parent=1 // pred_check_branch
      %187 = sbr.rel (0) target = $region65
    $region64: #{vision_ff_forward.1} parent=1 // pred_region
      %189 = dma.done [#allocation3], 40960
    $region65: #{vision_ff_forward.1} parent=1 // pred_fallthru
      _
    // Predicated region
    $region66: #{vision_ff_forward.1} parent=1 // pred_check
      _
    $region67: #{vision_ff_forward.1} parent=1 // pred_check_branch
      %191 = sbr.rel (0) target = $region69
    $region68: #{vision_ff_forward.1} parent=1 // pred_region
      %193 = dma.done [#allocation5], 80
    $region69: #{vision_ff_forward.1} parent=1 // pred_fallthru
      _
    // Predicated region
    $region70: #{vision_ff_forward.1} parent=1 // pred_check
      _
    $region71: #{vision_ff_forward.1} parent=1 // pred_check_branch
      %195 = sbr.rel (0) target = $region73
    $region72: #{vision_ff_forward.1} parent=1 // pred_region
      %197 = dma.done [#allocation5], 15360
    $region73: #{vision_ff_forward.1} parent=1 // pred_fallthru
      _
    // Predicated region
    $region74: #{vision_ff_forward.1} parent=1 // pred_check
      _
    $region75: #{vision_ff_forward.1} parent=1 // pred_check_branch
      %199 = sbr.rel (0) target = $region77
    $region76: #{vision_ff_forward.1} parent=1 // pred_region
      %201 = dma.done [#allocation8], 48
    $region77: #{vision_ff_forward.1} parent=1 // pred_fallthru
      _
    // Predicated region
    $region78: #{vision_ff_forward.1} parent=1 // pred_check
      _
    $region79: #{vision_ff_forward.1} parent=1 // pred_check_branch
      %203 = sbr.rel (0) target = $region81
    $region80: #{vision_ff_forward.1} parent=1 // pred_region
      %205 = dma.done [#allocation8], 128
    $region81: #{vision_ff_forward.1} parent=1 // pred_fallthru
      _
    // Predicated region
    $region82: #{vision_ff_forward.1} parent=1 // pred_check
      _
    $region83: #{vision_ff_forward.1} parent=1 // pred_check_branch
      %207 = sbr.rel (0) target = $region85
    $region84: #{vision_ff_forward.1} parent=1 // pred_region
      %209 = dma.done [#allocation11], 32
    $region85: #{vision_ff_forward.1} parent=1 // pred_fallthru
      _
    // Predicated region
    $region86: #{vision_ff_forward.1} parent=1 // pred_check
      _
    $region87: #{vision_ff_forward.1} parent=1 // pred_check_branch
      %211 = sbr.rel (0) target = $region89
    $region88: #{vision_ff_forward.1} parent=1 // pred_region
      %213 = dma.done [#allocation11], 4096
    $region89: #{vision_ff_forward.1} parent=1 // pred_fallthru
      _
    // Predicated region
    $region90: #{vision_ff_forward.1} parent=1 // pred_check
      _
    $region91: #{vision_ff_forward.1} parent=1 // pred_check_branch
      %215 = sbr.rel (0) target = $region93
    $region92: #{vision_ff_forward.1} parent=1 // pred_region
      %217 = dma.done [#allocation14], 32
    $region93: #{vision_ff_forward.1} parent=1 // pred_fallthru
      _
    // Predicated region
    $region94: #{vision_ff_forward.1} parent=1 // pred_check
      _
    $region95: #{vision_ff_forward.1} parent=1 // pred_check_branch
      %219 = sbr.rel (0) target = $region97
    $region96: #{vision_ff_forward.1} parent=1 // pred_region
      %221 = dma.done [#allocation14], 8192
    $region97: #{vision_ff_forward.1} parent=1 // pred_fallthru
      _
    // Predicated region
    $region98: #{vision_ff_forward.1} parent=1 // pred_check
      _
    $region99: #{vision_ff_forward.1} parent=1 // pred_check_branch
      %223 = sbr.rel (0) target = $region101
    $region100: #{vision_ff_forward.1} parent=1 // pred_region
      %225 = dma.done [#allocation17], 12288
    $region101: #{vision_ff_forward.1} parent=1 // pred_fallthru
      _
    // Predicated region
    $region102: #{vision_ff_forward.1} parent=1 // pred_check
      _
    $region103: #{vision_ff_forward.1} parent=1 // pred_check_branch
      %227 = sbr.rel (0) target = $region105
    $region104: #{vision_ff_forward.1} parent=1 // pred_region
      %229 = dma.done [#allocation17], 64
    $region105: #{vision_ff_forward.1} parent=1 // pred_fallthru
      _
    // Predicated region
    $region106: #{vision_ff_forward.1} parent=1 // pred_check
      _
    $region107: #{vision_ff_forward.1} parent=1 // pred_check_branch
      %231 = sbr.rel (0) target = $region109
    $region108: #{vision_ff_forward.1} parent=1 // pred_region
      %233 = dma.done [#allocation20], 4096
    $region109: #{vision_ff_forward.1} parent=1 // pred_fallthru
      _
    // Predicated region
    $region110: #{vision_ff_forward.1} parent=1 // pred_check
      _
    $region111: #{vision_ff_forward.1} parent=1 // pred_check_branch
      %235 = sbr.rel (0) target = $region113
    $region112: #{vision_ff_forward.1} parent=1 // pred_region
      %237 = dma.done [#allocation20], 16
    $region113: #{vision_ff_forward.1} parent=1 // pred_fallthru
      _
    %v239 = vld [vmem:[%s0] sm:$0xff]
    %v240 = vld [vmem:[#allocation2] sm:$0xff]
    %v241 = vld [vmem:[#allocation2 + $0x8] sm:$0xff]
    %v242 = vld [vmem:[#allocation2 + $0x10] sm:$0xf]
    %v243 = vld [vmem:[#allocation2 + $0x14] sm:$0xff]
    %v244 = vld [vmem:[#allocation2 + $0x1c] sm:$0xff]
    %v245 = vld [vmem:[#allocation2 + $0x24] sm:$0xf]
    %v246 = vld [vmem:[#allocation2 + $0x28] sm:$0xff]
    %v247 = vld [vmem:[#allocation2 + $0x30] sm:$0xff]
    %v248 = vld [vmem:[#allocation2 + $0x38] sm:$0xf]
    %v249 = vld [vmem:[#allocation2 + $0x3c] sm:$0xff]
    %v250 = vld [vmem:[#allocation2 + $0x44] sm:$0xff]
    %v251 = vld [vmem:[#allocation2 + $0x4c] sm:$0xf]
    %v252 = vld [vmem:[#allocation2 + $0x50] sm:$0xff]
    %v253 = vld [vmem:[#allocation2 + $0x58] sm:$0xff]
    %v254 = vld [vmem:[#allocation2 + $0x60] sm:$0xf]
    %v255 = vld [vmem:[#allocation2 + $0x64] sm:$0xff]
    %v256 = vld [vmem:[#allocation2 + $0x6c] sm:$0xff]
    %v257 = vld [vmem:[#allocation2 + $0x74] sm:$0xf]
    %v258 = vld [vmem:[#allocation2 + $0x78] sm:$0xff]
    %v259 = vld [vmem:[#allocation2 + $0x80] sm:$0xff]
    %v260 = vld [vmem:[#allocation2 + $0x88] sm:$0xf]
    %v261 = vld [vmem:[#allocation2 + $0x8c] sm:$0xff]
    %v262 = vld [vmem:[#allocation2 + $0x94] sm:$0xff]
    %v263 = vld [vmem:[#allocation2 + $0x9c] sm:$0xf]
    %v264 = vld [vmem:[#allocation2 + $0xa0] sm:$0xff]
    %v265 = vld [vmem:[#allocation2 + $0xa8] sm:$0xff]
    %v266 = vld [vmem:[#allocation2 + $0xb0] sm:$0xf]
    %v267 = vld [vmem:[#allocation2 + $0xb4] sm:$0xff]
    %v268 = vld [vmem:[#allocation2 + $0xbc] sm:$0xff]
    %v269 = vld [vmem:[#allocation2 + $0xc4] sm:$0xf]
    %v270 = vld [vmem:[#allocation2 + $0xc8] sm:$0xff]
    %v271 = vld [vmem:[#allocation2 + $0xd0] sm:$0xff]
    %v272 = vld [vmem:[#allocation2 + $0xd8] sm:$0xf]
    %v273 = vld [vmem:[#allocation2 + $0xdc] sm:$0xff]
    %v274 = vld [vmem:[#allocation2 + $0xe4] sm:$0xff]
    %v275 = vld [vmem:[#allocation2 + $0xec] sm:$0xf]
    %v276 = vld [vmem:[#allocation2 + $0xf0] sm:$0xff]
    %v277 = vld [vmem:[#allocation2 + $0xf8] sm:$0xff]
    %v278 = vld [vmem:[#allocation2 + $0x100] sm:$0xf]
    %v279 = vld [vmem:[#allocation2 + $0x104] sm:$0xff]
    %v280 = vld [vmem:[#allocation2 + $0x10c] sm:$0xff]
    %v281 = vld [vmem:[#allocation2 + $0x114] sm:$0xf]
    %v282 = vld [vmem:[#allocation2 + $0x118] sm:$0xff]
    %v283 = vld [vmem:[#allocation2 + $0x120] sm:$0xff]
    %v284 = vld [vmem:[#allocation2 + $0x128] sm:$0xf]
    %v285 = vld [vmem:[#allocation2 + $0x12c] sm:$0xff]
    %v286 = vld [vmem:[#allocation2 + $0x134] sm:$0xff]
    %v287 = vld [vmem:[#allocation2 + $0x13c] sm:$0xf]
    %v288 = vld [vmem:[#allocation2 + $0x140] sm:$0xff]
    %v289 = vld [vmem:[#allocation2 + $0x148] sm:$0xff]
    %v290 = vld [vmem:[#allocation2 + $0x150] sm:$0xf]
    %v291 = vld [vmem:[#allocation2 + $0x154] sm:$0xff]
    %v292 = vld [vmem:[#allocation2 + $0x15c] sm:$0xff]
    %v293 = vld [vmem:[#allocation2 + $0x164] sm:$0xf]
    %v294 = vld [vmem:[#allocation2 + $0x168] sm:$0xff]
    %v295 = vld [vmem:[#allocation2 + $0x170] sm:$0xff]
    %v296 = vld [vmem:[#allocation2 + $0x178] sm:$0xf]
    %v297 = vld [vmem:[#allocation2 + $0x17c] sm:$0xff]
    %v298 = vld [vmem:[#allocation2 + $0x184] sm:$0xff]
    %v299 = vld [vmem:[#allocation2 + $0x18c] sm:$0xf]
    %v300 = vld [vmem:[#allocation2 + $0x190] sm:$0xff]
    %v301 = vld [vmem:[#allocation2 + $0x198] sm:$0xff]
    %v302 = vld [vmem:[#allocation2 + $0x1a0] sm:$0xf]
    %v303 = vld [vmem:[#allocation2 + $0x1a4] sm:$0xff]
    %v304 = vld [vmem:[#allocation2 + $0x1ac] sm:$0xff]
    %v305 = vld [vmem:[#allocation2 + $0x1b4] sm:$0xf]
    %v306 = vld [vmem:[#allocation2 + $0x1b8] sm:$0xff]
    %v307 = vld [vmem:[#allocation2 + $0x1c0] sm:$0xff]
    %v308 = vld [vmem:[#allocation2 + $0x1c8] sm:$0xf]
    %v309 = vld [vmem:[#allocation2 + $0x1cc] sm:$0xff]
    %v310 = vld [vmem:[#allocation2 + $0x1d4] sm:$0xff]
    %v311 = vld [vmem:[#allocation2 + $0x1dc] sm:$0xf]
    %v312 = vld [vmem:[#allocation2 + $0x1e0] sm:$0xff]
    %v313 = vld [vmem:[#allocation2 + $0x1e8] sm:$0xff]
    %v314 = vld [vmem:[#allocation2 + $0x1f0] sm:$0xf]
    %v315 = vld [vmem:[#allocation2 + $0x1f4] sm:$0xff]
    %v316 = vld [vmem:[#allocation2 + $0x1fc] sm:$0xff]
    %v317 = vld [vmem:[#allocation2 + $0x204] sm:$0xf]
    %v318 = vld [vmem:[#allocation2 + $0x208] sm:$0xff]
    %v319 = vld [vmem:[#allocation2 + $0x210] sm:$0xff]
    %v320 = vld [vmem:[#allocation2 + $0x218] sm:$0xf]
    %v321 = vld [vmem:[#allocation2 + $0x21c] sm:$0xff]
    %v322 = vld [vmem:[#allocation2 + $0x224] sm:$0xff]
    %v323 = vld [vmem:[#allocation2 + $0x22c] sm:$0xf]
    %v324 = vld [vmem:[#allocation2 + $0x230] sm:$0xff]
    %v325 = vld [vmem:[#allocation2 + $0x238] sm:$0xff]
    %v326 = vld [vmem:[#allocation2 + $0x240] sm:$0xf]
    %v327 = vld [vmem:[#allocation2 + $0x244] sm:$0xff]
    %v328 = vld [vmem:[#allocation2 + $0x24c] sm:$0xff]
    %v329 = vld [vmem:[#allocation2 + $0x254] sm:$0xf]
    %v330 = vld [vmem:[#allocation2 + $0x258] sm:$0xff]
    %v331 = vld [vmem:[#allocation2 + $0x260] sm:$0xff]
    %v332 = vld [vmem:[#allocation2 + $0x268] sm:$0xf]
    %v333 = vld [vmem:[#allocation2 + $0x26c] sm:$0xff]
    %v334 = vld [vmem:[#allocation2 + $0x274] sm:$0xff]
    %v335 = vld [vmem:[#allocation2 + $0x27c] sm:$0xf]
    %v336 = vld [vmem:[#allocation2 + $0x280] sm:$0xff]
    %v337 = vld [vmem:[#allocation2 + $0x288] sm:$0xff]
    %v338 = vld [vmem:[#allocation2 + $0x290] sm:$0xf]
    %v339 = vld [vmem:[#allocation2 + $0x294] sm:$0xff]
    %v340 = vld [vmem:[#allocation2 + $0x29c] sm:$0xff]
    %v341 = vld [vmem:[#allocation2 + $0x2a4] sm:$0xf]
    %v342 = vld [vmem:[#allocation2 + $0x2a8] sm:$0xff]
    %v343 = vld [vmem:[#allocation2 + $0x2b0] sm:$0xff]
    %v344 = vld [vmem:[#allocation2 + $0x2b8] sm:$0xf]
    %v345 = vld [vmem:[#allocation2 + $0x2bc] sm:$0xff]
    %v346 = vld [vmem:[#allocation2 + $0x2c4] sm:$0xff]
    %v347 = vld [vmem:[#allocation2 + $0x2cc] sm:$0xf]
    %v348 = vld [vmem:[#allocation2 + $0x2d0] sm:$0xff]
    %v349 = vld [vmem:[#allocation2 + $0x2d8] sm:$0xff]
    %v350 = vld [vmem:[#allocation2 + $0x2e0] sm:$0xf]
    %v351 = vld [vmem:[#allocation2 + $0x2e4] sm:$0xff]
    %v352 = vld [vmem:[#allocation2 + $0x2ec] sm:$0xff]
    %v353 = vld [vmem:[#allocation2 + $0x2f4] sm:$0xf]
    %v354 = vld [vmem:[#allocation2 + $0x2f8] sm:$0xff]
    %v355 = vld [vmem:[#allocation2 + $0x300] sm:$0xff]
    %v356 = vld [vmem:[#allocation2 + $0x308] sm:$0xf]
    %v357 = vld [vmem:[#allocation2 + $0x30c] sm:$0xff]
    %v358 = vld [vmem:[#allocation2 + $0x314] sm:$0xff]
    %v359 = vld [vmem:[#allocation2 + $0x31c] sm:$0xf]
    %v360 = vld [vmem:[#allocation2 + $0x320] sm:$0xff]
    %v361 = vld [vmem:[#allocation2 + $0x328] sm:$0xff]
    %v362 = vld [vmem:[#allocation2 + $0x330] sm:$0xf]
    %v363 = vld [vmem:[#allocation2 + $0x334] sm:$0xff]
    %v364 = vld [vmem:[#allocation2 + $0x33c] sm:$0xff]
    %v365 = vld [vmem:[#allocation2 + $0x344] sm:$0xf]
    %v366 = vld [vmem:[#allocation2 + $0x348] sm:$0xff]
    %v367 = vld [vmem:[#allocation2 + $0x350] sm:$0xff]
    %v368 = vld [vmem:[#allocation2 + $0x358] sm:$0xf]
    %v369 = vld [vmem:[#allocation2 + $0x35c] sm:$0xff]
    %v370 = vld [vmem:[#allocation2 + $0x364] sm:$0xff]
    %v371 = vld [vmem:[#allocation2 + $0x36c] sm:$0xf]
    %v372 = vld [vmem:[#allocation2 + $0x370] sm:$0xff]
    %v373 = vld [vmem:[#allocation2 + $0x378] sm:$0xff]
    %v374 = vld [vmem:[#allocation2 + $0x380] sm:$0xf]
    %v375 = vld [vmem:[#allocation2 + $0x384] sm:$0xff]
    %v376 = vld [vmem:[#allocation2 + $0x38c] sm:$0xff]
    %v377 = vld [vmem:[#allocation2 + $0x394] sm:$0xf]
    %v378 = vld [vmem:[#allocation2 + $0x398] sm:$0xff]
    %v379 = vld [vmem:[#allocation2 + $0x3a0] sm:$0xff]
    %v380 = vld [vmem:[#allocation2 + $0x3a8] sm:$0xf]
    %v381 = vld [vmem:[#allocation2 + $0x3ac] sm:$0xff]
    %v382 = vld [vmem:[#allocation2 + $0x3b4] sm:$0xff]
    %v383 = vld [vmem:[#allocation2 + $0x3bc] sm:$0xf]
    %v384 = vld [vmem:[#allocation2 + $0x3c0] sm:$0xff]
    %v385 = vld [vmem:[#allocation2 + $0x3c8] sm:$0xff]
    %v386 = vld [vmem:[#allocation2 + $0x3d0] sm:$0xf]
    %v387 = vld [vmem:[#allocation2 + $0x3d4] sm:$0xff]
    %v388 = vld [vmem:[#allocation2 + $0x3dc] sm:$0xff]
    %v389 = vld [vmem:[#allocation2 + $0x3e4] sm:$0xf]
    %v390 = vld [vmem:[#allocation2 + $0x3e8] sm:$0xff]
    %v391 = vld [vmem:[#allocation2 + $0x3f0] sm:$0xff]
    %v392 = vld [vmem:[#allocation2 + $0x3f8] sm:$0xf]
    %v393 = vld [vmem:[#allocation2 + $0x3fc] sm:$0xff]
    %v394 = vld [vmem:[#allocation2 + $0x404] sm:$0xff]
    %v395 = vld [vmem:[#allocation2 + $0x40c] sm:$0xf]
    %v396 = vld [vmem:[#allocation2 + $0x410] sm:$0xff]
    %v397 = vld [vmem:[#allocation2 + $0x418] sm:$0xff]
    %v398 = vld [vmem:[#allocation2 + $0x420] sm:$0xf]
    %v399 = vld [vmem:[#allocation2 + $0x424] sm:$0xff]
    %v400 = vld [vmem:[#allocation2 + $0x42c] sm:$0xff]
    %v401 = vld [vmem:[#allocation2 + $0x434] sm:$0xf]
    %v402 = vld [vmem:[#allocation2 + $0x438] sm:$0xff]
    %v403 = vld [vmem:[#allocation2 + $0x440] sm:$0xff]
    %v404 = vld [vmem:[#allocation2 + $0x448] sm:$0xf]
    %v405 = vld [vmem:[#allocation2 + $0x44c] sm:$0xff]
    %v406 = vld [vmem:[#allocation2 + $0x454] sm:$0xff]
    %v407 = vld [vmem:[#allocation2 + $0x45c] sm:$0xf]
    %v408 = vld [vmem:[#allocation2 + $0x460] sm:$0xff]
    %v409 = vld [vmem:[#allocation2 + $0x468] sm:$0xff]
    %v410 = vld [vmem:[#allocation2 + $0x470] sm:$0xf]
    %v411 = vld [vmem:[#allocation2 + $0x474] sm:$0xff]
    %v412 = vld [vmem:[#allocation2 + $0x47c] sm:$0xff]
    %v413 = vld [vmem:[#allocation2 + $0x484] sm:$0xf]
    %v414 = vld [vmem:[#allocation2 + $0x488] sm:$0xff]
    %v415 = vld [vmem:[#allocation2 + $0x490] sm:$0xff]
    %v416 = vld [vmem:[#allocation2 + $0x498] sm:$0xf]
    %v417 = vld [vmem:[#allocation2 + $0x49c] sm:$0xff]
    %v418 = vld [vmem:[#allocation2 + $0x4a4] sm:$0xff]
    %v419 = vld [vmem:[#allocation2 + $0x4ac] sm:$0xf]
    %v420 = vld [vmem:[#allocation2 + $0x4b0] sm:$0xff]
    %v421 = vld [vmem:[#allocation2 + $0x4b8] sm:$0xff]
    %v422 = vld [vmem:[#allocation2 + $0x4c0] sm:$0xf]
    %v423 = vld [vmem:[#allocation2 + $0x4c4] sm:$0xff]
    %v424 = vld [vmem:[#allocation2 + $0x4cc] sm:$0xff]
    %v425 = vld [vmem:[#allocation2 + $0x4d4] sm:$0xf]
    %v426 = vld [vmem:[#allocation2 + $0x4d8] sm:$0xff]
    %v427 = vld [vmem:[#allocation2 + $0x4e0] sm:$0xff]
    %v428 = vld [vmem:[#allocation2 + $0x4e8] sm:$0xf]
    %v429 = vld [vmem:[#allocation2 + $0x4ec] sm:$0xff]
    %v430 = vld [vmem:[#allocation2 + $0x4f4] sm:$0xff]
    %v431 = vld [vmem:[#allocation2 + $0x4fc] sm:$0xf]
    %v432 = vld [vmem:[#allocation2 + $0x500] sm:$0xff]
    %v433 = vld [vmem:[#allocation2 + $0x508] sm:$0xff]
    %v434 = vld [vmem:[#allocation2 + $0x510] sm:$0xf]
    %v435 = vld [vmem:[#allocation2 + $0x514] sm:$0xff]
    %v436 = vld [vmem:[#allocation2 + $0x51c] sm:$0xff]
    %v437 = vld [vmem:[#allocation2 + $0x524] sm:$0xf]
    %v438 = vld [vmem:[#allocation2 + $0x528] sm:$0xff]
    %v439 = vld [vmem:[#allocation2 + $0x530] sm:$0xff]
    %v440 = vld [vmem:[#allocation2 + $0x538] sm:$0xf]
    %v441 = vld [vmem:[#allocation2 + $0x53c] sm:$0xff]
    %v442 = vld [vmem:[#allocation2 + $0x544] sm:$0xff]
    %v443 = vld [vmem:[#allocation2 + $0x54c] sm:$0xf]
    %v444 = vld [vmem:[#allocation2 + $0x550] sm:$0xff]
    %v445 = vld [vmem:[#allocation2 + $0x558] sm:$0xff]
    %v446 = vld [vmem:[#allocation2 + $0x560] sm:$0xf]
    %v447 = vld [vmem:[#allocation2 + $0x564] sm:$0xff]
    %v448 = vld [vmem:[#allocation2 + $0x56c] sm:$0xff]
    %v449 = vld [vmem:[#allocation2 + $0x574] sm:$0xf]
    %v450 = vld [vmem:[#allocation2 + $0x578] sm:$0xff]
    %v451 = vld [vmem:[#allocation2 + $0x580] sm:$0xff]
    %v452 = vld [vmem:[#allocation2 + $0x588] sm:$0xf]
    %v453 = vld [vmem:[#allocation2 + $0x58c] sm:$0xff]
    %v454 = vld [vmem:[#allocation2 + $0x594] sm:$0xff]
    %v455 = vld [vmem:[#allocation2 + $0x59c] sm:$0xf]
    %v456 = vld [vmem:[#allocation2 + $0x5a0] sm:$0xff]
    %v457 = vld [vmem:[#allocation2 + $0x5a8] sm:$0xff]
    %v458 = vld [vmem:[#allocation2 + $0x5b0] sm:$0xf]
    %v459 = vld [vmem:[#allocation2 + $0x5b4] sm:$0xff]
    %v460 = vld [vmem:[#allocation2 + $0x5bc] sm:$0xff]
    %v461 = vld [vmem:[#allocation2 + $0x5c4] sm:$0xf]
    %v462 = vld [vmem:[#allocation2 + $0x5c8] sm:$0xff]
    %v463 = vld [vmem:[#allocation2 + $0x5d0] sm:$0xff]
    %v464 = vld [vmem:[#allocation2 + $0x5d8] sm:$0xf]
    %v465 = vld [vmem:[#allocation2 + $0x5dc] sm:$0xff]
    %v466 = vld [vmem:[#allocation2 + $0x5e4] sm:$0xff]
    %v467 = vld [vmem:[#allocation2 + $0x5ec] sm:$0xf]
    %v468 = vld [vmem:[#allocation2 + $0x5f0] sm:$0xff]
    %v469 = vld [vmem:[#allocation2 + $0x5f8] sm:$0xff]
    %v470 = vld [vmem:[#allocation2 + $0x600] sm:$0xf]
    %v471 = vld [vmem:[#allocation2 + $0x604] sm:$0xff]
    %v472 = vld [vmem:[#allocation2 + $0x60c] sm:$0xff]
    %v473 = vld [vmem:[#allocation2 + $0x614] sm:$0xf]
    %v474 = vld [vmem:[#allocation2 + $0x618] sm:$0xff]
    %v475 = vld [vmem:[#allocation2 + $0x620] sm:$0xff]
    %v476 = vld [vmem:[#allocation2 + $0x628] sm:$0xf]
    %v477 = vld [vmem:[#allocation2 + $0x62c] sm:$0xff]
    %v478 = vld [vmem:[#allocation2 + $0x634] sm:$0xff]
    %v479 = vld [vmem:[#allocation2 + $0x63c] sm:$0xf]
    %v480 = vld [vmem:[#allocation2 + $0x640] sm:$0xff]
    %v481 = vld [vmem:[#allocation2 + $0x648] sm:$0xff]
    %v482 = vld [vmem:[#allocation2 + $0x650] sm:$0xf]
    %v483 = vld [vmem:[#allocation2 + $0x654] sm:$0xff]
    %v484 = vld [vmem:[#allocation2 + $0x65c] sm:$0xff]
    %v485 = vld [vmem:[#allocation2 + $0x664] sm:$0xf]
    %v486 = vld [vmem:[#allocation2 + $0x668] sm:$0xff]
    %v487 = vld [vmem:[#allocation2 + $0x670] sm:$0xff]
    %v488 = vld [vmem:[#allocation2 + $0x678] sm:$0xf]
    %v489 = vld [vmem:[#allocation2 + $0x67c] sm:$0xff]
    %v490 = vld [vmem:[#allocation2 + $0x684] sm:$0xff]
    %v491 = vld [vmem:[#allocation2 + $0x68c] sm:$0xf]
    %v492 = vld [vmem:[#allocation2 + $0x690] sm:$0xff]
    %v493 = vld [vmem:[#allocation2 + $0x698] sm:$0xff]
    %v494 = vld [vmem:[#allocation2 + $0x6a0] sm:$0xf]
    %v495 = vld [vmem:[#allocation2 + $0x6a4] sm:$0xff]
    %v496 = vld [vmem:[#allocation2 + $0x6ac] sm:$0xff]
    %v497 = vld [vmem:[#allocation2 + $0x6b4] sm:$0xf]
    %v498 = vld [vmem:[#allocation2 + $0x6b8] sm:$0xff]
    %v499 = vld [vmem:[#allocation2 + $0x6c0] sm:$0xff]
    %v500 = vld [vmem:[#allocation2 + $0x6c8] sm:$0xf]
    %v501 = vld [vmem:[#allocation2 + $0x6cc] sm:$0xff]
    %v502 = vld [vmem:[#allocation2 + $0x6d4] sm:$0xff]
    %v503 = vld [vmem:[#allocation2 + $0x6dc] sm:$0xf]
    %v504 = vld [vmem:[#allocation2 + $0x6e0] sm:$0xff]
    %v505 = vld [vmem:[#allocation2 + $0x6e8] sm:$0xff]
    %v506 = vld [vmem:[#allocation2 + $0x6f0] sm:$0xf]
    %v507 = vld [vmem:[#allocation2 + $0x6f4] sm:$0xff]
    %v508 = vld [vmem:[#allocation2 + $0x6fc] sm:$0xff]
    %v509 = vld [vmem:[#allocation2 + $0x704] sm:$0xf]
    %v510 = vld [vmem:[#allocation2 + $0x708] sm:$0xff]
    %v511 = vld [vmem:[#allocation2 + $0x710] sm:$0xff]
    %v512 = vld [vmem:[#allocation2 + $0x718] sm:$0xf]
    %v513 = vld [vmem:[#allocation2 + $0x71c] sm:$0xff]
    %v514 = vld [vmem:[#allocation2 + $0x724] sm:$0xff]
    %v515 = vld [vmem:[#allocation2 + $0x72c] sm:$0xf]
    %v516 = vld [vmem:[#allocation2 + $0x730] sm:$0xff]
    %v517 = vld [vmem:[#allocation2 + $0x738] sm:$0xff]
    %v518 = vld [vmem:[#allocation2 + $0x740] sm:$0xf]
    %v519 = vld [vmem:[#allocation2 + $0x744] sm:$0xff]
    %v520 = vld [vmem:[#allocation2 + $0x74c] sm:$0xff]
    %v521 = vld [vmem:[#allocation2 + $0x754] sm:$0xf]
    %v522 = vld [vmem:[#allocation2 + $0x758] sm:$0xff]
    %v523 = vld [vmem:[#allocation2 + $0x760] sm:$0xff]
    %v524 = vld [vmem:[#allocation2 + $0x768] sm:$0xf]
    %v525 = vld [vmem:[#allocation2 + $0x76c] sm:$0xff]
    %v526 = vld [vmem:[#allocation2 + $0x774] sm:$0xff]
    %v527 = vld [vmem:[#allocation2 + $0x77c] sm:$0xf]
    %v528 = vld [vmem:[#allocation2 + $0x780] sm:$0xff]
    %v529 = vld [vmem:[#allocation2 + $0x788] sm:$0xff]
    %v530 = vld [vmem:[#allocation2 + $0x790] sm:$0xf]
    %v531 = vld [vmem:[#allocation2 + $0x794] sm:$0xff]
    %v532 = vld [vmem:[#allocation2 + $0x79c] sm:$0xff]
    %v533 = vld [vmem:[#allocation2 + $0x7a4] sm:$0xf]
    %v534 = vld [vmem:[#allocation2 + $0x7a8] sm:$0xff]
    %v535 = vld [vmem:[#allocation2 + $0x7b0] sm:$0xff]
    %v536 = vld [vmem:[#allocation2 + $0x7b8] sm:$0xf]
    %v537 = vld [vmem:[#allocation2 + $0x7bc] sm:$0xff]
    %v538 = vld [vmem:[#allocation2 + $0x7c4] sm:$0xff]
    %v539 = vld [vmem:[#allocation2 + $0x7cc] sm:$0xf]
    %v540 = vld [vmem:[#allocation2 + $0x7d0] sm:$0xff]
    %v541 = vld [vmem:[#allocation2 + $0x7d8] sm:$0xff]
    %v542 = vld [vmem:[#allocation2 + $0x7e0] sm:$0xf]
    %v543 = vld [vmem:[#allocation2 + $0x7e4] sm:$0xff]
    %v544 = vld [vmem:[#allocation2 + $0x7ec] sm:$0xff]
    %v545 = vld [vmem:[#allocation2 + $0x7f4] sm:$0xf]
    %v546 = vld [vmem:[#allocation2 + $0x7f8] sm:$0xff]
    %v547 = vld [vmem:[#allocation2 + $0x800] sm:$0xff]
    %v548 = vld [vmem:[#allocation2 + $0x808] sm:$0xf]
    %v549 = vld [vmem:[#allocation2 + $0x80c] sm:$0xff]
    %v550 = vld [vmem:[#allocation2 + $0x814] sm:$0xff]
    %v551 = vld [vmem:[#allocation2 + $0x81c] sm:$0xf]
    %v552 = vld [vmem:[#allocation2 + $0x820] sm:$0xff]
    %v553 = vld [vmem:[#allocation2 + $0x828] sm:$0xff]
    %v554 = vld [vmem:[#allocation2 + $0x830] sm:$0xf]
    %v555 = vld [vmem:[#allocation2 + $0x834] sm:$0xff]
    %v556 = vld [vmem:[#allocation2 + $0x83c] sm:$0xff]
    %v557 = vld [vmem:[#allocation2 + $0x844] sm:$0xf]
    %v558 = vld [vmem:[#allocation2 + $0x848] sm:$0xff]
    %v559 = vld [vmem:[#allocation2 + $0x850] sm:$0xff]
    %v560 = vld [vmem:[#allocation2 + $0x858] sm:$0xf]
    %v561 = vld [vmem:[#allocation2 + $0x85c] sm:$0xff]
    %v562 = vld [vmem:[#allocation2 + $0x864] sm:$0xff]
    %v563 = vld [vmem:[#allocation2 + $0x86c] sm:$0xf]
    %v564 = vld [vmem:[#allocation2 + $0x870] sm:$0xff]
    %v565 = vld [vmem:[#allocation2 + $0x878] sm:$0xff]
    %v566 = vld [vmem:[#allocation2 + $0x880] sm:$0xf]
    %v567 = vld [vmem:[#allocation2 + $0x884] sm:$0xff]
    %v568 = vld [vmem:[#allocation2 + $0x88c] sm:$0xff]
    %v569 = vld [vmem:[#allocation2 + $0x894] sm:$0xf]
    %v570 = vld [vmem:[#allocation2 + $0x898] sm:$0xff]
    %v571 = vld [vmem:[#allocation2 + $0x8a0] sm:$0xff]
    %v572 = vld [vmem:[#allocation2 + $0x8a8] sm:$0xf]
    %v573 = vld [vmem:[#allocation2 + $0x8ac] sm:$0xff]
    %v574 = vld [vmem:[#allocation2 + $0x8b4] sm:$0xff]
    %v575 = vld [vmem:[#allocation2 + $0x8bc] sm:$0xf]
    %v576 = vld [vmem:[#allocation2 + $0x8c0] sm:$0xff]
    %v577 = vld [vmem:[#allocation2 + $0x8c8] sm:$0xff]
    %v578 = vld [vmem:[#allocation2 + $0x8d0] sm:$0xf]
    %v579 = vld [vmem:[#allocation2 + $0x8d4] sm:$0xff]
    %v580 = vld [vmem:[#allocation2 + $0x8dc] sm:$0xff]
    %v581 = vld [vmem:[#allocation2 + $0x8e4] sm:$0xf]
    %v582 = vld [vmem:[#allocation2 + $0x8e8] sm:$0xff]
    %v583 = vld [vmem:[#allocation2 + $0x8f0] sm:$0xff]
    %v584 = vld [vmem:[#allocation2 + $0x8f8] sm:$0xf]
    %v585 = vld [vmem:[#allocation2 + $0x8fc] sm:$0xff]
    %v586 = vld [vmem:[#allocation2 + $0x904] sm:$0xff]
    %v587 = vld [vmem:[#allocation2 + $0x90c] sm:$0xf]
    %v588 = vld [vmem:[#allocation2 + $0x910] sm:$0xff]
    %v589 = vld [vmem:[#allocation2 + $0x918] sm:$0xff]
    %v590 = vld [vmem:[#allocation2 + $0x920] sm:$0xf]
    %v591 = vld [vmem:[#allocation2 + $0x924] sm:$0xff]
    %v592 = vld [vmem:[#allocation2 + $0x92c] sm:$0xff]
    %v593 = vld [vmem:[#allocation2 + $0x934] sm:$0xf]
    %v594 = vld [vmem:[#allocation2 + $0x938] sm:$0xff]
    %v595 = vld [vmem:[#allocation2 + $0x940] sm:$0xff]
    %v596 = vld [vmem:[#allocation2 + $0x948] sm:$0xf]
    %v597 = vld [vmem:[#allocation2 + $0x94c] sm:$0xff]
    %v598 = vld [vmem:[#allocation2 + $0x954] sm:$0xff]
    %v599 = vld [vmem:[#allocation2 + $0x95c] sm:$0xf]
    %v600 = vld [vmem:[#allocation2 + $0x960] sm:$0xff]
    %v601 = vld [vmem:[#allocation2 + $0x968] sm:$0xff]
    %v602 = vld [vmem:[#allocation2 + $0x970] sm:$0xf]
    %v603 = vld [vmem:[#allocation2 + $0x974] sm:$0xff]
    %v604 = vld [vmem:[#allocation2 + $0x97c] sm:$0xff]
    %v605 = vld [vmem:[#allocation2 + $0x984] sm:$0xf]
    %v606 = vld [vmem:[#allocation2 + $0x988] sm:$0xff]
    %v607 = vld [vmem:[#allocation2 + $0x990] sm:$0xff]
    %v608 = vld [vmem:[#allocation2 + $0x998] sm:$0xf]
    %v609 = vld [vmem:[#allocation2 + $0x99c] sm:$0xff]
    %v610 = vld [vmem:[#allocation2 + $0x9a4] sm:$0xff]
    %v611 = vld [vmem:[#allocation2 + $0x9ac] sm:$0xf]
    %v612 = vld [vmem:[#allocation2 + $0x9b0] sm:$0xff]
    %v613 = vld [vmem:[#allocation2 + $0x9b8] sm:$0xff]
    %v614 = vld [vmem:[#allocation2 + $0x9c0] sm:$0xf]
    %v615 = vld [vmem:[#allocation2 + $0x9c4] sm:$0xff]
    %v616 = vld [vmem:[#allocation2 + $0x9cc] sm:$0xff]
    %v617 = vld [vmem:[#allocation2 + $0x9d4] sm:$0xf]
    %v618 = vld [vmem:[#allocation2 + $0x9d8] sm:$0xff]
    %v619 = vld [vmem:[#allocation2 + $0x9e0] sm:$0xff]
    %v620 = vld [vmem:[#allocation2 + $0x9e8] sm:$0xf]
    %v621 = vld [vmem:[#allocation2 + $0x9ec] sm:$0xff]
    %v622 = vld [vmem:[#allocation2 + $0x9f4] sm:$0xff]
    %v623 = vld [vmem:[#allocation2 + $0x9fc] sm:$0xf]
    %v624 = vld [vmem:[#allocation4] sm:$0x1f]
    %v626 = vperm.slane %v624, 0
    %v627 = vperm.slane %v624, 1
    %v628 = vperm.slane %v624, 2
    %v629 = vperm.slane %v624, 3
    %v630 = vperm.slane %v624, 4
    %637 = vst [vmem:[#allocation1] ss:$9 sm:$0xff] %v239
    %v638 = vld [vmem:[#allocation1] sm:$0xff]
    %v639 = vld [vmem:[#allocation1 + $0x9] sm:$0xff]
    %v640 = vld [vmem:[#allocation1 + $0x12] sm:$0xff]
    %v641 = vld [vmem:[#allocation1 + $0x1b] sm:$0xff]
    %v642 = vld [vmem:[#allocation1 + $0x24] sm:$0xff]
    %v643 = vld [vmem:[#allocation1 + $0x2d] sm:$0xff]
    %v644 = vld [vmem:[#allocation1 + $0x36] sm:$0xff]
    %v645 = vld [vmem:[#allocation1 + $0x3f] sm:$0xff]
    %v1038 = vunpack.c.l.b16 %v240
    %v1039 = vunpack.c.h.b16 %v240
    %v1040 = vunpack.c.l.b16 %v241
    %v1041 = vunpack.c.h.b16 %v241
    %v1042 = vunpack.c.l.b16 %v242
    %v1043 = vunpack.c.l.b16 %v243
    %v1044 = vunpack.c.h.b16 %v243
    %v1045 = vunpack.c.l.b16 %v244
    %v1046 = vunpack.c.h.b16 %v244
    %v1047 = vunpack.c.l.b16 %v245
    %v1048 = vunpack.c.l.b16 %v246
    %v1049 = vunpack.c.h.b16 %v246
    %v1050 = vunpack.c.l.b16 %v247
    %v1051 = vunpack.c.h.b16 %v247
    %v1052 = vunpack.c.l.b16 %v248
    %v1053 = vunpack.c.l.b16 %v249
    %v1054 = vunpack.c.h.b16 %v249
    %v1055 = vunpack.c.l.b16 %v250
    %v1056 = vunpack.c.h.b16 %v250
    %v1057 = vunpack.c.l.b16 %v251
    %v1058 = vunpack.c.l.b16 %v252
    %v1059 = vunpack.c.h.b16 %v252
    %v1060 = vunpack.c.l.b16 %v253
    %v1061 = vunpack.c.h.b16 %v253
    %v1062 = vunpack.c.l.b16 %v254
    %v1063 = vunpack.c.l.b16 %v255
    %v1064 = vunpack.c.h.b16 %v255
    %v1065 = vunpack.c.l.b16 %v256
    %v1066 = vunpack.c.h.b16 %v256
    %v1067 = vunpack.c.l.b16 %v257
    %v1068 = vunpack.c.l.b16 %v258
    %v1069 = vunpack.c.h.b16 %v258
    %v1070 = vunpack.c.l.b16 %v259
    %v1071 = vunpack.c.h.b16 %v259
    %v1072 = vunpack.c.l.b16 %v260
    %v1073 = vunpack.c.l.b16 %v261
    %v1074 = vunpack.c.h.b16 %v261
    %v1075 = vunpack.c.l.b16 %v262
    %v1076 = vunpack.c.h.b16 %v262
    %v1077 = vunpack.c.l.b16 %v263
    %v1078 = vunpack.c.l.b16 %v264
    %v1079 = vunpack.c.h.b16 %v264
    %v1080 = vunpack.c.l.b16 %v265
    %v1081 = vunpack.c.h.b16 %v265
    %v1082 = vunpack.c.l.b16 %v266
    %v1083 = vunpack.c.l.b16 %v267
    %v1084 = vunpack.c.h.b16 %v267
    %v1085 = vunpack.c.l.b16 %v268
    %v1086 = vunpack.c.h.b16 %v268
    %v1087 = vunpack.c.l.b16 %v269
    %v1088 = vunpack.c.l.b16 %v270
    %v1089 = vunpack.c.h.b16 %v270
    %v1090 = vunpack.c.l.b16 %v271
    %v1091 = vunpack.c.h.b16 %v271
    %v1092 = vunpack.c.l.b16 %v272
    %v1093 = vunpack.c.l.b16 %v273
    %v1094 = vunpack.c.h.b16 %v273
    %v1095 = vunpack.c.l.b16 %v274
    %v1096 = vunpack.c.h.b16 %v274
    %v1097 = vunpack.c.l.b16 %v275
    %v1098 = vunpack.c.l.b16 %v276
    %v1099 = vunpack.c.h.b16 %v276
    %v1100 = vunpack.c.l.b16 %v277
    %v1101 = vunpack.c.h.b16 %v277
    %v1102 = vunpack.c.l.b16 %v278
    %v1103 = vunpack.c.l.b16 %v279
    %v1104 = vunpack.c.h.b16 %v279
    %v1105 = vunpack.c.l.b16 %v280
    %v1106 = vunpack.c.h.b16 %v280
    %v1107 = vunpack.c.l.b16 %v281
    %v1108 = vunpack.c.l.b16 %v282
    %v1109 = vunpack.c.h.b16 %v282
    %v1110 = vunpack.c.l.b16 %v283
    %v1111 = vunpack.c.h.b16 %v283
    %v1112 = vunpack.c.l.b16 %v284
    %v1113 = vunpack.c.l.b16 %v285
    %v1114 = vunpack.c.h.b16 %v285
    %v1115 = vunpack.c.l.b16 %v286
    %v1116 = vunpack.c.h.b16 %v286
    %v1117 = vunpack.c.l.b16 %v287
    %v1118 = vunpack.c.l.b16 %v288
    %v1119 = vunpack.c.h.b16 %v288
    %v1120 = vunpack.c.l.b16 %v289
    %v1121 = vunpack.c.h.b16 %v289
    %v1122 = vunpack.c.l.b16 %v290
    %v1123 = vunpack.c.l.b16 %v291
    %v1124 = vunpack.c.h.b16 %v291
    %v1125 = vunpack.c.l.b16 %v292
    %v1126 = vunpack.c.h.b16 %v292
    %v1127 = vunpack.c.l.b16 %v293
    %v1128 = vunpack.c.l.b16 %v294
    %v1129 = vunpack.c.h.b16 %v294
    %v1130 = vunpack.c.l.b16 %v295
    %v1131 = vunpack.c.h.b16 %v295
    %v1132 = vunpack.c.l.b16 %v296
    %v1133 = vunpack.c.l.b16 %v297
    %v1134 = vunpack.c.h.b16 %v297
    %v1135 = vunpack.c.l.b16 %v298
    %v1136 = vunpack.c.h.b16 %v298
    %v1137 = vunpack.c.l.b16 %v299
    %v1138 = vunpack.c.l.b16 %v300
    %v1139 = vunpack.c.h.b16 %v300
    %v1140 = vunpack.c.l.b16 %v301
    %v1141 = vunpack.c.h.b16 %v301
    %v1142 = vunpack.c.l.b16 %v302
    %v1143 = vunpack.c.l.b16 %v303
    %v1144 = vunpack.c.h.b16 %v303
    %v1145 = vunpack.c.l.b16 %v304
    %v1146 = vunpack.c.h.b16 %v304
    %v1147 = vunpack.c.l.b16 %v305
    %v1148 = vunpack.c.l.b16 %v306
    %v1149 = vunpack.c.h.b16 %v306
    %v1150 = vunpack.c.l.b16 %v307
    %v1151 = vunpack.c.h.b16 %v307
    %v1152 = vunpack.c.l.b16 %v308
    %v1153 = vunpack.c.l.b16 %v309
    %v1154 = vunpack.c.h.b16 %v309
    %v1155 = vunpack.c.l.b16 %v310
    %v1156 = vunpack.c.h.b16 %v310
    %v1157 = vunpack.c.l.b16 %v311
    %v1158 = vunpack.c.l.b16 %v312
    %v1159 = vunpack.c.h.b16 %v312
    %v1160 = vunpack.c.l.b16 %v313
    %v1161 = vunpack.c.h.b16 %v313
    %v1162 = vunpack.c.l.b16 %v314
    %v1163 = vunpack.c.l.b16 %v315
    %v1164 = vunpack.c.h.b16 %v315
    %v1165 = vunpack.c.l.b16 %v316
    %v1166 = vunpack.c.h.b16 %v316
    %v1167 = vunpack.c.l.b16 %v317
    %v1168 = vunpack.c.l.b16 %v318
    %v1169 = vunpack.c.h.b16 %v318
    %v1170 = vunpack.c.l.b16 %v319
    %v1171 = vunpack.c.h.b16 %v319
    %v1172 = vunpack.c.l.b16 %v320
    %v1173 = vunpack.c.l.b16 %v321
    %v1174 = vunpack.c.h.b16 %v321
    %v1175 = vunpack.c.l.b16 %v322
    %v1176 = vunpack.c.h.b16 %v322
    %v1177 = vunpack.c.l.b16 %v323
    %v1178 = vunpack.c.l.b16 %v324
    %v1179 = vunpack.c.h.b16 %v324
    %v1180 = vunpack.c.l.b16 %v325
    %v1181 = vunpack.c.h.b16 %v325
    %v1182 = vunpack.c.l.b16 %v326
    %v1183 = vunpack.c.l.b16 %v327
    %v1184 = vunpack.c.h.b16 %v327
    %v1185 = vunpack.c.l.b16 %v328
    %v1186 = vunpack.c.h.b16 %v328
    %v1187 = vunpack.c.l.b16 %v329
    %v1188 = vunpack.c.l.b16 %v330
    %v1189 = vunpack.c.h.b16 %v330
    %v1190 = vunpack.c.l.b16 %v331
    %v1191 = vunpack.c.h.b16 %v331
    %v1192 = vunpack.c.l.b16 %v332
    %v1193 = vunpack.c.l.b16 %v333
    %v1194 = vunpack.c.h.b16 %v333
    %v1195 = vunpack.c.l.b16 %v334
    %v1196 = vunpack.c.h.b16 %v334
    %v1197 = vunpack.c.l.b16 %v335
    %v1198 = vunpack.c.l.b16 %v336
    %v1199 = vunpack.c.h.b16 %v336
    %v1200 = vunpack.c.l.b16 %v337
    %v1201 = vunpack.c.h.b16 %v337
    %v1202 = vunpack.c.l.b16 %v338
    %v1203 = vunpack.c.l.b16 %v339
    %v1204 = vunpack.c.h.b16 %v339
    %v1205 = vunpack.c.l.b16 %v340
    %v1206 = vunpack.c.h.b16 %v340
    %v1207 = vunpack.c.l.b16 %v341
    %v1208 = vunpack.c.l.b16 %v342
    %v1209 = vunpack.c.h.b16 %v342
    %v1210 = vunpack.c.l.b16 %v343
    %v1211 = vunpack.c.h.b16 %v343
    %v1212 = vunpack.c.l.b16 %v344
    %v1213 = vunpack.c.l.b16 %v345
    %v1214 = vunpack.c.h.b16 %v345
    %v1215 = vunpack.c.l.b16 %v346
    %v1216 = vunpack.c.h.b16 %v346
    %v1217 = vunpack.c.l.b16 %v347
    %v1218 = vunpack.c.l.b16 %v348
    %v1219 = vunpack.c.h.b16 %v348
    %v1220 = vunpack.c.l.b16 %v349
    %v1221 = vunpack.c.h.b16 %v349
    %v1222 = vunpack.c.l.b16 %v350
    %v1223 = vunpack.c.l.b16 %v351
    %v1224 = vunpack.c.h.b16 %v351
    %v1225 = vunpack.c.l.b16 %v352
    %v1226 = vunpack.c.h.b16 %v352
    %v1227 = vunpack.c.l.b16 %v353
    %v1228 = vunpack.c.l.b16 %v354
    %v1229 = vunpack.c.h.b16 %v354
    %v1230 = vunpack.c.l.b16 %v355
    %v1231 = vunpack.c.h.b16 %v355
    %v1232 = vunpack.c.l.b16 %v356
    %v1233 = vunpack.c.l.b16 %v357
    %v1234 = vunpack.c.h.b16 %v357
    %v1235 = vunpack.c.l.b16 %v358
    %v1236 = vunpack.c.h.b16 %v358
    %v1237 = vunpack.c.l.b16 %v359
    %v1238 = vunpack.c.l.b16 %v360
    %v1239 = vunpack.c.h.b16 %v360
    %v1240 = vunpack.c.l.b16 %v361
    %v1241 = vunpack.c.h.b16 %v361
    %v1242 = vunpack.c.l.b16 %v362
    %v1243 = vunpack.c.l.b16 %v363
    %v1244 = vunpack.c.h.b16 %v363
    %v1245 = vunpack.c.l.b16 %v364
    %v1246 = vunpack.c.h.b16 %v364
    %v1247 = vunpack.c.l.b16 %v365
    %v1248 = vunpack.c.l.b16 %v366
    %v1249 = vunpack.c.h.b16 %v366
    %v1250 = vunpack.c.l.b16 %v367
    %v1251 = vunpack.c.h.b16 %v367
    %v1252 = vunpack.c.l.b16 %v368
    %v1253 = vunpack.c.l.b16 %v369
    %v1254 = vunpack.c.h.b16 %v369
    %v1255 = vunpack.c.l.b16 %v370
    %v1256 = vunpack.c.h.b16 %v370
    %v1257 = vunpack.c.l.b16 %v371
    %v1258 = vunpack.c.l.b16 %v372
    %v1259 = vunpack.c.h.b16 %v372
    %v1260 = vunpack.c.l.b16 %v373
    %v1261 = vunpack.c.h.b16 %v373
    %v1262 = vunpack.c.l.b16 %v374
    %v1263 = vunpack.c.l.b16 %v375
    %v1264 = vunpack.c.h.b16 %v375
    %v1265 = vunpack.c.l.b16 %v376
    %v1266 = vunpack.c.h.b16 %v376
    %v1267 = vunpack.c.l.b16 %v377
    %v1268 = vunpack.c.l.b16 %v378
    %v1269 = vunpack.c.h.b16 %v378
    %v1270 = vunpack.c.l.b16 %v379
    %v1271 = vunpack.c.h.b16 %v379
    %v1272 = vunpack.c.l.b16 %v380
    %v1273 = vunpack.c.l.b16 %v381
    %v1274 = vunpack.c.h.b16 %v381
    %v1275 = vunpack.c.l.b16 %v382
    %v1276 = vunpack.c.h.b16 %v382
    %v1277 = vunpack.c.l.b16 %v383
    %v1278 = vunpack.c.l.b16 %v384
    %v1279 = vunpack.c.h.b16 %v384
    %v1280 = vunpack.c.l.b16 %v385
    %v1281 = vunpack.c.h.b16 %v385
    %v1282 = vunpack.c.l.b16 %v386
    %v1283 = vunpack.c.l.b16 %v387
    %v1284 = vunpack.c.h.b16 %v387
    %v1285 = vunpack.c.l.b16 %v388
    %v1286 = vunpack.c.h.b16 %v388
    %v1287 = vunpack.c.l.b16 %v389
    %v1288 = vunpack.c.l.b16 %v390
    %v1289 = vunpack.c.h.b16 %v390
    %v1290 = vunpack.c.l.b16 %v391
    %v1291 = vunpack.c.h.b16 %v391
    %v1292 = vunpack.c.l.b16 %v392
    %v1293 = vunpack.c.l.b16 %v393
    %v1294 = vunpack.c.h.b16 %v393
    %v1295 = vunpack.c.l.b16 %v394
    %v1296 = vunpack.c.h.b16 %v394
    %v1297 = vunpack.c.l.b16 %v395
    %v1298 = vunpack.c.l.b16 %v396
    %v1299 = vunpack.c.h.b16 %v396
    %v1300 = vunpack.c.l.b16 %v397
    %v1301 = vunpack.c.h.b16 %v397
    %v1302 = vunpack.c.l.b16 %v398
    %v1303 = vunpack.c.l.b16 %v399
    %v1304 = vunpack.c.h.b16 %v399
    %v1305 = vunpack.c.l.b16 %v400
    %v1306 = vunpack.c.h.b16 %v400
    %v1307 = vunpack.c.l.b16 %v401
    %v1308 = vunpack.c.l.b16 %v402
    %v1309 = vunpack.c.h.b16 %v402
    %v1310 = vunpack.c.l.b16 %v403
    %v1311 = vunpack.c.h.b16 %v403
    %v1312 = vunpack.c.l.b16 %v404
    %v1313 = vunpack.c.l.b16 %v405
    %v1314 = vunpack.c.h.b16 %v405
    %v1315 = vunpack.c.l.b16 %v406
    %v1316 = vunpack.c.h.b16 %v406
    %v1317 = vunpack.c.l.b16 %v407
    %v1318 = vunpack.c.l.b16 %v408
    %v1319 = vunpack.c.h.b16 %v408
    %v1320 = vunpack.c.l.b16 %v409
    %v1321 = vunpack.c.h.b16 %v409
    %v1322 = vunpack.c.l.b16 %v410
    %v1323 = vunpack.c.l.b16 %v411
    %v1324 = vunpack.c.h.b16 %v411
    %v1325 = vunpack.c.l.b16 %v412
    %v1326 = vunpack.c.h.b16 %v412
    %v1327 = vunpack.c.l.b16 %v413
    %v1328 = vunpack.c.l.b16 %v414
    %v1329 = vunpack.c.h.b16 %v414
    %v1330 = vunpack.c.l.b16 %v415
    %v1331 = vunpack.c.h.b16 %v415
    %v1332 = vunpack.c.l.b16 %v416
    %v1333 = vunpack.c.l.b16 %v417
    %v1334 = vunpack.c.h.b16 %v417
    %v1335 = vunpack.c.l.b16 %v418
    %v1336 = vunpack.c.h.b16 %v418
    %v1337 = vunpack.c.l.b16 %v419
    %v1338 = vunpack.c.l.b16 %v420
    %v1339 = vunpack.c.h.b16 %v420
    %v1340 = vunpack.c.l.b16 %v421
    %v1341 = vunpack.c.h.b16 %v421
    %v1342 = vunpack.c.l.b16 %v422
    %v1343 = vunpack.c.l.b16 %v423
    %v1344 = vunpack.c.h.b16 %v423
    %v1345 = vunpack.c.l.b16 %v424
    %v1346 = vunpack.c.h.b16 %v424
    %v1347 = vunpack.c.l.b16 %v425
    %v1348 = vunpack.c.l.b16 %v426
    %v1349 = vunpack.c.h.b16 %v426
    %v1350 = vunpack.c.l.b16 %v427
    %v1351 = vunpack.c.h.b16 %v427
    %v1352 = vunpack.c.l.b16 %v428
    %v1353 = vunpack.c.l.b16 %v429
    %v1354 = vunpack.c.h.b16 %v429
    %v1355 = vunpack.c.l.b16 %v430
    %v1356 = vunpack.c.h.b16 %v430
    %v1357 = vunpack.c.l.b16 %v431
    %v1358 = vunpack.c.l.b16 %v432
    %v1359 = vunpack.c.h.b16 %v432
    %v1360 = vunpack.c.l.b16 %v433
    %v1361 = vunpack.c.h.b16 %v433
    %v1362 = vunpack.c.l.b16 %v434
    %v1363 = vunpack.c.l.b16 %v435
    %v1364 = vunpack.c.h.b16 %v435
    %v1365 = vunpack.c.l.b16 %v436
    %v1366 = vunpack.c.h.b16 %v436
    %v1367 = vunpack.c.l.b16 %v437
    %v1368 = vunpack.c.l.b16 %v438
    %v1369 = vunpack.c.h.b16 %v438
    %v1370 = vunpack.c.l.b16 %v439
    %v1371 = vunpack.c.h.b16 %v439
    %v1372 = vunpack.c.l.b16 %v440
    %v1373 = vunpack.c.l.b16 %v441
    %v1374 = vunpack.c.h.b16 %v441
    %v1375 = vunpack.c.l.b16 %v442
    %v1376 = vunpack.c.h.b16 %v442
    %v1377 = vunpack.c.l.b16 %v443
    %v1378 = vunpack.c.l.b16 %v444
    %v1379 = vunpack.c.h.b16 %v444
    %v1380 = vunpack.c.l.b16 %v445
    %v1381 = vunpack.c.h.b16 %v445
    %v1382 = vunpack.c.l.b16 %v446
    %v1383 = vunpack.c.l.b16 %v447
    %v1384 = vunpack.c.h.b16 %v447
    %v1385 = vunpack.c.l.b16 %v448
    %v1386 = vunpack.c.h.b16 %v448
    %v1387 = vunpack.c.l.b16 %v449
    %v1388 = vunpack.c.l.b16 %v450
    %v1389 = vunpack.c.h.b16 %v450
    %v1390 = vunpack.c.l.b16 %v451
    %v1391 = vunpack.c.h.b16 %v451
    %v1392 = vunpack.c.l.b16 %v452
    %v1393 = vunpack.c.l.b16 %v453
    %v1394 = vunpack.c.h.b16 %v453
    %v1395 = vunpack.c.l.b16 %v454
    %v1396 = vunpack.c.h.b16 %v454
    %v1397 = vunpack.c.l.b16 %v455
    %v1398 = vunpack.c.l.b16 %v456
    %v1399 = vunpack.c.h.b16 %v456
    %v1400 = vunpack.c.l.b16 %v457
    %v1401 = vunpack.c.h.b16 %v457
    %v1402 = vunpack.c.l.b16 %v458
    %v1403 = vunpack.c.l.b16 %v459
    %v1404 = vunpack.c.h.b16 %v459
    %v1405 = vunpack.c.l.b16 %v460
    %v1406 = vunpack.c.h.b16 %v460
    %v1407 = vunpack.c.l.b16 %v461
    %v1408 = vunpack.c.l.b16 %v462
    %v1409 = vunpack.c.h.b16 %v462
    %v1410 = vunpack.c.l.b16 %v463
    %v1411 = vunpack.c.h.b16 %v463
    %v1412 = vunpack.c.l.b16 %v464
    %v1413 = vunpack.c.l.b16 %v465
    %v1414 = vunpack.c.h.b16 %v465
    %v1415 = vunpack.c.l.b16 %v466
    %v1416 = vunpack.c.h.b16 %v466
    %v1417 = vunpack.c.l.b16 %v467
    %v1418 = vunpack.c.l.b16 %v468
    %v1419 = vunpack.c.h.b16 %v468
    %v1420 = vunpack.c.l.b16 %v469
    %v1421 = vunpack.c.h.b16 %v469
    %v1422 = vunpack.c.l.b16 %v470
    %v1423 = vunpack.c.l.b16 %v471
    %v1424 = vunpack.c.h.b16 %v471
    %v1425 = vunpack.c.l.b16 %v472
    %v1426 = vunpack.c.h.b16 %v472
    %v1427 = vunpack.c.l.b16 %v473
    %v1428 = vunpack.c.l.b16 %v474
    %v1429 = vunpack.c.h.b16 %v474
    %v1430 = vunpack.c.l.b16 %v475
    %v1431 = vunpack.c.h.b16 %v475
    %v1432 = vunpack.c.l.b16 %v476
    %v1433 = vunpack.c.l.b16 %v477
    %v1434 = vunpack.c.h.b16 %v477
    %v1435 = vunpack.c.l.b16 %v478
    %v1436 = vunpack.c.h.b16 %v478
    %v1437 = vunpack.c.l.b16 %v479
    %v1438 = vunpack.c.l.b16 %v480
    %v1439 = vunpack.c.h.b16 %v480
    %v1440 = vunpack.c.l.b16 %v481
    %v1441 = vunpack.c.h.b16 %v481
    %v1442 = vunpack.c.l.b16 %v482
    %v1443 = vunpack.c.l.b16 %v483
    %v1444 = vunpack.c.h.b16 %v483
    %v1445 = vunpack.c.l.b16 %v484
    %v1446 = vunpack.c.h.b16 %v484
    %v1447 = vunpack.c.l.b16 %v485
    %v1448 = vunpack.c.l.b16 %v486
    %v1449 = vunpack.c.h.b16 %v486
    %v1450 = vunpack.c.l.b16 %v487
    %v1451 = vunpack.c.h.b16 %v487
    %v1452 = vunpack.c.l.b16 %v488
    %v1453 = vunpack.c.l.b16 %v489
    %v1454 = vunpack.c.h.b16 %v489
    %v1455 = vunpack.c.l.b16 %v490
    %v1456 = vunpack.c.h.b16 %v490
    %v1457 = vunpack.c.l.b16 %v491
    %v1458 = vunpack.c.l.b16 %v492
    %v1459 = vunpack.c.h.b16 %v492
    %v1460 = vunpack.c.l.b16 %v493
    %v1461 = vunpack.c.h.b16 %v493
    %v1462 = vunpack.c.l.b16 %v494
    %v1463 = vunpack.c.l.b16 %v495
    %v1464 = vunpack.c.h.b16 %v495
    %v1465 = vunpack.c.l.b16 %v496
    %v1466 = vunpack.c.h.b16 %v496
    %v1467 = vunpack.c.l.b16 %v497
    %v1468 = vunpack.c.l.b16 %v498
    %v1469 = vunpack.c.h.b16 %v498
    %v1470 = vunpack.c.l.b16 %v499
    %v1471 = vunpack.c.h.b16 %v499
    %v1472 = vunpack.c.l.b16 %v500
    %v1473 = vunpack.c.l.b16 %v501
    %v1474 = vunpack.c.h.b16 %v501
    %v1475 = vunpack.c.l.b16 %v502
    %v1476 = vunpack.c.h.b16 %v502
    %v1477 = vunpack.c.l.b16 %v503
    %v1478 = vunpack.c.l.b16 %v504
    %v1479 = vunpack.c.h.b16 %v504
    %v1480 = vunpack.c.l.b16 %v505
    %v1481 = vunpack.c.h.b16 %v505
    %v1482 = vunpack.c.l.b16 %v506
    %v1483 = vunpack.c.l.b16 %v507
    %v1484 = vunpack.c.h.b16 %v507
    %v1485 = vunpack.c.l.b16 %v508
    %v1486 = vunpack.c.h.b16 %v508
    %v1487 = vunpack.c.l.b16 %v509
    %v1488 = vunpack.c.l.b16 %v510
    %v1489 = vunpack.c.h.b16 %v510
    %v1490 = vunpack.c.l.b16 %v511
    %v1491 = vunpack.c.h.b16 %v511
    %v1492 = vunpack.c.l.b16 %v512
    %v1493 = vunpack.c.l.b16 %v513
    %v1494 = vunpack.c.h.b16 %v513
    %v1495 = vunpack.c.l.b16 %v514
    %v1496 = vunpack.c.h.b16 %v514
    %v1497 = vunpack.c.l.b16 %v515
    %v1498 = vunpack.c.l.b16 %v516
    %v1499 = vunpack.c.h.b16 %v516
    %v1500 = vunpack.c.l.b16 %v517
    %v1501 = vunpack.c.h.b16 %v517
    %v1502 = vunpack.c.l.b16 %v518
    %v1503 = vunpack.c.l.b16 %v519
    %v1504 = vunpack.c.h.b16 %v519
    %v1505 = vunpack.c.l.b16 %v520
    %v1506 = vunpack.c.h.b16 %v520
    %v1507 = vunpack.c.l.b16 %v521
    %v1508 = vunpack.c.l.b16 %v522
    %v1509 = vunpack.c.h.b16 %v522
    %v1510 = vunpack.c.l.b16 %v523
    %v1511 = vunpack.c.h.b16 %v523
    %v1512 = vunpack.c.l.b16 %v524
    %v1513 = vunpack.c.l.b16 %v525
    %v1514 = vunpack.c.h.b16 %v525
    %v1515 = vunpack.c.l.b16 %v526
    %v1516 = vunpack.c.h.b16 %v526
    %v1517 = vunpack.c.l.b16 %v527
    %v1518 = vunpack.c.l.b16 %v528
    %v1519 = vunpack.c.h.b16 %v528
    %v1520 = vunpack.c.l.b16 %v529
    %v1521 = vunpack.c.h.b16 %v529
    %v1522 = vunpack.c.l.b16 %v530
    %v1523 = vunpack.c.l.b16 %v531
    %v1524 = vunpack.c.h.b16 %v531
    %v1525 = vunpack.c.l.b16 %v532
    %v1526 = vunpack.c.h.b16 %v532
    %v1527 = vunpack.c.l.b16 %v533
    %v1528 = vunpack.c.l.b16 %v534
    %v1529 = vunpack.c.h.b16 %v534
    %v1530 = vunpack.c.l.b16 %v535
    %v1531 = vunpack.c.h.b16 %v535
    %v1532 = vunpack.c.l.b16 %v536
    %v1533 = vunpack.c.l.b16 %v537
    %v1534 = vunpack.c.h.b16 %v537
    %v1535 = vunpack.c.l.b16 %v538
    %v1536 = vunpack.c.h.b16 %v538
    %v1537 = vunpack.c.l.b16 %v539
    %v1538 = vunpack.c.l.b16 %v540
    %v1539 = vunpack.c.h.b16 %v540
    %v1540 = vunpack.c.l.b16 %v541
    %v1541 = vunpack.c.h.b16 %v541
    %v1542 = vunpack.c.l.b16 %v542
    %v1543 = vunpack.c.l.b16 %v543
    %v1544 = vunpack.c.h.b16 %v543
    %v1545 = vunpack.c.l.b16 %v544
    %v1546 = vunpack.c.h.b16 %v544
    %v1547 = vunpack.c.l.b16 %v545
    %v1548 = vunpack.c.l.b16 %v546
    %v1549 = vunpack.c.h.b16 %v546
    %v1550 = vunpack.c.l.b16 %v547
    %v1551 = vunpack.c.h.b16 %v547
    %v1552 = vunpack.c.l.b16 %v548
    %v1553 = vunpack.c.l.b16 %v549
    %v1554 = vunpack.c.h.b16 %v549
    %v1555 = vunpack.c.l.b16 %v550
    %v1556 = vunpack.c.h.b16 %v550
    %v1557 = vunpack.c.l.b16 %v551
    %v1558 = vunpack.c.l.b16 %v552
    %v1559 = vunpack.c.h.b16 %v552
    %v1560 = vunpack.c.l.b16 %v553
    %v1561 = vunpack.c.h.b16 %v553
    %v1562 = vunpack.c.l.b16 %v554
    %v1563 = vunpack.c.l.b16 %v555
    %v1564 = vunpack.c.h.b16 %v555
    %v1565 = vunpack.c.l.b16 %v556
    %v1566 = vunpack.c.h.b16 %v556
    %v1567 = vunpack.c.l.b16 %v557
    %v1568 = vunpack.c.l.b16 %v558
    %v1569 = vunpack.c.h.b16 %v558
    %v1570 = vunpack.c.l.b16 %v559
    %v1571 = vunpack.c.h.b16 %v559
    %v1572 = vunpack.c.l.b16 %v560
    %v1573 = vunpack.c.l.b16 %v561
    %v1574 = vunpack.c.h.b16 %v561
    %v1575 = vunpack.c.l.b16 %v562
    %v1576 = vunpack.c.h.b16 %v562
    %v1577 = vunpack.c.l.b16 %v563
    %v1578 = vunpack.c.l.b16 %v564
    %v1579 = vunpack.c.h.b16 %v564
    %v1580 = vunpack.c.l.b16 %v565
    %v1581 = vunpack.c.h.b16 %v565
    %v1582 = vunpack.c.l.b16 %v566
    %v1583 = vunpack.c.l.b16 %v567
    %v1584 = vunpack.c.h.b16 %v567
    %v1585 = vunpack.c.l.b16 %v568
    %v1586 = vunpack.c.h.b16 %v568
    %v1587 = vunpack.c.l.b16 %v569
    %v1588 = vunpack.c.l.b16 %v570
    %v1589 = vunpack.c.h.b16 %v570
    %v1590 = vunpack.c.l.b16 %v571
    %v1591 = vunpack.c.h.b16 %v571
    %v1592 = vunpack.c.l.b16 %v572
    %v1593 = vunpack.c.l.b16 %v573
    %v1594 = vunpack.c.h.b16 %v573
    %v1595 = vunpack.c.l.b16 %v574
    %v1596 = vunpack.c.h.b16 %v574
    %v1597 = vunpack.c.l.b16 %v575
    %v1598 = vunpack.c.l.b16 %v576
    %v1599 = vunpack.c.h.b16 %v576
    %v1600 = vunpack.c.l.b16 %v577
    %v1601 = vunpack.c.h.b16 %v577
    %v1602 = vunpack.c.l.b16 %v578
    %v1603 = vunpack.c.l.b16 %v579
    %v1604 = vunpack.c.h.b16 %v579
    %v1605 = vunpack.c.l.b16 %v580
    %v1606 = vunpack.c.h.b16 %v580
    %v1607 = vunpack.c.l.b16 %v581
    %v1608 = vunpack.c.l.b16 %v582
    %v1609 = vunpack.c.h.b16 %v582
    %v1610 = vunpack.c.l.b16 %v583
    %v1611 = vunpack.c.h.b16 %v583
    %v1612 = vunpack.c.l.b16 %v584
    %v1613 = vunpack.c.l.b16 %v585
    %v1614 = vunpack.c.h.b16 %v585
    %v1615 = vunpack.c.l.b16 %v586
    %v1616 = vunpack.c.h.b16 %v586
    %v1617 = vunpack.c.l.b16 %v587
    %v1618 = vunpack.c.l.b16 %v588
    %v1619 = vunpack.c.h.b16 %v588
    %v1620 = vunpack.c.l.b16 %v589
    %v1621 = vunpack.c.h.b16 %v589
    %v1622 = vunpack.c.l.b16 %v590
    %v1623 = vunpack.c.l.b16 %v591
    %v1624 = vunpack.c.h.b16 %v591
    %v1625 = vunpack.c.l.b16 %v592
    %v1626 = vunpack.c.h.b16 %v592
    %v1627 = vunpack.c.l.b16 %v593
    %v1628 = vunpack.c.l.b16 %v594
    %v1629 = vunpack.c.h.b16 %v594
    %v1630 = vunpack.c.l.b16 %v595
    %v1631 = vunpack.c.h.b16 %v595
    %v1632 = vunpack.c.l.b16 %v596
    %v1633 = vunpack.c.l.b16 %v597
    %v1634 = vunpack.c.h.b16 %v597
    %v1635 = vunpack.c.l.b16 %v598
    %v1636 = vunpack.c.h.b16 %v598
    %v1637 = vunpack.c.l.b16 %v599
    %v1638 = vunpack.c.l.b16 %v600
    %v1639 = vunpack.c.h.b16 %v600
    %v1640 = vunpack.c.l.b16 %v601
    %v1641 = vunpack.c.h.b16 %v601
    %v1642 = vunpack.c.l.b16 %v602
    %v1643 = vunpack.c.l.b16 %v603
    %v1644 = vunpack.c.h.b16 %v603
    %v1645 = vunpack.c.l.b16 %v604
    %v1646 = vunpack.c.h.b16 %v604
    %v1647 = vunpack.c.l.b16 %v605
    %v1648 = vunpack.c.l.b16 %v606
    %v1649 = vunpack.c.h.b16 %v606
    %v1650 = vunpack.c.l.b16 %v607
    %v1651 = vunpack.c.h.b16 %v607
    %v1652 = vunpack.c.l.b16 %v608
    %v1653 = vunpack.c.l.b16 %v609
    %v1654 = vunpack.c.h.b16 %v609
    %v1655 = vunpack.c.l.b16 %v610
    %v1656 = vunpack.c.h.b16 %v610
    %v1657 = vunpack.c.l.b16 %v611
    %v1658 = vunpack.c.l.b16 %v612
    %v1659 = vunpack.c.h.b16 %v612
    %v1660 = vunpack.c.l.b16 %v613
    %v1661 = vunpack.c.h.b16 %v613
    %v1662 = vunpack.c.l.b16 %v614
    %v1663 = vunpack.c.l.b16 %v615
    %v1664 = vunpack.c.h.b16 %v615
    %v1665 = vunpack.c.l.b16 %v616
    %v1666 = vunpack.c.h.b16 %v616
    %v1667 = vunpack.c.l.b16 %v617
    %v1668 = vunpack.c.l.b16 %v618
    %v1669 = vunpack.c.h.b16 %v618
    %v1670 = vunpack.c.l.b16 %v619
    %v1671 = vunpack.c.h.b16 %v619
    %v1672 = vunpack.c.l.b16 %v620
    %v1673 = vunpack.c.l.b16 %v621
    %v1674 = vunpack.c.h.b16 %v621
    %v1675 = vunpack.c.l.b16 %v622
    %v1676 = vunpack.c.h.b16 %v622
    %v1677 = vunpack.c.l.b16 %v623
    %v1678 = vpack.c.b16 %v1043, %v1038
    %v1679 = vpack.c.b16 %v1044, %v1039
    %v1680 = vpack.c.b16 %v1045, %v1040
    %v1681 = vpack.c.b16 %v1046, %v1041
    %v1682 = vpack.c.b16 %v1047, %v1042
    %v1683 = vpack.c.b16 %v1053, %v1048
    %v1684 = vpack.c.b16 %v1054, %v1049
    %v1685 = vpack.c.b16 %v1055, %v1050
    %v1686 = vpack.c.b16 %v1056, %v1051
    %v1687 = vpack.c.b16 %v1057, %v1052
    %v1688 = vpack.c.b16 %v1063, %v1058
    %v1689 = vpack.c.b16 %v1064, %v1059
    %v1690 = vpack.c.b16 %v1065, %v1060
    %v1691 = vpack.c.b16 %v1066, %v1061
    %v1692 = vpack.c.b16 %v1067, %v1062
    %v1693 = vpack.c.b16 %v1073, %v1068
    %v1694 = vpack.c.b16 %v1074, %v1069
    %v1695 = vpack.c.b16 %v1075, %v1070
    %v1696 = vpack.c.b16 %v1076, %v1071
    %v1697 = vpack.c.b16 %v1077, %v1072
    %v1698 = vpack.c.b16 %v1083, %v1078
    %v1699 = vpack.c.b16 %v1084, %v1079
    %v1700 = vpack.c.b16 %v1085, %v1080
    %v1701 = vpack.c.b16 %v1086, %v1081
    %v1702 = vpack.c.b16 %v1087, %v1082
    %v1703 = vpack.c.b16 %v1093, %v1088
    %v1704 = vpack.c.b16 %v1094, %v1089
    %v1705 = vpack.c.b16 %v1095, %v1090
    %v1706 = vpack.c.b16 %v1096, %v1091
    %v1707 = vpack.c.b16 %v1097, %v1092
    %v1708 = vpack.c.b16 %v1103, %v1098
    %v1709 = vpack.c.b16 %v1104, %v1099
    %v1710 = vpack.c.b16 %v1105, %v1100
    %v1711 = vpack.c.b16 %v1106, %v1101
    %v1712 = vpack.c.b16 %v1107, %v1102
    %v1713 = vpack.c.b16 %v1113, %v1108
    %v1714 = vpack.c.b16 %v1114, %v1109
    %v1715 = vpack.c.b16 %v1115, %v1110
    %v1716 = vpack.c.b16 %v1116, %v1111
    %v1717 = vpack.c.b16 %v1117, %v1112
    %v1718 = vpack.c.b16 %v1123, %v1118
    %v1719 = vpack.c.b16 %v1124, %v1119
    %v1720 = vpack.c.b16 %v1125, %v1120
    %v1721 = vpack.c.b16 %v1126, %v1121
    %v1722 = vpack.c.b16 %v1127, %v1122
    %v1723 = vpack.c.b16 %v1133, %v1128
    %v1724 = vpack.c.b16 %v1134, %v1129
    %v1725 = vpack.c.b16 %v1135, %v1130
    %v1726 = vpack.c.b16 %v1136, %v1131
    %v1727 = vpack.c.b16 %v1137, %v1132
    %v1728 = vpack.c.b16 %v1143, %v1138
    %v1729 = vpack.c.b16 %v1144, %v1139
    %v1730 = vpack.c.b16 %v1145, %v1140
    %v1731 = vpack.c.b16 %v1146, %v1141
    %v1732 = vpack.c.b16 %v1147, %v1142
    %v1733 = vpack.c.b16 %v1153, %v1148
    %v1734 = vpack.c.b16 %v1154, %v1149
    %v1735 = vpack.c.b16 %v1155, %v1150
    %v1736 = vpack.c.b16 %v1156, %v1151
    %v1737 = vpack.c.b16 %v1157, %v1152
    %v1738 = vpack.c.b16 %v1163, %v1158
    %v1739 = vpack.c.b16 %v1164, %v1159
    %v1740 = vpack.c.b16 %v1165, %v1160
    %v1741 = vpack.c.b16 %v1166, %v1161
    %v1742 = vpack.c.b16 %v1167, %v1162
    %v1743 = vpack.c.b16 %v1173, %v1168
    %v1744 = vpack.c.b16 %v1174, %v1169
    %v1745 = vpack.c.b16 %v1175, %v1170
    %v1746 = vpack.c.b16 %v1176, %v1171
    %v1747 = vpack.c.b16 %v1177, %v1172
    %v1748 = vpack.c.b16 %v1183, %v1178
    %v1749 = vpack.c.b16 %v1184, %v1179
    %v1750 = vpack.c.b16 %v1185, %v1180
    %v1751 = vpack.c.b16 %v1186, %v1181
    %v1752 = vpack.c.b16 %v1187, %v1182
    %v1753 = vpack.c.b16 %v1193, %v1188
    %v1754 = vpack.c.b16 %v1194, %v1189
    %v1755 = vpack.c.b16 %v1195, %v1190
    %v1756 = vpack.c.b16 %v1196, %v1191
    %v1757 = vpack.c.b16 %v1197, %v1192
    %v1758 = vpack.c.b16 %v1203, %v1198
    %v1759 = vpack.c.b16 %v1204, %v1199
    %v1760 = vpack.c.b16 %v1205, %v1200
    %v1761 = vpack.c.b16 %v1206, %v1201
    %v1762 = vpack.c.b16 %v1207, %v1202
    %v1763 = vpack.c.b16 %v1213, %v1208
    %v1764 = vpack.c.b16 %v1214, %v1209
    %v1765 = vpack.c.b16 %v1215, %v1210
    %v1766 = vpack.c.b16 %v1216, %v1211
    %v1767 = vpack.c.b16 %v1217, %v1212
    %v1768 = vpack.c.b16 %v1223, %v1218
    %v1769 = vpack.c.b16 %v1224, %v1219
    %v1770 = vpack.c.b16 %v1225, %v1220
    %v1771 = vpack.c.b16 %v1226, %v1221
    %v1772 = vpack.c.b16 %v1227, %v1222
    %v1773 = vpack.c.b16 %v1233, %v1228
    %v1774 = vpack.c.b16 %v1234, %v1229
    %v1775 = vpack.c.b16 %v1235, %v1230
    %v1776 = vpack.c.b16 %v1236, %v1231
    %v1777 = vpack.c.b16 %v1237, %v1232
    %v1778 = vpack.c.b16 %v1243, %v1238
    %v1779 = vpack.c.b16 %v1244, %v1239
    %v1780 = vpack.c.b16 %v1245, %v1240
    %v1781 = vpack.c.b16 %v1246, %v1241
    %v1782 = vpack.c.b16 %v1247, %v1242
    %v1783 = vpack.c.b16 %v1253, %v1248
    %v1784 = vpack.c.b16 %v1254, %v1249
    %v1785 = vpack.c.b16 %v1255, %v1250
    %v1786 = vpack.c.b16 %v1256, %v1251
    %v1787 = vpack.c.b16 %v1257, %v1252
    %v1788 = vpack.c.b16 %v1263, %v1258
    %v1789 = vpack.c.b16 %v1264, %v1259
    %v1790 = vpack.c.b16 %v1265, %v1260
    %v1791 = vpack.c.b16 %v1266, %v1261
    %v1792 = vpack.c.b16 %v1267, %v1262
    %v1793 = vpack.c.b16 %v1273, %v1268
    %v1794 = vpack.c.b16 %v1274, %v1269
    %v1795 = vpack.c.b16 %v1275, %v1270
    %v1796 = vpack.c.b16 %v1276, %v1271
    %v1797 = vpack.c.b16 %v1277, %v1272
    %v1798 = vpack.c.b16 %v1283, %v1278
    %v1799 = vpack.c.b16 %v1284, %v1279
    %v1800 = vpack.c.b16 %v1285, %v1280
    %v1801 = vpack.c.b16 %v1286, %v1281
    %v1802 = vpack.c.b16 %v1287, %v1282
    %v1803 = vpack.c.b16 %v1293, %v1288
    %v1804 = vpack.c.b16 %v1294, %v1289
    %v1805 = vpack.c.b16 %v1295, %v1290
    %v1806 = vpack.c.b16 %v1296, %v1291
    %v1807 = vpack.c.b16 %v1297, %v1292
    %v1808 = vpack.c.b16 %v1303, %v1298
    %v1809 = vpack.c.b16 %v1304, %v1299
    %v1810 = vpack.c.b16 %v1305, %v1300
    %v1811 = vpack.c.b16 %v1306, %v1301
    %v1812 = vpack.c.b16 %v1307, %v1302
    %v1813 = vpack.c.b16 %v1313, %v1308
    %v1814 = vpack.c.b16 %v1314, %v1309
    %v1815 = vpack.c.b16 %v1315, %v1310
    %v1816 = vpack.c.b16 %v1316, %v1311
    %v1817 = vpack.c.b16 %v1317, %v1312
    %v1818 = vpack.c.b16 %v1323, %v1318
    %v1819 = vpack.c.b16 %v1324, %v1319
    %v1820 = vpack.c.b16 %v1325, %v1320
    %v1821 = vpack.c.b16 %v1326, %v1321
    %v1822 = vpack.c.b16 %v1327, %v1322
    %v1823 = vpack.c.b16 %v1333, %v1328
    %v1824 = vpack.c.b16 %v1334, %v1329
    %v1825 = vpack.c.b16 %v1335, %v1330
    %v1826 = vpack.c.b16 %v1336, %v1331
    %v1827 = vpack.c.b16 %v1337, %v1332
    %v1828 = vpack.c.b16 %v1343, %v1338
    %v1829 = vpack.c.b16 %v1344, %v1339
    %v1830 = vpack.c.b16 %v1345, %v1340
    %v1831 = vpack.c.b16 %v1346, %v1341
    %v1832 = vpack.c.b16 %v1347, %v1342
    %v1833 = vpack.c.b16 %v1353, %v1348
    %v1834 = vpack.c.b16 %v1354, %v1349
    %v1835 = vpack.c.b16 %v1355, %v1350
    %v1836 = vpack.c.b16 %v1356, %v1351
    %v1837 = vpack.c.b16 %v1357, %v1352
    %v1838 = vpack.c.b16 %v1363, %v1358
    %v1839 = vpack.c.b16 %v1364, %v1359
    %v1840 = vpack.c.b16 %v1365, %v1360
    %v1841 = vpack.c.b16 %v1366, %v1361
    %v1842 = vpack.c.b16 %v1367, %v1362
    %v1843 = vpack.c.b16 %v1373, %v1368
    %v1844 = vpack.c.b16 %v1374, %v1369
    %v1845 = vpack.c.b16 %v1375, %v1370
    %v1846 = vpack.c.b16 %v1376, %v1371
    %v1847 = vpack.c.b16 %v1377, %v1372
    %v1848 = vpack.c.b16 %v1383, %v1378
    %v1849 = vpack.c.b16 %v1384, %v1379
    %v1850 = vpack.c.b16 %v1385, %v1380
    %v1851 = vpack.c.b16 %v1386, %v1381
    %v1852 = vpack.c.b16 %v1387, %v1382
    %v1853 = vpack.c.b16 %v1393, %v1388
    %v1854 = vpack.c.b16 %v1394, %v1389
    %v1855 = vpack.c.b16 %v1395, %v1390
    %v1856 = vpack.c.b16 %v1396, %v1391
    %v1857 = vpack.c.b16 %v1397, %v1392
    %v1858 = vpack.c.b16 %v1403, %v1398
    %v1859 = vpack.c.b16 %v1404, %v1399
    %v1860 = vpack.c.b16 %v1405, %v1400
    %v1861 = vpack.c.b16 %v1406, %v1401
    %v1862 = vpack.c.b16 %v1407, %v1402
    %v1863 = vpack.c.b16 %v1413, %v1408
    %v1864 = vpack.c.b16 %v1414, %v1409
    %v1865 = vpack.c.b16 %v1415, %v1410
    %v1866 = vpack.c.b16 %v1416, %v1411
    %v1867 = vpack.c.b16 %v1417, %v1412
    %v1868 = vpack.c.b16 %v1423, %v1418
    %v1869 = vpack.c.b16 %v1424, %v1419
    %v1870 = vpack.c.b16 %v1425, %v1420
    %v1871 = vpack.c.b16 %v1426, %v1421
    %v1872 = vpack.c.b16 %v1427, %v1422
    %v1873 = vpack.c.b16 %v1433, %v1428
    %v1874 = vpack.c.b16 %v1434, %v1429
    %v1875 = vpack.c.b16 %v1435, %v1430
    %v1876 = vpack.c.b16 %v1436, %v1431
    %v1877 = vpack.c.b16 %v1437, %v1432
    %v1878 = vpack.c.b16 %v1443, %v1438
    %v1879 = vpack.c.b16 %v1444, %v1439
    %v1880 = vpack.c.b16 %v1445, %v1440
    %v1881 = vpack.c.b16 %v1446, %v1441
    %v1882 = vpack.c.b16 %v1447, %v1442
    %v1883 = vpack.c.b16 %v1453, %v1448
    %v1884 = vpack.c.b16 %v1454, %v1449
    %v1885 = vpack.c.b16 %v1455, %v1450
    %v1886 = vpack.c.b16 %v1456, %v1451
    %v1887 = vpack.c.b16 %v1457, %v1452
    %v1888 = vpack.c.b16 %v1463, %v1458
    %v1889 = vpack.c.b16 %v1464, %v1459
    %v1890 = vpack.c.b16 %v1465, %v1460
    %v1891 = vpack.c.b16 %v1466, %v1461
    %v1892 = vpack.c.b16 %v1467, %v1462
    %v1893 = vpack.c.b16 %v1473, %v1468
    %v1894 = vpack.c.b16 %v1474, %v1469
    %v1895 = vpack.c.b16 %v1475, %v1470
    %v1896 = vpack.c.b16 %v1476, %v1471
    %v1897 = vpack.c.b16 %v1477, %v1472
    %v1898 = vpack.c.b16 %v1483, %v1478
    %v1899 = vpack.c.b16 %v1484, %v1479
    %v1900 = vpack.c.b16 %v1485, %v1480
    %v1901 = vpack.c.b16 %v1486, %v1481
    %v1902 = vpack.c.b16 %v1487, %v1482
    %v1903 = vpack.c.b16 %v1493, %v1488
    %v1904 = vpack.c.b16 %v1494, %v1489
    %v1905 = vpack.c.b16 %v1495, %v1490
    %v1906 = vpack.c.b16 %v1496, %v1491
    %v1907 = vpack.c.b16 %v1497, %v1492
    %v1908 = vpack.c.b16 %v1503, %v1498
    %v1909 = vpack.c.b16 %v1504, %v1499
    %v1910 = vpack.c.b16 %v1505, %v1500
    %v1911 = vpack.c.b16 %v1506, %v1501
    %v1912 = vpack.c.b16 %v1507, %v1502
    %v1913 = vpack.c.b16 %v1513, %v1508
    %v1914 = vpack.c.b16 %v1514, %v1509
    %v1915 = vpack.c.b16 %v1515, %v1510
    %v1916 = vpack.c.b16 %v1516, %v1511
    %v1917 = vpack.c.b16 %v1517, %v1512
    %v1918 = vpack.c.b16 %v1523, %v1518
    %v1919 = vpack.c.b16 %v1524, %v1519
    %v1920 = vpack.c.b16 %v1525, %v1520
    %v1921 = vpack.c.b16 %v1526, %v1521
    %v1922 = vpack.c.b16 %v1527, %v1522
    %v1923 = vpack.c.b16 %v1533, %v1528
    %v1924 = vpack.c.b16 %v1534, %v1529
    %v1925 = vpack.c.b16 %v1535, %v1530
    %v1926 = vpack.c.b16 %v1536, %v1531
    %v1927 = vpack.c.b16 %v1537, %v1532
    %v1928 = vpack.c.b16 %v1543, %v1538
    %v1929 = vpack.c.b16 %v1544, %v1539
    %v1930 = vpack.c.b16 %v1545, %v1540
    %v1931 = vpack.c.b16 %v1546, %v1541
    %v1932 = vpack.c.b16 %v1547, %v1542
    %v1933 = vpack.c.b16 %v1553, %v1548
    %v1934 = vpack.c.b16 %v1554, %v1549
    %v1935 = vpack.c.b16 %v1555, %v1550
    %v1936 = vpack.c.b16 %v1556, %v1551
    %v1937 = vpack.c.b16 %v1557, %v1552
    %v1938 = vpack.c.b16 %v1563, %v1558
    %v1939 = vpack.c.b16 %v1564, %v1559
    %v1940 = vpack.c.b16 %v1565, %v1560
    %v1941 = vpack.c.b16 %v1566, %v1561
    %v1942 = vpack.c.b16 %v1567, %v1562
    %v1943 = vpack.c.b16 %v1573, %v1568
    %v1944 = vpack.c.b16 %v1574, %v1569
    %v1945 = vpack.c.b16 %v1575, %v1570
    %v1946 = vpack.c.b16 %v1576, %v1571
    %v1947 = vpack.c.b16 %v1577, %v1572
    %v1948 = vpack.c.b16 %v1583, %v1578
    %v1949 = vpack.c.b16 %v1584, %v1579
    %v1950 = vpack.c.b16 %v1585, %v1580
    %v1951 = vpack.c.b16 %v1586, %v1581
    %v1952 = vpack.c.b16 %v1587, %v1582
    %v1953 = vpack.c.b16 %v1593, %v1588
    %v1954 = vpack.c.b16 %v1594, %v1589
    %v1955 = vpack.c.b16 %v1595, %v1590
    %v1956 = vpack.c.b16 %v1596, %v1591
    %v1957 = vpack.c.b16 %v1597, %v1592
    %v1958 = vpack.c.b16 %v1603, %v1598
    %v1959 = vpack.c.b16 %v1604, %v1599
    %v1960 = vpack.c.b16 %v1605, %v1600
    %v1961 = vpack.c.b16 %v1606, %v1601
    %v1962 = vpack.c.b16 %v1607, %v1602
    %v1963 = vpack.c.b16 %v1613, %v1608
    %v1964 = vpack.c.b16 %v1614, %v1609
    %v1965 = vpack.c.b16 %v1615, %v1610
    %v1966 = vpack.c.b16 %v1616, %v1611
    %v1967 = vpack.c.b16 %v1617, %v1612
    %v1968 = vpack.c.b16 %v1623, %v1618
    %v1969 = vpack.c.b16 %v1624, %v1619
    %v1970 = vpack.c.b16 %v1625, %v1620
    %v1971 = vpack.c.b16 %v1626, %v1621
    %v1972 = vpack.c.b16 %v1627, %v1622
    %v1973 = vpack.c.b16 %v1633, %v1628
    %v1974 = vpack.c.b16 %v1634, %v1629
    %v1975 = vpack.c.b16 %v1635, %v1630
    %v1976 = vpack.c.b16 %v1636, %v1631
    %v1977 = vpack.c.b16 %v1637, %v1632
    %v1978 = vpack.c.b16 %v1643, %v1638
    %v1979 = vpack.c.b16 %v1644, %v1639
    %v1980 = vpack.c.b16 %v1645, %v1640
    %v1981 = vpack.c.b16 %v1646, %v1641
    %v1982 = vpack.c.b16 %v1647, %v1642
    %v1983 = vpack.c.b16 %v1653, %v1648
    %v1984 = vpack.c.b16 %v1654, %v1649
    %v1985 = vpack.c.b16 %v1655, %v1650
    %v1986 = vpack.c.b16 %v1656, %v1651
    %v1987 = vpack.c.b16 %v1657, %v1652
    %v1988 = vpack.c.b16 %v1663, %v1658
    %v1989 = vpack.c.b16 %v1664, %v1659
    %v1990 = vpack.c.b16 %v1665, %v1660
    %v1991 = vpack.c.b16 %v1666, %v1661
    %v1992 = vpack.c.b16 %v1667, %v1662
    %v1993 = vpack.c.b16 %v1673, %v1668
    %v1994 = vpack.c.b16 %v1674, %v1669
    %v1995 = vpack.c.b16 %v1675, %v1670
    %v1996 = vpack.c.b16 %v1676, %v1671
    %v1997 = vpack.c.b16 %v1677, %v1672
    %2318 = vmatpush.bf16.msra.mxu0 %v1713
    %2319 = vmatpush.bf16.msra.mxu0 %v1708
    %2320 = vmatpush.bf16.msra.mxu0 %v1703
    %2321 = vmatpush.bf16.msra.mxu0 %v1698
    %2322 = vmatpush.bf16.msra.mxu0 %v1693
    %2323 = vmatpush.bf16.msra.mxu0 %v1688
    %2324 = vmatpush.bf16.msra.mxu0 %v1683
    %2325 = vmatpush.bf16.msra.mxu0 %v1678
    %2326 = vmatmul.bf16.gmra.mxu0 %v638
    %v2327 = vpop.f32.mrf.mxu0
    %v2328 = vadd.f32 %v626, %v2327
    %v2329 = vpop.f32.mrf.mxu0
    %2330 = vdwg.mxu0
    %2331 = vmatpush.bf16.msra.mxu0 %v1753
    %2332 = vmatpush.bf16.msra.mxu0 %v1748
    %2333 = vmatpush.bf16.msra.mxu0 %v1743
    %2334 = vmatpush.bf16.msra.mxu0 %v1738
    %2335 = vmatpush.bf16.msra.mxu0 %v1733
    %2336 = vmatpush.bf16.msra.mxu0 %v1728
    %2337 = vmatpush.bf16.msra.mxu0 %v1723
    %2338 = vmatpush.bf16.msra.mxu0 %v1718
    %2339 = vmatmul.bf16.gmra.mxu0 %v639
    %v2340 = vpop.f32.mrf.mxu0
    %v2341 = vadd.f32 %v2328, %v2340
    %v2342 = vpop.f32.mrf.mxu0
    %2343 = vdwg.mxu0
    %2344 = vmatpush.bf16.msra.mxu0 %v1793
    %2345 = vmatpush.bf16.msra.mxu0 %v1788
    %2346 = vmatpush.bf16.msra.mxu0 %v1783
    %2347 = vmatpush.bf16.msra.mxu0 %v1778
    %2348 = vmatpush.bf16.msra.mxu0 %v1773
    %2349 = vmatpush.bf16.msra.mxu0 %v1768
    %2350 = vmatpush.bf16.msra.mxu0 %v1763
    %2351 = vmatpush.bf16.msra.mxu0 %v1758
    %2352 = vmatmul.bf16.gmra.mxu0 %v640
    %v2353 = vpop.f32.mrf.mxu0
    %v2354 = vadd.f32 %v2341, %v2353
    %v2355 = vpop.f32.mrf.mxu0
    %2356 = vdwg.mxu0
    %2357 = vmatpush.bf16.msra.mxu0 %v1833
    %2358 = vmatpush.bf16.msra.mxu0 %v1828
    %2359 = vmatpush.bf16.msra.mxu0 %v1823
    %2360 = vmatpush.bf16.msra.mxu0 %v1818
    %2361 = vmatpush.bf16.msra.mxu0 %v1813
    %2362 = vmatpush.bf16.msra.mxu0 %v1808
    %2363 = vmatpush.bf16.msra.mxu0 %v1803
    %2364 = vmatpush.bf16.msra.mxu0 %v1798
    %2365 = vmatmul.bf16.gmra.mxu0 %v641
    %v2366 = vpop.f32.mrf.mxu0
    %v2367 = vadd.f32 %v2354, %v2366
    %v2368 = vpop.f32.mrf.mxu0
    %2369 = vdwg.mxu0
    %2370 = vmatpush.bf16.msra.mxu0 %v1873
    %2371 = vmatpush.bf16.msra.mxu0 %v1868
    %2372 = vmatpush.bf16.msra.mxu0 %v1863
    %2373 = vmatpush.bf16.msra.mxu0 %v1858
    %2374 = vmatpush.bf16.msra.mxu0 %v1853
    %2375 = vmatpush.bf16.msra.mxu0 %v1848
    %2376 = vmatpush.bf16.msra.mxu0 %v1843
    %2377 = vmatpush.bf16.msra.mxu0 %v1838
    %2378 = vmatmul.bf16.gmra.mxu0 %v642
    %v2379 = vpop.f32.mrf.mxu0
    %v2380 = vadd.f32 %v2367, %v2379
    %v2381 = vpop.f32.mrf.mxu0
    %2382 = vdwg.mxu0
    %2383 = vmatpush.bf16.msra.mxu0 %v1913
    %2384 = vmatpush.bf16.msra.mxu0 %v1908
    %2385 = vmatpush.bf16.msra.mxu0 %v1903
    %2386 = vmatpush.bf16.msra.mxu0 %v1898
    %2387 = vmatpush.bf16.msra.mxu0 %v1893
    %2388 = vmatpush.bf16.msra.mxu0 %v1888
    %2389 = vmatpush.bf16.msra.mxu0 %v1883
    %2390 = vmatpush.bf16.msra.mxu0 %v1878
    %2391 = vmatmul.bf16.gmra.mxu0 %v643
    %v2392 = vpop.f32.mrf.mxu0
    %v2393 = vadd.f32 %v2380, %v2392
    %v2394 = vpop.f32.mrf.mxu0
    %2395 = vdwg.mxu0
    %2396 = vmatpush.bf16.msra.mxu0 %v1953
    %2397 = vmatpush.bf16.msra.mxu0 %v1948
    %2398 = vmatpush.bf16.msra.mxu0 %v1943
    %2399 = vmatpush.bf16.msra.mxu0 %v1938
    %2400 = vmatpush.bf16.msra.mxu0 %v1933
    %2401 = vmatpush.bf16.msra.mxu0 %v1928
    %2402 = vmatpush.bf16.msra.mxu0 %v1923
    %2403 = vmatpush.bf16.msra.mxu0 %v1918
    %2404 = vmatmul.bf16.gmra.mxu0 %v644
    %v2405 = vpop.f32.mrf.mxu0
    %v2406 = vadd.f32 %v2393, %v2405
    %v2407 = vpop.f32.mrf.mxu0
    %2408 = vdwg.mxu0
    %2409 = vmatpush.bf16.msra.mxu0 %v1993
    %2410 = vmatpush.bf16.msra.mxu0 %v1988
    %2411 = vmatpush.bf16.msra.mxu0 %v1983
    %2412 = vmatpush.bf16.msra.mxu0 %v1978
    %2413 = vmatpush.bf16.msra.mxu0 %v1973
    %2414 = vmatpush.bf16.msra.mxu0 %v1968
    %2415 = vmatpush.bf16.msra.mxu0 %v1963
    %2416 = vmatpush.bf16.msra.mxu0 %v1958
    %2417 = vmatmul.bf16.gmra.mxu0 %v645
    %v2418 = vpop.f32.mrf.mxu0
    %v2419 = vadd.f32 %v2406, %v2418
    %v2420 = vpop.f32.mrf.mxu0
    %2421 = vdwg.mxu0
    %2422 = vmatpush.bf16.msra.mxu0 %v1714
    %2423 = vmatpush.bf16.msra.mxu0 %v1709
    %2424 = vmatpush.bf16.msra.mxu0 %v1704
    %2425 = vmatpush.bf16.msra.mxu0 %v1699
    %2426 = vmatpush.bf16.msra.mxu0 %v1694
    %2427 = vmatpush.bf16.msra.mxu0 %v1689
    %2428 = vmatpush.bf16.msra.mxu0 %v1684
    %2429 = vmatpush.bf16.msra.mxu0 %v1679
    %2430 = vmatmul.bf16.gmra.mxu0 %v638
    %v2431 = vpop.f32.mrf.mxu0
    %v2432 = vadd.f32 %v627, %v2431
    %v2433 = vpop.f32.mrf.mxu0
    %2434 = vdwg.mxu0
    %2435 = vmatpush.bf16.msra.mxu0 %v1754
    %2436 = vmatpush.bf16.msra.mxu0 %v1749
    %2437 = vmatpush.bf16.msra.mxu0 %v1744
    %2438 = vmatpush.bf16.msra.mxu0 %v1739
    %2439 = vmatpush.bf16.msra.mxu0 %v1734
    %2440 = vmatpush.bf16.msra.mxu0 %v1729
    %2441 = vmatpush.bf16.msra.mxu0 %v1724
    %2442 = vmatpush.bf16.msra.mxu0 %v1719
    %2443 = vmatmul.bf16.gmra.mxu0 %v639
    %v2444 = vpop.f32.mrf.mxu0
    %v2445 = vadd.f32 %v2432, %v2444
    %v2446 = vpop.f32.mrf.mxu0
    %2447 = vdwg.mxu0
    %2448 = vmatpush.bf16.msra.mxu0 %v1794
    %2449 = vmatpush.bf16.msra.mxu0 %v1789
    %2450 = vmatpush.bf16.msra.mxu0 %v1784
    %2451 = vmatpush.bf16.msra.mxu0 %v1779
    %2452 = vmatpush.bf16.msra.mxu0 %v1774
    %2453 = vmatpush.bf16.msra.mxu0 %v1769
    %2454 = vmatpush.bf16.msra.mxu0 %v1764
    %2455 = vmatpush.bf16.msra.mxu0 %v1759
    %2456 = vmatmul.bf16.gmra.mxu0 %v640
    %v2457 = vpop.f32.mrf.mxu0
    %v2458 = vadd.f32 %v2445, %v2457
    %v2459 = vpop.f32.mrf.mxu0
    %2460 = vdwg.mxu0
    %2461 = vmatpush.bf16.msra.mxu0 %v1834
    %2462 = vmatpush.bf16.msra.mxu0 %v1829
    %2463 = vmatpush.bf16.msra.mxu0 %v1824
    %2464 = vmatpush.bf16.msra.mxu0 %v1819
    %2465 = vmatpush.bf16.msra.mxu0 %v1814
    %2466 = vmatpush.bf16.msra.mxu0 %v1809
    %2467 = vmatpush.bf16.msra.mxu0 %v1804
    %2468 = vmatpush.bf16.msra.mxu0 %v1799
    %2469 = vmatmul.bf16.gmra.mxu0 %v641
    %v2470 = vpop.f32.mrf.mxu0
    %v2471 = vadd.f32 %v2458, %v2470
    %v2472 = vpop.f32.mrf.mxu0
    %2473 = vdwg.mxu0
    %2474 = vmatpush.bf16.msra.mxu0 %v1874
    %2475 = vmatpush.bf16.msra.mxu0 %v1869
    %2476 = vmatpush.bf16.msra.mxu0 %v1864
    %2477 = vmatpush.bf16.msra.mxu0 %v1859
    %2478 = vmatpush.bf16.msra.mxu0 %v1854
    %2479 = vmatpush.bf16.msra.mxu0 %v1849
    %2480 = vmatpush.bf16.msra.mxu0 %v1844
    %2481 = vmatpush.bf16.msra.mxu0 %v1839
    %2482 = vmatmul.bf16.gmra.mxu0 %v642
    %v2483 = vpop.f32.mrf.mxu0
    %v2484 = vadd.f32 %v2471, %v2483
    %v2485 = vpop.f32.mrf.mxu0
    %2486 = vdwg.mxu0
    %2487 = vmatpush.bf16.msra.mxu0 %v1914
    %2488 = vmatpush.bf16.msra.mxu0 %v1909
    %2489 = vmatpush.bf16.msra.mxu0 %v1904
    %2490 = vmatpush.bf16.msra.mxu0 %v1899
    %2491 = vmatpush.bf16.msra.mxu0 %v1894
    %2492 = vmatpush.bf16.msra.mxu0 %v1889
    %2493 = vmatpush.bf16.msra.mxu0 %v1884
    %2494 = vmatpush.bf16.msra.mxu0 %v1879
    %2495 = vmatmul.bf16.gmra.mxu0 %v643
    %v2496 = vpop.f32.mrf.mxu0
    %v2497 = vadd.f32 %v2484, %v2496
    %v2498 = vpop.f32.mrf.mxu0
    %2499 = vdwg.mxu0
    %2500 = vmatpush.bf16.msra.mxu0 %v1954
    %2501 = vmatpush.bf16.msra.mxu0 %v1949
    %2502 = vmatpush.bf16.msra.mxu0 %v1944
    %2503 = vmatpush.bf16.msra.mxu0 %v1939
    %2504 = vmatpush.bf16.msra.mxu0 %v1934
    %2505 = vmatpush.bf16.msra.mxu0 %v1929
    %2506 = vmatpush.bf16.msra.mxu0 %v1924
    %2507 = vmatpush.bf16.msra.mxu0 %v1919
    %2508 = vmatmul.bf16.gmra.mxu0 %v644
    %v2509 = vpop.f32.mrf.mxu0
    %v2510 = vadd.f32 %v2497, %v2509
    %v2511 = vpop.f32.mrf.mxu0
    %2512 = vdwg.mxu0
    %2513 = vmatpush.bf16.msra.mxu0 %v1994
    %2514 = vmatpush.bf16.msra.mxu0 %v1989
    %2515 = vmatpush.bf16.msra.mxu0 %v1984
    %2516 = vmatpush.bf16.msra.mxu0 %v1979
    %2517 = vmatpush.bf16.msra.mxu0 %v1974
    %2518 = vmatpush.bf16.msra.mxu0 %v1969
    %2519 = vmatpush.bf16.msra.mxu0 %v1964
    %2520 = vmatpush.bf16.msra.mxu0 %v1959
    %2521 = vmatmul.bf16.gmra.mxu0 %v645
    %v2522 = vpop.f32.mrf.mxu0
    %v2523 = vadd.f32 %v2510, %v2522
    %v2524 = vpop.f32.mrf.mxu0
    %2525 = vdwg.mxu0
    %2526 = vmatpush.bf16.msra.mxu0 %v1715
    %2527 = vmatpush.bf16.msra.mxu0 %v1710
    %2528 = vmatpush.bf16.msra.mxu0 %v1705
    %2529 = vmatpush.bf16.msra.mxu0 %v1700
    %2530 = vmatpush.bf16.msra.mxu0 %v1695
    %2531 = vmatpush.bf16.msra.mxu0 %v1690
    %2532 = vmatpush.bf16.msra.mxu0 %v1685
    %2533 = vmatpush.bf16.msra.mxu0 %v1680
    %2534 = vmatmul.bf16.gmra.mxu0 %v638
    %v2535 = vpop.f32.mrf.mxu0
    %v2536 = vadd.f32 %v628, %v2535
    %v2537 = vpop.f32.mrf.mxu0
    %2538 = vdwg.mxu0
    %2539 = vmatpush.bf16.msra.mxu0 %v1755
    %2540 = vmatpush.bf16.msra.mxu0 %v1750
    %2541 = vmatpush.bf16.msra.mxu0 %v1745
    %2542 = vmatpush.bf16.msra.mxu0 %v1740
    %2543 = vmatpush.bf16.msra.mxu0 %v1735
    %2544 = vmatpush.bf16.msra.mxu0 %v1730
    %2545 = vmatpush.bf16.msra.mxu0 %v1725
    %2546 = vmatpush.bf16.msra.mxu0 %v1720
    %2547 = vmatmul.bf16.gmra.mxu0 %v639
    %v2548 = vpop.f32.mrf.mxu0
    %v2549 = vadd.f32 %v2536, %v2548
    %v2550 = vpop.f32.mrf.mxu0
    %2551 = vdwg.mxu0
    %2552 = vmatpush.bf16.msra.mxu0 %v1795
    %2553 = vmatpush.bf16.msra.mxu0 %v1790
    %2554 = vmatpush.bf16.msra.mxu0 %v1785
    %2555 = vmatpush.bf16.msra.mxu0 %v1780
    %2556 = vmatpush.bf16.msra.mxu0 %v1775
    %2557 = vmatpush.bf16.msra.mxu0 %v1770
    %2558 = vmatpush.bf16.msra.mxu0 %v1765
    %2559 = vmatpush.bf16.msra.mxu0 %v1760
    %2560 = vmatmul.bf16.gmra.mxu0 %v640
    %v2561 = vpop.f32.mrf.mxu0
    %v2562 = vadd.f32 %v2549, %v2561
    %v2563 = vpop.f32.mrf.mxu0
    %2564 = vdwg.mxu0
    %2565 = vmatpush.bf16.msra.mxu0 %v1835
    %2566 = vmatpush.bf16.msra.mxu0 %v1830
    %2567 = vmatpush.bf16.msra.mxu0 %v1825
    %2568 = vmatpush.bf16.msra.mxu0 %v1820
    %2569 = vmatpush.bf16.msra.mxu0 %v1815
    %2570 = vmatpush.bf16.msra.mxu0 %v1810
    %2571 = vmatpush.bf16.msra.mxu0 %v1805
    %2572 = vmatpush.bf16.msra.mxu0 %v1800
    %2573 = vmatmul.bf16.gmra.mxu0 %v641
    %v2574 = vpop.f32.mrf.mxu0
    %v2575 = vadd.f32 %v2562, %v2574
    %v2576 = vpop.f32.mrf.mxu0
    %2577 = vdwg.mxu0
    %2578 = vmatpush.bf16.msra.mxu0 %v1875
    %2579 = vmatpush.bf16.msra.mxu0 %v1870
    %2580 = vmatpush.bf16.msra.mxu0 %v1865
    %2581 = vmatpush.bf16.msra.mxu0 %v1860
    %2582 = vmatpush.bf16.msra.mxu0 %v1855
    %2583 = vmatpush.bf16.msra.mxu0 %v1850
    %2584 = vmatpush.bf16.msra.mxu0 %v1845
    %2585 = vmatpush.bf16.msra.mxu0 %v1840
    %2586 = vmatmul.bf16.gmra.mxu0 %v642
    %v2587 = vpop.f32.mrf.mxu0
    %v2588 = vadd.f32 %v2575, %v2587
    %v2589 = vpop.f32.mrf.mxu0
    %2590 = vdwg.mxu0
    %2591 = vmatpush.bf16.msra.mxu0 %v1915
    %2592 = vmatpush.bf16.msra.mxu0 %v1910
    %2593 = vmatpush.bf16.msra.mxu0 %v1905
    %2594 = vmatpush.bf16.msra.mxu0 %v1900
    %2595 = vmatpush.bf16.msra.mxu0 %v1895
    %2596 = vmatpush.bf16.msra.mxu0 %v1890
    %2597 = vmatpush.bf16.msra.mxu0 %v1885
    %2598 = vmatpush.bf16.msra.mxu0 %v1880
    %2599 = vmatmul.bf16.gmra.mxu0 %v643
    %v2600 = vpop.f32.mrf.mxu0
    %v2601 = vadd.f32 %v2588, %v2600
    %v2602 = vpop.f32.mrf.mxu0
    %2603 = vdwg.mxu0
    %2604 = vmatpush.bf16.msra.mxu0 %v1955
    %2605 = vmatpush.bf16.msra.mxu0 %v1950
    %2606 = vmatpush.bf16.msra.mxu0 %v1945
    %2607 = vmatpush.bf16.msra.mxu0 %v1940
    %2608 = vmatpush.bf16.msra.mxu0 %v1935
    %2609 = vmatpush.bf16.msra.mxu0 %v1930
    %2610 = vmatpush.bf16.msra.mxu0 %v1925
    %2611 = vmatpush.bf16.msra.mxu0 %v1920
    %2612 = vmatmul.bf16.gmra.mxu0 %v644
    %v2613 = vpop.f32.mrf.mxu0
    %v2614 = vadd.f32 %v2601, %v2613
    %v2615 = vpop.f32.mrf.mxu0
    %2616 = vdwg.mxu0
    %2617 = vmatpush.bf16.msra.mxu0 %v1995
    %2618 = vmatpush.bf16.msra.mxu0 %v1990
    %2619 = vmatpush.bf16.msra.mxu0 %v1985
    %2620 = vmatpush.bf16.msra.mxu0 %v1980
    %2621 = vmatpush.bf16.msra.mxu0 %v1975
    %2622 = vmatpush.bf16.msra.mxu0 %v1970
    %2623 = vmatpush.bf16.msra.mxu0 %v1965
    %2624 = vmatpush.bf16.msra.mxu0 %v1960
    %2625 = vmatmul.bf16.gmra.mxu0 %v645
    %v2626 = vpop.f32.mrf.mxu0
    %v2627 = vadd.f32 %v2614, %v2626
    %v2628 = vpop.f32.mrf.mxu0
    %2629 = vdwg.mxu0
    %2630 = vmatpush.bf16.msra.mxu0 %v1716
    %2631 = vmatpush.bf16.msra.mxu0 %v1711
    %2632 = vmatpush.bf16.msra.mxu0 %v1706
    %2633 = vmatpush.bf16.msra.mxu0 %v1701
    %2634 = vmatpush.bf16.msra.mxu0 %v1696
    %2635 = vmatpush.bf16.msra.mxu0 %v1691
    %2636 = vmatpush.bf16.msra.mxu0 %v1686
    %2637 = vmatpush.bf16.msra.mxu0 %v1681
    %2638 = vmatmul.bf16.gmra.mxu0 %v638
    %v2639 = vpop.f32.mrf.mxu0
    %v2640 = vadd.f32 %v629, %v2639
    %v2641 = vpop.f32.mrf.mxu0
    %2642 = vdwg.mxu0
    %2643 = vmatpush.bf16.msra.mxu0 %v1756
    %2644 = vmatpush.bf16.msra.mxu0 %v1751
    %2645 = vmatpush.bf16.msra.mxu0 %v1746
    %2646 = vmatpush.bf16.msra.mxu0 %v1741
    %2647 = vmatpush.bf16.msra.mxu0 %v1736
    %2648 = vmatpush.bf16.msra.mxu0 %v1731
    %2649 = vmatpush.bf16.msra.mxu0 %v1726
    %2650 = vmatpush.bf16.msra.mxu0 %v1721
    %2651 = vmatmul.bf16.gmra.mxu0 %v639
    %v2652 = vpop.f32.mrf.mxu0
    %v2653 = vadd.f32 %v2640, %v2652
    %v2654 = vpop.f32.mrf.mxu0
    %2655 = vdwg.mxu0
    %2656 = vmatpush.bf16.msra.mxu0 %v1796
    %2657 = vmatpush.bf16.msra.mxu0 %v1791
    %2658 = vmatpush.bf16.msra.mxu0 %v1786
    %2659 = vmatpush.bf16.msra.mxu0 %v1781
    %2660 = vmatpush.bf16.msra.mxu0 %v1776
    %2661 = vmatpush.bf16.msra.mxu0 %v1771
    %2662 = vmatpush.bf16.msra.mxu0 %v1766
    %2663 = vmatpush.bf16.msra.mxu0 %v1761
    %2664 = vmatmul.bf16.gmra.mxu0 %v640
    %v2665 = vpop.f32.mrf.mxu0
    %v2666 = vadd.f32 %v2653, %v2665
    %v2667 = vpop.f32.mrf.mxu0
    %2668 = vdwg.mxu0
    %2669 = vmatpush.bf16.msra.mxu0 %v1836
    %2670 = vmatpush.bf16.msra.mxu0 %v1831
    %2671 = vmatpush.bf16.msra.mxu0 %v1826
    %2672 = vmatpush.bf16.msra.mxu0 %v1821
    %2673 = vmatpush.bf16.msra.mxu0 %v1816
    %2674 = vmatpush.bf16.msra.mxu0 %v1811
    %2675 = vmatpush.bf16.msra.mxu0 %v1806
    %2676 = vmatpush.bf16.msra.mxu0 %v1801
    %2677 = vmatmul.bf16.gmra.mxu0 %v641
    %v2678 = vpop.f32.mrf.mxu0
    %v2679 = vadd.f32 %v2666, %v2678
    %v2680 = vpop.f32.mrf.mxu0
    %2681 = vdwg.mxu0
    %2682 = vmatpush.bf16.msra.mxu0 %v1876
    %2683 = vmatpush.bf16.msra.mxu0 %v1871
    %2684 = vmatpush.bf16.msra.mxu0 %v1866
    %2685 = vmatpush.bf16.msra.mxu0 %v1861
    %2686 = vmatpush.bf16.msra.mxu0 %v1856
    %2687 = vmatpush.bf16.msra.mxu0 %v1851
    %2688 = vmatpush.bf16.msra.mxu0 %v1846
    %2689 = vmatpush.bf16.msra.mxu0 %v1841
    %2690 = vmatmul.bf16.gmra.mxu0 %v642
    %v2691 = vpop.f32.mrf.mxu0
    %v2692 = vadd.f32 %v2679, %v2691
    %v2693 = vpop.f32.mrf.mxu0
    %2694 = vdwg.mxu0
    %2695 = vmatpush.bf16.msra.mxu0 %v1916
    %2696 = vmatpush.bf16.msra.mxu0 %v1911
    %2697 = vmatpush.bf16.msra.mxu0 %v1906
    %2698 = vmatpush.bf16.msra.mxu0 %v1901
    %2699 = vmatpush.bf16.msra.mxu0 %v1896
    %2700 = vmatpush.bf16.msra.mxu0 %v1891
    %2701 = vmatpush.bf16.msra.mxu0 %v1886
    %2702 = vmatpush.bf16.msra.mxu0 %v1881
    %2703 = vmatmul.bf16.gmra.mxu0 %v643
    %v2704 = vpop.f32.mrf.mxu0
    %v2705 = vadd.f32 %v2692, %v2704
    %v2706 = vpop.f32.mrf.mxu0
    %2707 = vdwg.mxu0
    %2708 = vmatpush.bf16.msra.mxu0 %v1956
    %2709 = vmatpush.bf16.msra.mxu0 %v1951
    %2710 = vmatpush.bf16.msra.mxu0 %v1946
    %2711 = vmatpush.bf16.msra.mxu0 %v1941
    %2712 = vmatpush.bf16.msra.mxu0 %v1936
    %2713 = vmatpush.bf16.msra.mxu0 %v1931
    %2714 = vmatpush.bf16.msra.mxu0 %v1926
    %2715 = vmatpush.bf16.msra.mxu0 %v1921
    %2716 = vmatmul.bf16.gmra.mxu0 %v644
    %v2717 = vpop.f32.mrf.mxu0
    %v2718 = vadd.f32 %v2705, %v2717
    %v2719 = vpop.f32.mrf.mxu0
    %2720 = vdwg.mxu0
    %2721 = vmatpush.bf16.msra.mxu0 %v1996
    %2722 = vmatpush.bf16.msra.mxu0 %v1991
    %2723 = vmatpush.bf16.msra.mxu0 %v1986
    %2724 = vmatpush.bf16.msra.mxu0 %v1981
    %2725 = vmatpush.bf16.msra.mxu0 %v1976
    %2726 = vmatpush.bf16.msra.mxu0 %v1971
    %2727 = vmatpush.bf16.msra.mxu0 %v1966
    %2728 = vmatpush.bf16.msra.mxu0 %v1961
    %2729 = vmatmul.bf16.gmra.mxu0 %v645
    %v2730 = vpop.f32.mrf.mxu0
    %v2731 = vadd.f32 %v2718, %v2730
    %v2732 = vpop.f32.mrf.mxu0
    %2733 = vdwg.mxu0
    %2734 = vmatpush.bf16.msra.mxu0 %v1717
    %2735 = vmatpush.bf16.msra.mxu0 %v1712
    %2736 = vmatpush.bf16.msra.mxu0 %v1707
    %2737 = vmatpush.bf16.msra.mxu0 %v1702
    %2738 = vmatpush.bf16.msra.mxu0 %v1697
    %2739 = vmatpush.bf16.msra.mxu0 %v1692
    %2740 = vmatpush.bf16.msra.mxu0 %v1687
    %2741 = vmatpush.bf16.msra.mxu0 %v1682
    %2742 = vmatmul.bf16.gmra.mxu0 %v638
    %v2743 = vpop.f32.mrf.mxu0
    %v2744 = vadd.f32 %v630, %v2743
    %v2745 = vpop.f32.mrf.mxu0
    %2746 = vdwg.mxu0
    %2747 = vmatpush.bf16.msra.mxu0 %v1757
    %2748 = vmatpush.bf16.msra.mxu0 %v1752
    %2749 = vmatpush.bf16.msra.mxu0 %v1747
    %2750 = vmatpush.bf16.msra.mxu0 %v1742
    %2751 = vmatpush.bf16.msra.mxu0 %v1737
    %2752 = vmatpush.bf16.msra.mxu0 %v1732
    %2753 = vmatpush.bf16.msra.mxu0 %v1727
    %2754 = vmatpush.bf16.msra.mxu0 %v1722
    %2755 = vmatmul.bf16.gmra.mxu0 %v639
    %v2756 = vpop.f32.mrf.mxu0
    %v2757 = vadd.f32 %v2744, %v2756
    %v2758 = vpop.f32.mrf.mxu0
    %2759 = vdwg.mxu0
    %2760 = vmatpush.bf16.msra.mxu0 %v1797
    %2761 = vmatpush.bf16.msra.mxu0 %v1792
    %2762 = vmatpush.bf16.msra.mxu0 %v1787
    %2763 = vmatpush.bf16.msra.mxu0 %v1782
    %2764 = vmatpush.bf16.msra.mxu0 %v1777
    %2765 = vmatpush.bf16.msra.mxu0 %v1772
    %2766 = vmatpush.bf16.msra.mxu0 %v1767
    %2767 = vmatpush.bf16.msra.mxu0 %v1762
    %2768 = vmatmul.bf16.gmra.mxu0 %v640
    %v2769 = vpop.f32.mrf.mxu0
    %v2770 = vadd.f32 %v2757, %v2769
    %v2771 = vpop.f32.mrf.mxu0
    %2772 = vdwg.mxu0
    %2773 = vmatpush.bf16.msra.mxu0 %v1837
    %2774 = vmatpush.bf16.msra.mxu0 %v1832
    %2775 = vmatpush.bf16.msra.mxu0 %v1827
    %2776 = vmatpush.bf16.msra.mxu0 %v1822
    %2777 = vmatpush.bf16.msra.mxu0 %v1817
    %2778 = vmatpush.bf16.msra.mxu0 %v1812
    %2779 = vmatpush.bf16.msra.mxu0 %v1807
    %2780 = vmatpush.bf16.msra.mxu0 %v1802
    %2781 = vmatmul.bf16.gmra.mxu0 %v641
    %v2782 = vpop.f32.mrf.mxu0
    %v2783 = vadd.f32 %v2770, %v2782
    %v2784 = vpop.f32.mrf.mxu0
    %2785 = vdwg.mxu0
    %2786 = vmatpush.bf16.msra.mxu0 %v1877
    %2787 = vmatpush.bf16.msra.mxu0 %v1872
    %2788 = vmatpush.bf16.msra.mxu0 %v1867
    %2789 = vmatpush.bf16.msra.mxu0 %v1862
    %2790 = vmatpush.bf16.msra.mxu0 %v1857
    %2791 = vmatpush.bf16.msra.mxu0 %v1852
    %2792 = vmatpush.bf16.msra.mxu0 %v1847
    %2793 = vmatpush.bf16.msra.mxu0 %v1842
    %2794 = vmatmul.bf16.gmra.mxu0 %v642
    %v2795 = vpop.f32.mrf.mxu0
    %v2796 = vadd.f32 %v2783, %v2795
    %v2797 = vpop.f32.mrf.mxu0
    %2798 = vdwg.mxu0
    %2799 = vmatpush.bf16.msra.mxu0 %v1917
    %2800 = vmatpush.bf16.msra.mxu0 %v1912
    %2801 = vmatpush.bf16.msra.mxu0 %v1907
    %2802 = vmatpush.bf16.msra.mxu0 %v1902
    %2803 = vmatpush.bf16.msra.mxu0 %v1897
    %2804 = vmatpush.bf16.msra.mxu0 %v1892
    %2805 = vmatpush.bf16.msra.mxu0 %v1887
    %2806 = vmatpush.bf16.msra.mxu0 %v1882
    %2807 = vmatmul.bf16.gmra.mxu0 %v643
    %v2808 = vpop.f32.mrf.mxu0
    %v2809 = vadd.f32 %v2796, %v2808
    %v2810 = vpop.f32.mrf.mxu0
    %2811 = vdwg.mxu0
    %2812 = vmatpush.bf16.msra.mxu0 %v1957
    %2813 = vmatpush.bf16.msra.mxu0 %v1952
    %2814 = vmatpush.bf16.msra.mxu0 %v1947
    %2815 = vmatpush.bf16.msra.mxu0 %v1942
    %2816 = vmatpush.bf16.msra.mxu0 %v1937
    %2817 = vmatpush.bf16.msra.mxu0 %v1932
    %2818 = vmatpush.bf16.msra.mxu0 %v1927
    %2819 = vmatpush.bf16.msra.mxu0 %v1922
    %2820 = vmatmul.bf16.gmra.mxu0 %v644
    %v2821 = vpop.f32.mrf.mxu0
    %v2822 = vadd.f32 %v2809, %v2821
    %v2823 = vpop.f32.mrf.mxu0
    %2824 = vdwg.mxu0
    %2825 = vmatpush.bf16.msra.mxu0 %v1997
    %2826 = vmatpush.bf16.msra.mxu0 %v1992
    %2827 = vmatpush.bf16.msra.mxu0 %v1987
    %2828 = vmatpush.bf16.msra.mxu0 %v1982
    %2829 = vmatpush.bf16.msra.mxu0 %v1977
    %2830 = vmatpush.bf16.msra.mxu0 %v1972
    %2831 = vmatpush.bf16.msra.mxu0 %v1967
    %2832 = vmatpush.bf16.msra.mxu0 %v1962
    %2833 = vmatmul.bf16.gmra.mxu0 %v645
    %v2834 = vpop.f32.mrf.mxu0
    %v2835 = vadd.f32 %v2822, %v2834
    %v2836 = vpop.f32.mrf.mxu0
    %2837 = vdwg.mxu0
    %v2838 = vmax.f32 %v2419, 0.0
    %v2839 = vmax.f32 %v2523, 0.0
    %v2840 = vmax.f32 %v2627, 0.0
    %v2841 = vmax.f32 %v2731, 0.0
    %v2842 = vmax.f32 %v2835, 0.0
    %v2843 = vpack.c.bf16 %v2838, %v2838
    %v2844 = vpack.c.bf16 %v2839, %v2839
    %v2845 = vpack.c.bf16 %v2840, %v2840
    %v2846 = vpack.c.bf16 %v2841, %v2841
    %v2847 = vpack.c.bf16 %v2842, %v2842
    %v2848 = vld [vmem:[#allocation6] sm:$0xff]
    %v2849 = vld [vmem:[#allocation6 + $0x8] sm:$0xf]
    %v2850 = vld [vmem:[#allocation6 + $0xc] sm:$0xff]
    %v2851 = vld [vmem:[#allocation6 + $0x14] sm:$0xf]
    %v2852 = vld [vmem:[#allocation6 + $0x18] sm:$0xff]
    %v2853 = vld [vmem:[#allocation6 + $0x20] sm:$0xf]
    %v2854 = vld [vmem:[#allocation6 + $0x24] sm:$0xff]
    %v2855 = vld [vmem:[#allocation6 + $0x2c] sm:$0xf]
    %v2856 = vld [vmem:[#allocation6 + $0x30] sm:$0xff]
    %v2857 = vld [vmem:[#allocation6 + $0x38] sm:$0xf]
    %v2858 = vld [vmem:[#allocation6 + $0x3c] sm:$0xff]
    %v2859 = vld [vmem:[#allocation6 + $0x44] sm:$0xf]
    %v2860 = vld [vmem:[#allocation6 + $0x48] sm:$0xff]
    %v2861 = vld [vmem:[#allocation6 + $0x50] sm:$0xf]
    %v2862 = vld [vmem:[#allocation6 + $0x54] sm:$0xff]
    %v2863 = vld [vmem:[#allocation6 + $0x5c] sm:$0xf]
    %v2864 = vld [vmem:[#allocation6 + $0x60] sm:$0xff]
    %v2865 = vld [vmem:[#allocation6 + $0x68] sm:$0xf]
    %v2866 = vld [vmem:[#allocation6 + $0x6c] sm:$0xff]
    %v2867 = vld [vmem:[#allocation6 + $0x74] sm:$0xf]
    %v2868 = vld [vmem:[#allocation6 + $0x78] sm:$0xff]
    %v2869 = vld [vmem:[#allocation6 + $0x80] sm:$0xf]
    %v2870 = vld [vmem:[#allocation6 + $0x84] sm:$0xff]
    %v2871 = vld [vmem:[#allocation6 + $0x8c] sm:$0xf]
    %v2872 = vld [vmem:[#allocation6 + $0x90] sm:$0xff]
    %v2873 = vld [vmem:[#allocation6 + $0x98] sm:$0xf]
    %v2874 = vld [vmem:[#allocation6 + $0x9c] sm:$0xff]
    %v2875 = vld [vmem:[#allocation6 + $0xa4] sm:$0xf]
    %v2876 = vld [vmem:[#allocation6 + $0xa8] sm:$0xff]
    %v2877 = vld [vmem:[#allocation6 + $0xb0] sm:$0xf]
    %v2878 = vld [vmem:[#allocation6 + $0xb4] sm:$0xff]
    %v2879 = vld [vmem:[#allocation6 + $0xbc] sm:$0xf]
    %v2880 = vld [vmem:[#allocation6 + $0xc0] sm:$0xff]
    %v2881 = vld [vmem:[#allocation6 + $0xc8] sm:$0xf]
    %v2882 = vld [vmem:[#allocation6 + $0xcc] sm:$0xff]
    %v2883 = vld [vmem:[#allocation6 + $0xd4] sm:$0xf]
    %v2884 = vld [vmem:[#allocation6 + $0xd8] sm:$0xff]
    %v2885 = vld [vmem:[#allocation6 + $0xe0] sm:$0xf]
    %v2886 = vld [vmem:[#allocation6 + $0xe4] sm:$0xff]
    %v2887 = vld [vmem:[#allocation6 + $0xec] sm:$0xf]
    %v2888 = vld [vmem:[#allocation6 + $0xf0] sm:$0xff]
    %v2889 = vld [vmem:[#allocation6 + $0xf8] sm:$0xf]
    %v2890 = vld [vmem:[#allocation6 + $0xfc] sm:$0xff]
    %v2891 = vld [vmem:[#allocation6 + $0x104] sm:$0xf]
    %v2892 = vld [vmem:[#allocation6 + $0x108] sm:$0xff]
    %v2893 = vld [vmem:[#allocation6 + $0x110] sm:$0xf]
    %v2894 = vld [vmem:[#allocation6 + $0x114] sm:$0xff]
    %v2895 = vld [vmem:[#allocation6 + $0x11c] sm:$0xf]
    %v2896 = vld [vmem:[#allocation6 + $0x120] sm:$0xff]
    %v2897 = vld [vmem:[#allocation6 + $0x128] sm:$0xf]
    %v2898 = vld [vmem:[#allocation6 + $0x12c] sm:$0xff]
    %v2899 = vld [vmem:[#allocation6 + $0x134] sm:$0xf]
    %v2900 = vld [vmem:[#allocation6 + $0x138] sm:$0xff]
    %v2901 = vld [vmem:[#allocation6 + $0x140] sm:$0xf]
    %v2902 = vld [vmem:[#allocation6 + $0x144] sm:$0xff]
    %v2903 = vld [vmem:[#allocation6 + $0x14c] sm:$0xf]
    %v2904 = vld [vmem:[#allocation6 + $0x150] sm:$0xff]
    %v2905 = vld [vmem:[#allocation6 + $0x158] sm:$0xf]
    %v2906 = vld [vmem:[#allocation6 + $0x15c] sm:$0xff]
    %v2907 = vld [vmem:[#allocation6 + $0x164] sm:$0xf]
    %v2908 = vld [vmem:[#allocation6 + $0x168] sm:$0xff]
    %v2909 = vld [vmem:[#allocation6 + $0x170] sm:$0xf]
    %v2910 = vld [vmem:[#allocation6 + $0x174] sm:$0xff]
    %v2911 = vld [vmem:[#allocation6 + $0x17c] sm:$0xf]
    %v2912 = vld [vmem:[#allocation6 + $0x180] sm:$0xff]
    %v2913 = vld [vmem:[#allocation6 + $0x188] sm:$0xf]
    %v2914 = vld [vmem:[#allocation6 + $0x18c] sm:$0xff]
    %v2915 = vld [vmem:[#allocation6 + $0x194] sm:$0xf]
    %v2916 = vld [vmem:[#allocation6 + $0x198] sm:$0xff]
    %v2917 = vld [vmem:[#allocation6 + $0x1a0] sm:$0xf]
    %v2918 = vld [vmem:[#allocation6 + $0x1a4] sm:$0xff]
    %v2919 = vld [vmem:[#allocation6 + $0x1ac] sm:$0xf]
    %v2920 = vld [vmem:[#allocation6 + $0x1b0] sm:$0xff]
    %v2921 = vld [vmem:[#allocation6 + $0x1b8] sm:$0xf]
    %v2922 = vld [vmem:[#allocation6 + $0x1bc] sm:$0xff]
    %v2923 = vld [vmem:[#allocation6 + $0x1c4] sm:$0xf]
    %v2924 = vld [vmem:[#allocation6 + $0x1c8] sm:$0xff]
    %v2925 = vld [vmem:[#allocation6 + $0x1d0] sm:$0xf]
    %v2926 = vld [vmem:[#allocation6 + $0x1d4] sm:$0xff]
    %v2927 = vld [vmem:[#allocation6 + $0x1dc] sm:$0xf]
    %v2928 = vld [vmem:[#allocation6 + $0x1e0] sm:$0xff]
    %v2929 = vld [vmem:[#allocation6 + $0x1e8] sm:$0xf]
    %v2930 = vld [vmem:[#allocation6 + $0x1ec] sm:$0xff]
    %v2931 = vld [vmem:[#allocation6 + $0x1f4] sm:$0xf]
    %v2932 = vld [vmem:[#allocation6 + $0x1f8] sm:$0xff]
    %v2933 = vld [vmem:[#allocation6 + $0x200] sm:$0xf]
    %v2934 = vld [vmem:[#allocation6 + $0x204] sm:$0xff]
    %v2935 = vld [vmem:[#allocation6 + $0x20c] sm:$0xf]
    %v2936 = vld [vmem:[#allocation6 + $0x210] sm:$0xff]
    %v2937 = vld [vmem:[#allocation6 + $0x218] sm:$0xf]
    %v2938 = vld [vmem:[#allocation6 + $0x21c] sm:$0xff]
    %v2939 = vld [vmem:[#allocation6 + $0x224] sm:$0xf]
    %v2940 = vld [vmem:[#allocation6 + $0x228] sm:$0xff]
    %v2941 = vld [vmem:[#allocation6 + $0x230] sm:$0xf]
    %v2942 = vld [vmem:[#allocation6 + $0x234] sm:$0xff]
    %v2943 = vld [vmem:[#allocation6 + $0x23c] sm:$0xf]
    %v2944 = vld [vmem:[#allocation6 + $0x240] sm:$0xff]
    %v2945 = vld [vmem:[#allocation6 + $0x248] sm:$0xf]
    %v2946 = vld [vmem:[#allocation6 + $0x24c] sm:$0xff]
    %v2947 = vld [vmem:[#allocation6 + $0x254] sm:$0xf]
    %v2948 = vld [vmem:[#allocation6 + $0x258] sm:$0xff]
    %v2949 = vld [vmem:[#allocation6 + $0x260] sm:$0xf]
    %v2950 = vld [vmem:[#allocation6 + $0x264] sm:$0xff]
    %v2951 = vld [vmem:[#allocation6 + $0x26c] sm:$0xf]
    %v2952 = vld [vmem:[#allocation6 + $0x270] sm:$0xff]
    %v2953 = vld [vmem:[#allocation6 + $0x278] sm:$0xf]
    %v2954 = vld [vmem:[#allocation6 + $0x27c] sm:$0xff]
    %v2955 = vld [vmem:[#allocation6 + $0x284] sm:$0xf]
    %v2956 = vld [vmem:[#allocation6 + $0x288] sm:$0xff]
    %v2957 = vld [vmem:[#allocation6 + $0x290] sm:$0xf]
    %v2958 = vld [vmem:[#allocation6 + $0x294] sm:$0xff]
    %v2959 = vld [vmem:[#allocation6 + $0x29c] sm:$0xf]
    %v2960 = vld [vmem:[#allocation6 + $0x2a0] sm:$0xff]
    %v2961 = vld [vmem:[#allocation6 + $0x2a8] sm:$0xf]
    %v2962 = vld [vmem:[#allocation6 + $0x2ac] sm:$0xff]
    %v2963 = vld [vmem:[#allocation6 + $0x2b4] sm:$0xf]
    %v2964 = vld [vmem:[#allocation6 + $0x2b8] sm:$0xff]
    %v2965 = vld [vmem:[#allocation6 + $0x2c0] sm:$0xf]
    %v2966 = vld [vmem:[#allocation6 + $0x2c4] sm:$0xff]
    %v2967 = vld [vmem:[#allocation6 + $0x2cc] sm:$0xf]
    %v2968 = vld [vmem:[#allocation6 + $0x2d0] sm:$0xff]
    %v2969 = vld [vmem:[#allocation6 + $0x2d8] sm:$0xf]
    %v2970 = vld [vmem:[#allocation6 + $0x2dc] sm:$0xff]
    %v2971 = vld [vmem:[#allocation6 + $0x2e4] sm:$0xf]
    %v2972 = vld [vmem:[#allocation6 + $0x2e8] sm:$0xff]
    %v2973 = vld [vmem:[#allocation6 + $0x2f0] sm:$0xf]
    %v2974 = vld [vmem:[#allocation6 + $0x2f4] sm:$0xff]
    %v2975 = vld [vmem:[#allocation6 + $0x2fc] sm:$0xf]
    %v2976 = vld [vmem:[#allocation6 + $0x300] sm:$0xff]
    %v2977 = vld [vmem:[#allocation6 + $0x308] sm:$0xf]
    %v2978 = vld [vmem:[#allocation6 + $0x30c] sm:$0xff]
    %v2979 = vld [vmem:[#allocation6 + $0x314] sm:$0xf]
    %v2980 = vld [vmem:[#allocation6 + $0x318] sm:$0xff]
    %v2981 = vld [vmem:[#allocation6 + $0x320] sm:$0xf]
    %v2982 = vld [vmem:[#allocation6 + $0x324] sm:$0xff]
    %v2983 = vld [vmem:[#allocation6 + $0x32c] sm:$0xf]
    %v2984 = vld [vmem:[#allocation6 + $0x330] sm:$0xff]
    %v2985 = vld [vmem:[#allocation6 + $0x338] sm:$0xf]
    %v2986 = vld [vmem:[#allocation6 + $0x33c] sm:$0xff]
    %v2987 = vld [vmem:[#allocation6 + $0x344] sm:$0xf]
    %v2988 = vld [vmem:[#allocation6 + $0x348] sm:$0xff]
    %v2989 = vld [vmem:[#allocation6 + $0x350] sm:$0xf]
    %v2990 = vld [vmem:[#allocation6 + $0x354] sm:$0xff]
    %v2991 = vld [vmem:[#allocation6 + $0x35c] sm:$0xf]
    %v2992 = vld [vmem:[#allocation6 + $0x360] sm:$0xff]
    %v2993 = vld [vmem:[#allocation6 + $0x368] sm:$0xf]
    %v2994 = vld [vmem:[#allocation6 + $0x36c] sm:$0xff]
    %v2995 = vld [vmem:[#allocation6 + $0x374] sm:$0xf]
    %v2996 = vld [vmem:[#allocation6 + $0x378] sm:$0xff]
    %v2997 = vld [vmem:[#allocation6 + $0x380] sm:$0xf]
    %v2998 = vld [vmem:[#allocation6 + $0x384] sm:$0xff]
    %v2999 = vld [vmem:[#allocation6 + $0x38c] sm:$0xf]
    %v3000 = vld [vmem:[#allocation6 + $0x390] sm:$0xff]
    %v3001 = vld [vmem:[#allocation6 + $0x398] sm:$0xf]
    %v3002 = vld [vmem:[#allocation6 + $0x39c] sm:$0xff]
    %v3003 = vld [vmem:[#allocation6 + $0x3a4] sm:$0xf]
    %v3004 = vld [vmem:[#allocation6 + $0x3a8] sm:$0xff]
    %v3005 = vld [vmem:[#allocation6 + $0x3b0] sm:$0xf]
    %v3006 = vld [vmem:[#allocation6 + $0x3b4] sm:$0xff]
    %v3007 = vld [vmem:[#allocation6 + $0x3bc] sm:$0xf]
    %v3008 = vld [vmem:[#allocation7] sm:$0x7]
    %v3010 = vperm.slane %v3008, 0
    %v3011 = vperm.slane %v3008, 1
    %v3012 = vperm.slane %v3008, 2
    %v3176 = vunpack.c.l.b16 %v2848
    %v3177 = vunpack.c.h.b16 %v2848
    %v3178 = vunpack.c.l.b16 %v2849
    %v3179 = vunpack.c.l.b16 %v2850
    %v3180 = vunpack.c.h.b16 %v2850
    %v3181 = vunpack.c.l.b16 %v2851
    %v3182 = vunpack.c.l.b16 %v2852
    %v3183 = vunpack.c.h.b16 %v2852
    %v3184 = vunpack.c.l.b16 %v2853
    %v3185 = vunpack.c.l.b16 %v2854
    %v3186 = vunpack.c.h.b16 %v2854
    %v3187 = vunpack.c.l.b16 %v2855
    %v3188 = vunpack.c.l.b16 %v2856
    %v3189 = vunpack.c.h.b16 %v2856
    %v3190 = vunpack.c.l.b16 %v2857
    %v3191 = vunpack.c.l.b16 %v2858
    %v3192 = vunpack.c.h.b16 %v2858
    %v3193 = vunpack.c.l.b16 %v2859
    %v3194 = vunpack.c.l.b16 %v2860
    %v3195 = vunpack.c.h.b16 %v2860
    %v3196 = vunpack.c.l.b16 %v2861
    %v3197 = vunpack.c.l.b16 %v2862
    %v3198 = vunpack.c.h.b16 %v2862
    %v3199 = vunpack.c.l.b16 %v2863
    %v3200 = vunpack.c.l.b16 %v2864
    %v3201 = vunpack.c.h.b16 %v2864
    %v3202 = vunpack.c.l.b16 %v2865
    %v3203 = vunpack.c.l.b16 %v2866
    %v3204 = vunpack.c.h.b16 %v2866
    %v3205 = vunpack.c.l.b16 %v2867
    %v3206 = vunpack.c.l.b16 %v2868
    %v3207 = vunpack.c.h.b16 %v2868
    %v3208 = vunpack.c.l.b16 %v2869
    %v3209 = vunpack.c.l.b16 %v2870
    %v3210 = vunpack.c.h.b16 %v2870
    %v3211 = vunpack.c.l.b16 %v2871
    %v3212 = vunpack.c.l.b16 %v2872
    %v3213 = vunpack.c.h.b16 %v2872
    %v3214 = vunpack.c.l.b16 %v2873
    %v3215 = vunpack.c.l.b16 %v2874
    %v3216 = vunpack.c.h.b16 %v2874
    %v3217 = vunpack.c.l.b16 %v2875
    %v3218 = vunpack.c.l.b16 %v2876
    %v3219 = vunpack.c.h.b16 %v2876
    %v3220 = vunpack.c.l.b16 %v2877
    %v3221 = vunpack.c.l.b16 %v2878
    %v3222 = vunpack.c.h.b16 %v2878
    %v3223 = vunpack.c.l.b16 %v2879
    %v3224 = vunpack.c.l.b16 %v2880
    %v3225 = vunpack.c.h.b16 %v2880
    %v3226 = vunpack.c.l.b16 %v2881
    %v3227 = vunpack.c.l.b16 %v2882
    %v3228 = vunpack.c.h.b16 %v2882
    %v3229 = vunpack.c.l.b16 %v2883
    %v3230 = vunpack.c.l.b16 %v2884
    %v3231 = vunpack.c.h.b16 %v2884
    %v3232 = vunpack.c.l.b16 %v2885
    %v3233 = vunpack.c.l.b16 %v2886
    %v3234 = vunpack.c.h.b16 %v2886
    %v3235 = vunpack.c.l.b16 %v2887
    %v3236 = vunpack.c.l.b16 %v2888
    %v3237 = vunpack.c.h.b16 %v2888
    %v3238 = vunpack.c.l.b16 %v2889
    %v3239 = vunpack.c.l.b16 %v2890
    %v3240 = vunpack.c.h.b16 %v2890
    %v3241 = vunpack.c.l.b16 %v2891
    %v3242 = vunpack.c.l.b16 %v2892
    %v3243 = vunpack.c.h.b16 %v2892
    %v3244 = vunpack.c.l.b16 %v2893
    %v3245 = vunpack.c.l.b16 %v2894
    %v3246 = vunpack.c.h.b16 %v2894
    %v3247 = vunpack.c.l.b16 %v2895
    %v3248 = vunpack.c.l.b16 %v2896
    %v3249 = vunpack.c.h.b16 %v2896
    %v3250 = vunpack.c.l.b16 %v2897
    %v3251 = vunpack.c.l.b16 %v2898
    %v3252 = vunpack.c.h.b16 %v2898
    %v3253 = vunpack.c.l.b16 %v2899
    %v3254 = vunpack.c.l.b16 %v2900
    %v3255 = vunpack.c.h.b16 %v2900
    %v3256 = vunpack.c.l.b16 %v2901
    %v3257 = vunpack.c.l.b16 %v2902
    %v3258 = vunpack.c.h.b16 %v2902
    %v3259 = vunpack.c.l.b16 %v2903
    %v3260 = vunpack.c.l.b16 %v2904
    %v3261 = vunpack.c.h.b16 %v2904
    %v3262 = vunpack.c.l.b16 %v2905
    %v3263 = vunpack.c.l.b16 %v2906
    %v3264 = vunpack.c.h.b16 %v2906
    %v3265 = vunpack.c.l.b16 %v2907
    %v3266 = vunpack.c.l.b16 %v2908
    %v3267 = vunpack.c.h.b16 %v2908
    %v3268 = vunpack.c.l.b16 %v2909
    %v3269 = vunpack.c.l.b16 %v2910
    %v3270 = vunpack.c.h.b16 %v2910
    %v3271 = vunpack.c.l.b16 %v2911
    %v3272 = vunpack.c.l.b16 %v2912
    %v3273 = vunpack.c.h.b16 %v2912
    %v3274 = vunpack.c.l.b16 %v2913
    %v3275 = vunpack.c.l.b16 %v2914
    %v3276 = vunpack.c.h.b16 %v2914
    %v3277 = vunpack.c.l.b16 %v2915
    %v3278 = vunpack.c.l.b16 %v2916
    %v3279 = vunpack.c.h.b16 %v2916
    %v3280 = vunpack.c.l.b16 %v2917
    %v3281 = vunpack.c.l.b16 %v2918
    %v3282 = vunpack.c.h.b16 %v2918
    %v3283 = vunpack.c.l.b16 %v2919
    %v3284 = vunpack.c.l.b16 %v2920
    %v3285 = vunpack.c.h.b16 %v2920
    %v3286 = vunpack.c.l.b16 %v2921
    %v3287 = vunpack.c.l.b16 %v2922
    %v3288 = vunpack.c.h.b16 %v2922
    %v3289 = vunpack.c.l.b16 %v2923
    %v3290 = vunpack.c.l.b16 %v2924
    %v3291 = vunpack.c.h.b16 %v2924
    %v3292 = vunpack.c.l.b16 %v2925
    %v3293 = vunpack.c.l.b16 %v2926
    %v3294 = vunpack.c.h.b16 %v2926
    %v3295 = vunpack.c.l.b16 %v2927
    %v3296 = vunpack.c.l.b16 %v2928
    %v3297 = vunpack.c.h.b16 %v2928
    %v3298 = vunpack.c.l.b16 %v2929
    %v3299 = vunpack.c.l.b16 %v2930
    %v3300 = vunpack.c.h.b16 %v2930
    %v3301 = vunpack.c.l.b16 %v2931
    %v3302 = vunpack.c.l.b16 %v2932
    %v3303 = vunpack.c.h.b16 %v2932
    %v3304 = vunpack.c.l.b16 %v2933
    %v3305 = vunpack.c.l.b16 %v2934
    %v3306 = vunpack.c.h.b16 %v2934
    %v3307 = vunpack.c.l.b16 %v2935
    %v3308 = vunpack.c.l.b16 %v2936
    %v3309 = vunpack.c.h.b16 %v2936
    %v3310 = vunpack.c.l.b16 %v2937
    %v3311 = vunpack.c.l.b16 %v2938
    %v3312 = vunpack.c.h.b16 %v2938
    %v3313 = vunpack.c.l.b16 %v2939
    %v3314 = vunpack.c.l.b16 %v2940
    %v3315 = vunpack.c.h.b16 %v2940
    %v3316 = vunpack.c.l.b16 %v2941
    %v3317 = vunpack.c.l.b16 %v2942
    %v3318 = vunpack.c.h.b16 %v2942
    %v3319 = vunpack.c.l.b16 %v2943
    %v3320 = vunpack.c.l.b16 %v2944
    %v3321 = vunpack.c.h.b16 %v2944
    %v3322 = vunpack.c.l.b16 %v2945
    %v3323 = vunpack.c.l.b16 %v2946
    %v3324 = vunpack.c.h.b16 %v2946
    %v3325 = vunpack.c.l.b16 %v2947
    %v3326 = vunpack.c.l.b16 %v2948
    %v3327 = vunpack.c.h.b16 %v2948
    %v3328 = vunpack.c.l.b16 %v2949
    %v3329 = vunpack.c.l.b16 %v2950
    %v3330 = vunpack.c.h.b16 %v2950
    %v3331 = vunpack.c.l.b16 %v2951
    %v3332 = vunpack.c.l.b16 %v2952
    %v3333 = vunpack.c.h.b16 %v2952
    %v3334 = vunpack.c.l.b16 %v2953
    %v3335 = vunpack.c.l.b16 %v2954
    %v3336 = vunpack.c.h.b16 %v2954
    %v3337 = vunpack.c.l.b16 %v2955
    %v3338 = vunpack.c.l.b16 %v2956
    %v3339 = vunpack.c.h.b16 %v2956
    %v3340 = vunpack.c.l.b16 %v2957
    %v3341 = vunpack.c.l.b16 %v2958
    %v3342 = vunpack.c.h.b16 %v2958
    %v3343 = vunpack.c.l.b16 %v2959
    %v3344 = vunpack.c.l.b16 %v2960
    %v3345 = vunpack.c.h.b16 %v2960
    %v3346 = vunpack.c.l.b16 %v2961
    %v3347 = vunpack.c.l.b16 %v2962
    %v3348 = vunpack.c.h.b16 %v2962
    %v3349 = vunpack.c.l.b16 %v2963
    %v3350 = vunpack.c.l.b16 %v2964
    %v3351 = vunpack.c.h.b16 %v2964
    %v3352 = vunpack.c.l.b16 %v2965
    %v3353 = vunpack.c.l.b16 %v2966
    %v3354 = vunpack.c.h.b16 %v2966
    %v3355 = vunpack.c.l.b16 %v2967
    %v3356 = vunpack.c.l.b16 %v2968
    %v3357 = vunpack.c.h.b16 %v2968
    %v3358 = vunpack.c.l.b16 %v2969
    %v3359 = vunpack.c.l.b16 %v2970
    %v3360 = vunpack.c.h.b16 %v2970
    %v3361 = vunpack.c.l.b16 %v2971
    %v3362 = vunpack.c.l.b16 %v2972
    %v3363 = vunpack.c.h.b16 %v2972
    %v3364 = vunpack.c.l.b16 %v2973
    %v3365 = vunpack.c.l.b16 %v2974
    %v3366 = vunpack.c.h.b16 %v2974
    %v3367 = vunpack.c.l.b16 %v2975
    %v3368 = vunpack.c.l.b16 %v2976
    %v3369 = vunpack.c.h.b16 %v2976
    %v3370 = vunpack.c.l.b16 %v2977
    %v3371 = vunpack.c.l.b16 %v2978
    %v3372 = vunpack.c.h.b16 %v2978
    %v3373 = vunpack.c.l.b16 %v2979
    %v3374 = vunpack.c.l.b16 %v2980
    %v3375 = vunpack.c.h.b16 %v2980
    %v3376 = vunpack.c.l.b16 %v2981
    %v3377 = vunpack.c.l.b16 %v2982
    %v3378 = vunpack.c.h.b16 %v2982
    %v3379 = vunpack.c.l.b16 %v2983
    %v3380 = vunpack.c.l.b16 %v2984
    %v3381 = vunpack.c.h.b16 %v2984
    %v3382 = vunpack.c.l.b16 %v2985
    %v3383 = vunpack.c.l.b16 %v2986
    %v3384 = vunpack.c.h.b16 %v2986
    %v3385 = vunpack.c.l.b16 %v2987
    %v3386 = vunpack.c.l.b16 %v2988
    %v3387 = vunpack.c.h.b16 %v2988
    %v3388 = vunpack.c.l.b16 %v2989
    %v3389 = vunpack.c.l.b16 %v2990
    %v3390 = vunpack.c.h.b16 %v2990
    %v3391 = vunpack.c.l.b16 %v2991
    %v3392 = vunpack.c.l.b16 %v2992
    %v3393 = vunpack.c.h.b16 %v2992
    %v3394 = vunpack.c.l.b16 %v2993
    %v3395 = vunpack.c.l.b16 %v2994
    %v3396 = vunpack.c.h.b16 %v2994
    %v3397 = vunpack.c.l.b16 %v2995
    %v3398 = vunpack.c.l.b16 %v2996
    %v3399 = vunpack.c.h.b16 %v2996
    %v3400 = vunpack.c.l.b16 %v2997
    %v3401 = vunpack.c.l.b16 %v2998
    %v3402 = vunpack.c.h.b16 %v2998
    %v3403 = vunpack.c.l.b16 %v2999
    %v3404 = vunpack.c.l.b16 %v3000
    %v3405 = vunpack.c.h.b16 %v3000
    %v3406 = vunpack.c.l.b16 %v3001
    %v3407 = vunpack.c.l.b16 %v3002
    %v3408 = vunpack.c.h.b16 %v3002
    %v3409 = vunpack.c.l.b16 %v3003
    %v3410 = vunpack.c.l.b16 %v3004
    %v3411 = vunpack.c.h.b16 %v3004
    %v3412 = vunpack.c.l.b16 %v3005
    %v3413 = vunpack.c.l.b16 %v3006
    %v3414 = vunpack.c.h.b16 %v3006
    %v3415 = vunpack.c.l.b16 %v3007
    %v3416 = vpack.c.b16 %v3179, %v3176
    %v3417 = vpack.c.b16 %v3180, %v3177
    %v3418 = vpack.c.b16 %v3181, %v3178
    %v3419 = vpack.c.b16 %v3185, %v3182
    %v3420 = vpack.c.b16 %v3186, %v3183
    %v3421 = vpack.c.b16 %v3187, %v3184
    %v3422 = vpack.c.b16 %v3191, %v3188
    %v3423 = vpack.c.b16 %v3192, %v3189
    %v3424 = vpack.c.b16 %v3193, %v3190
    %v3425 = vpack.c.b16 %v3197, %v3194
    %v3426 = vpack.c.b16 %v3198, %v3195
    %v3427 = vpack.c.b16 %v3199, %v3196
    %v3428 = vpack.c.b16 %v3203, %v3200
    %v3429 = vpack.c.b16 %v3204, %v3201
    %v3430 = vpack.c.b16 %v3205, %v3202
    %v3431 = vpack.c.b16 %v3209, %v3206
    %v3432 = vpack.c.b16 %v3210, %v3207
    %v3433 = vpack.c.b16 %v3211, %v3208
    %v3434 = vpack.c.b16 %v3215, %v3212
    %v3435 = vpack.c.b16 %v3216, %v3213
    %v3436 = vpack.c.b16 %v3217, %v3214
    %v3437 = vpack.c.b16 %v3221, %v3218
    %v3438 = vpack.c.b16 %v3222, %v3219
    %v3439 = vpack.c.b16 %v3223, %v3220
    %v3440 = vpack.c.b16 %v3227, %v3224
    %v3441 = vpack.c.b16 %v3228, %v3225
    %v3442 = vpack.c.b16 %v3229, %v3226
    %v3443 = vpack.c.b16 %v3233, %v3230
    %v3444 = vpack.c.b16 %v3234, %v3231
    %v3445 = vpack.c.b16 %v3235, %v3232
    %v3446 = vpack.c.b16 %v3239, %v3236
    %v3447 = vpack.c.b16 %v3240, %v3237
    %v3448 = vpack.c.b16 %v3241, %v3238
    %v3449 = vpack.c.b16 %v3245, %v3242
    %v3450 = vpack.c.b16 %v3246, %v3243
    %v3451 = vpack.c.b16 %v3247, %v3244
    %v3452 = vpack.c.b16 %v3251, %v3248
    %v3453 = vpack.c.b16 %v3252, %v3249
    %v3454 = vpack.c.b16 %v3253, %v3250
    %v3455 = vpack.c.b16 %v3257, %v3254
    %v3456 = vpack.c.b16 %v3258, %v3255
    %v3457 = vpack.c.b16 %v3259, %v3256
    %v3458 = vpack.c.b16 %v3263, %v3260
    %v3459 = vpack.c.b16 %v3264, %v3261
    %v3460 = vpack.c.b16 %v3265, %v3262
    %v3461 = vpack.c.b16 %v3269, %v3266
    %v3462 = vpack.c.b16 %v3270, %v3267
    %v3463 = vpack.c.b16 %v3271, %v3268
    %v3464 = vpack.c.b16 %v3275, %v3272
    %v3465 = vpack.c.b16 %v3276, %v3273
    %v3466 = vpack.c.b16 %v3277, %v3274
    %v3467 = vpack.c.b16 %v3281, %v3278
    %v3468 = vpack.c.b16 %v3282, %v3279
    %v3469 = vpack.c.b16 %v3283, %v3280
    %v3470 = vpack.c.b16 %v3287, %v3284
    %v3471 = vpack.c.b16 %v3288, %v3285
    %v3472 = vpack.c.b16 %v3289, %v3286
    %v3473 = vpack.c.b16 %v3293, %v3290
    %v3474 = vpack.c.b16 %v3294, %v3291
    %v3475 = vpack.c.b16 %v3295, %v3292
    %v3476 = vpack.c.b16 %v3299, %v3296
    %v3477 = vpack.c.b16 %v3300, %v3297
    %v3478 = vpack.c.b16 %v3301, %v3298
    %v3479 = vpack.c.b16 %v3305, %v3302
    %v3480 = vpack.c.b16 %v3306, %v3303
    %v3481 = vpack.c.b16 %v3307, %v3304
    %v3482 = vpack.c.b16 %v3311, %v3308
    %v3483 = vpack.c.b16 %v3312, %v3309
    %v3484 = vpack.c.b16 %v3313, %v3310
    %v3485 = vpack.c.b16 %v3317, %v3314
    %v3486 = vpack.c.b16 %v3318, %v3315
    %v3487 = vpack.c.b16 %v3319, %v3316
    %v3488 = vpack.c.b16 %v3323, %v3320
    %v3489 = vpack.c.b16 %v3324, %v3321
    %v3490 = vpack.c.b16 %v3325, %v3322
    %v3491 = vpack.c.b16 %v3329, %v3326
    %v3492 = vpack.c.b16 %v3330, %v3327
    %v3493 = vpack.c.b16 %v3331, %v3328
    %v3494 = vpack.c.b16 %v3335, %v3332
    %v3495 = vpack.c.b16 %v3336, %v3333
    %v3496 = vpack.c.b16 %v3337, %v3334
    %v3497 = vpack.c.b16 %v3341, %v3338
    %v3498 = vpack.c.b16 %v3342, %v3339
    %v3499 = vpack.c.b16 %v3343, %v3340
    %v3500 = vpack.c.b16 %v3347, %v3344
    %v3501 = vpack.c.b16 %v3348, %v3345
    %v3502 = vpack.c.b16 %v3349, %v3346
    %v3503 = vpack.c.b16 %v3353, %v3350
    %v3504 = vpack.c.b16 %v3354, %v3351
    %v3505 = vpack.c.b16 %v3355, %v3352
    %v3506 = vpack.c.b16 %v3359, %v3356
    %v3507 = vpack.c.b16 %v3360, %v3357
    %v3508 = vpack.c.b16 %v3361, %v3358
    %v3509 = vpack.c.b16 %v3365, %v3362
    %v3510 = vpack.c.b16 %v3366, %v3363
    %v3511 = vpack.c.b16 %v3367, %v3364
    %v3512 = vpack.c.b16 %v3371, %v3368
    %v3513 = vpack.c.b16 %v3372, %v3369
    %v3514 = vpack.c.b16 %v3373, %v3370
    %v3515 = vpack.c.b16 %v3377, %v3374
    %v3516 = vpack.c.b16 %v3378, %v3375
    %v3517 = vpack.c.b16 %v3379, %v3376
    %v3518 = vpack.c.b16 %v3383, %v3380
    %v3519 = vpack.c.b16 %v3384, %v3381
    %v3520 = vpack.c.b16 %v3385, %v3382
    %v3521 = vpack.c.b16 %v3389, %v3386
    %v3522 = vpack.c.b16 %v3390, %v3387
    %v3523 = vpack.c.b16 %v3391, %v3388
    %v3524 = vpack.c.b16 %v3395, %v3392
    %v3525 = vpack.c.b16 %v3396, %v3393
    %v3526 = vpack.c.b16 %v3397, %v3394
    %v3527 = vpack.c.b16 %v3401, %v3398
    %v3528 = vpack.c.b16 %v3402, %v3399
    %v3529 = vpack.c.b16 %v3403, %v3400
    %v3530 = vpack.c.b16 %v3407, %v3404
    %v3531 = vpack.c.b16 %v3408, %v3405
    %v3532 = vpack.c.b16 %v3409, %v3406
    %v3533 = vpack.c.b16 %v3413, %v3410
    %v3534 = vpack.c.b16 %v3414, %v3411
    %v3535 = vpack.c.b16 %v3415, %v3412
    %3656 = vmatpush.bf16.msra.mxu0 %v3437
    %3657 = vmatpush.bf16.msra.mxu0 %v3434
    %3658 = vmatpush.bf16.msra.mxu0 %v3431
    %3659 = vmatpush.bf16.msra.mxu0 %v3428
    %3660 = vmatpush.bf16.msra.mxu0 %v3425
    %3661 = vmatpush.bf16.msra.mxu0 %v3422
    %3662 = vmatpush.bf16.msra.mxu0 %v3419
    %3663 = vmatpush.bf16.msra.mxu0 %v3416
    %3664 = vmatmul.bf16.gmra.mxu0 %v2843
    %v3665 = vpop.f32.mrf.mxu0
    %v3666 = vadd.f32 %v3010, %v3665
    %v3667 = vpop.f32.mrf.mxu0
    %3668 = vdwg.mxu0
    %3669 = vmatpush.bf16.msra.mxu0 %v3461
    %3670 = vmatpush.bf16.msra.mxu0 %v3458
    %3671 = vmatpush.bf16.msra.mxu0 %v3455
    %3672 = vmatpush.bf16.msra.mxu0 %v3452
    %3673 = vmatpush.bf16.msra.mxu0 %v3449
    %3674 = vmatpush.bf16.msra.mxu0 %v3446
    %3675 = vmatpush.bf16.msra.mxu0 %v3443
    %3676 = vmatpush.bf16.msra.mxu0 %v3440
    %3677 = vmatmul.bf16.gmra.mxu0 %v2844
    %v3678 = vpop.f32.mrf.mxu0
    %v3679 = vadd.f32 %v3666, %v3678
    %v3680 = vpop.f32.mrf.mxu0
    %3681 = vdwg.mxu0
    %3682 = vmatpush.bf16.msra.mxu0 %v3485
    %3683 = vmatpush.bf16.msra.mxu0 %v3482
    %3684 = vmatpush.bf16.msra.mxu0 %v3479
    %3685 = vmatpush.bf16.msra.mxu0 %v3476
    %3686 = vmatpush.bf16.msra.mxu0 %v3473
    %3687 = vmatpush.bf16.msra.mxu0 %v3470
    %3688 = vmatpush.bf16.msra.mxu0 %v3467
    %3689 = vmatpush.bf16.msra.mxu0 %v3464
    %3690 = vmatmul.bf16.gmra.mxu0 %v2845
    %v3691 = vpop.f32.mrf.mxu0
    %v3692 = vadd.f32 %v3679, %v3691
    %v3693 = vpop.f32.mrf.mxu0
    %3694 = vdwg.mxu0
    %3695 = vmatpush.bf16.msra.mxu0 %v3509
    %3696 = vmatpush.bf16.msra.mxu0 %v3506
    %3697 = vmatpush.bf16.msra.mxu0 %v3503
    %3698 = vmatpush.bf16.msra.mxu0 %v3500
    %3699 = vmatpush.bf16.msra.mxu0 %v3497
    %3700 = vmatpush.bf16.msra.mxu0 %v3494
    %3701 = vmatpush.bf16.msra.mxu0 %v3491
    %3702 = vmatpush.bf16.msra.mxu0 %v3488
    %3703 = vmatmul.bf16.gmra.mxu0 %v2846
    %v3704 = vpop.f32.mrf.mxu0
    %v3705 = vadd.f32 %v3692, %v3704
    %v3706 = vpop.f32.mrf.mxu0
    %3707 = vdwg.mxu0
    %3708 = vmatpush.bf16.msra.mxu0 %v3533
    %3709 = vmatpush.bf16.msra.mxu0 %v3530
    %3710 = vmatpush.bf16.msra.mxu0 %v3527
    %3711 = vmatpush.bf16.msra.mxu0 %v3524
    %3712 = vmatpush.bf16.msra.mxu0 %v3521
    %3713 = vmatpush.bf16.msra.mxu0 %v3518
    %3714 = vmatpush.bf16.msra.mxu0 %v3515
    %3715 = vmatpush.bf16.msra.mxu0 %v3512
    %3716 = vmatmul.bf16.gmra.mxu0 %v2847
    %v3717 = vpop.f32.mrf.mxu0
    %v3718 = vadd.f32 %v3705, %v3717
    %v3719 = vpop.f32.mrf.mxu0
    %3720 = vdwg.mxu0
    %3721 = vmatpush.bf16.msra.mxu0 %v3438
    %3722 = vmatpush.bf16.msra.mxu0 %v3435
    %3723 = vmatpush.bf16.msra.mxu0 %v3432
    %3724 = vmatpush.bf16.msra.mxu0 %v3429
    %3725 = vmatpush.bf16.msra.mxu0 %v3426
    %3726 = vmatpush.bf16.msra.mxu0 %v3423
    %3727 = vmatpush.bf16.msra.mxu0 %v3420
    %3728 = vmatpush.bf16.msra.mxu0 %v3417
    %3729 = vmatmul.bf16.gmra.mxu0 %v2843
    %v3730 = vpop.f32.mrf.mxu0
    %v3731 = vadd.f32 %v3011, %v3730
    %v3732 = vpop.f32.mrf.mxu0
    %3733 = vdwg.mxu0
    %3734 = vmatpush.bf16.msra.mxu0 %v3462
    %3735 = vmatpush.bf16.msra.mxu0 %v3459
    %3736 = vmatpush.bf16.msra.mxu0 %v3456
    %3737 = vmatpush.bf16.msra.mxu0 %v3453
    %3738 = vmatpush.bf16.msra.mxu0 %v3450
    %3739 = vmatpush.bf16.msra.mxu0 %v3447
    %3740 = vmatpush.bf16.msra.mxu0 %v3444
    %3741 = vmatpush.bf16.msra.mxu0 %v3441
    %3742 = vmatmul.bf16.gmra.mxu0 %v2844
    %v3743 = vpop.f32.mrf.mxu0
    %v3744 = vadd.f32 %v3731, %v3743
    %v3745 = vpop.f32.mrf.mxu0
    %3746 = vdwg.mxu0
    %3747 = vmatpush.bf16.msra.mxu0 %v3486
    %3748 = vmatpush.bf16.msra.mxu0 %v3483
    %3749 = vmatpush.bf16.msra.mxu0 %v3480
    %3750 = vmatpush.bf16.msra.mxu0 %v3477
    %3751 = vmatpush.bf16.msra.mxu0 %v3474
    %3752 = vmatpush.bf16.msra.mxu0 %v3471
    %3753 = vmatpush.bf16.msra.mxu0 %v3468
    %3754 = vmatpush.bf16.msra.mxu0 %v3465
    %3755 = vmatmul.bf16.gmra.mxu0 %v2845
    %v3756 = vpop.f32.mrf.mxu0
    %v3757 = vadd.f32 %v3744, %v3756
    %v3758 = vpop.f32.mrf.mxu0
    %3759 = vdwg.mxu0
    %3760 = vmatpush.bf16.msra.mxu0 %v3510
    %3761 = vmatpush.bf16.msra.mxu0 %v3507
    %3762 = vmatpush.bf16.msra.mxu0 %v3504
    %3763 = vmatpush.bf16.msra.mxu0 %v3501
    %3764 = vmatpush.bf16.msra.mxu0 %v3498
    %3765 = vmatpush.bf16.msra.mxu0 %v3495
    %3766 = vmatpush.bf16.msra.mxu0 %v3492
    %3767 = vmatpush.bf16.msra.mxu0 %v3489
    %3768 = vmatmul.bf16.gmra.mxu0 %v2846
    %v3769 = vpop.f32.mrf.mxu0
    %v3770 = vadd.f32 %v3757, %v3769
    %v3771 = vpop.f32.mrf.mxu0
    %3772 = vdwg.mxu0
    %3773 = vmatpush.bf16.msra.mxu0 %v3534
    %3774 = vmatpush.bf16.msra.mxu0 %v3531
    %3775 = vmatpush.bf16.msra.mxu0 %v3528
    %3776 = vmatpush.bf16.msra.mxu0 %v3525
    %3777 = vmatpush.bf16.msra.mxu0 %v3522
    %3778 = vmatpush.bf16.msra.mxu0 %v3519
    %3779 = vmatpush.bf16.msra.mxu0 %v3516
    %3780 = vmatpush.bf16.msra.mxu0 %v3513
    %3781 = vmatmul.bf16.gmra.mxu0 %v2847
    %v3782 = vpop.f32.mrf.mxu0
    %v3783 = vadd.f32 %v3770, %v3782
    %v3784 = vpop.f32.mrf.mxu0
    %3785 = vdwg.mxu0
    %3786 = vmatpush.bf16.msra.mxu0 %v3439
    %3787 = vmatpush.bf16.msra.mxu0 %v3436
    %3788 = vmatpush.bf16.msra.mxu0 %v3433
    %3789 = vmatpush.bf16.msra.mxu0 %v3430
    %3790 = vmatpush.bf16.msra.mxu0 %v3427
    %3791 = vmatpush.bf16.msra.mxu0 %v3424
    %3792 = vmatpush.bf16.msra.mxu0 %v3421
    %3793 = vmatpush.bf16.msra.mxu0 %v3418
    %3794 = vmatmul.bf16.gmra.mxu0 %v2843
    %v3795 = vpop.f32.mrf.mxu0
    %v3796 = vadd.f32 %v3012, %v3795
    %v3797 = vpop.f32.mrf.mxu0
    %3798 = vdwg.mxu0
    %3799 = vmatpush.bf16.msra.mxu0 %v3463
    %3800 = vmatpush.bf16.msra.mxu0 %v3460
    %3801 = vmatpush.bf16.msra.mxu0 %v3457
    %3802 = vmatpush.bf16.msra.mxu0 %v3454
    %3803 = vmatpush.bf16.msra.mxu0 %v3451
    %3804 = vmatpush.bf16.msra.mxu0 %v3448
    %3805 = vmatpush.bf16.msra.mxu0 %v3445
    %3806 = vmatpush.bf16.msra.mxu0 %v3442
    %3807 = vmatmul.bf16.gmra.mxu0 %v2844
    %v3808 = vpop.f32.mrf.mxu0
    %v3809 = vadd.f32 %v3796, %v3808
    %v3810 = vpop.f32.mrf.mxu0
    %3811 = vdwg.mxu0
    %3812 = vmatpush.bf16.msra.mxu0 %v3487
    %3813 = vmatpush.bf16.msra.mxu0 %v3484
    %3814 = vmatpush.bf16.msra.mxu0 %v3481
    %3815 = vmatpush.bf16.msra.mxu0 %v3478
    %3816 = vmatpush.bf16.msra.mxu0 %v3475
    %3817 = vmatpush.bf16.msra.mxu0 %v3472
    %3818 = vmatpush.bf16.msra.mxu0 %v3469
    %3819 = vmatpush.bf16.msra.mxu0 %v3466
    %3820 = vmatmul.bf16.gmra.mxu0 %v2845
    %v3821 = vpop.f32.mrf.mxu0
    %v3822 = vadd.f32 %v3809, %v3821
    %v3823 = vpop.f32.mrf.mxu0
    %3824 = vdwg.mxu0
    %3825 = vmatpush.bf16.msra.mxu0 %v3511
    %3826 = vmatpush.bf16.msra.mxu0 %v3508
    %3827 = vmatpush.bf16.msra.mxu0 %v3505
    %3828 = vmatpush.bf16.msra.mxu0 %v3502
    %3829 = vmatpush.bf16.msra.mxu0 %v3499
    %3830 = vmatpush.bf16.msra.mxu0 %v3496
    %3831 = vmatpush.bf16.msra.mxu0 %v3493
    %3832 = vmatpush.bf16.msra.mxu0 %v3490
    %3833 = vmatmul.bf16.gmra.mxu0 %v2846
    %v3834 = vpop.f32.mrf.mxu0
    %v3835 = vadd.f32 %v3822, %v3834
    %v3836 = vpop.f32.mrf.mxu0
    %3837 = vdwg.mxu0
    %3838 = vmatpush.bf16.msra.mxu0 %v3535
    %3839 = vmatpush.bf16.msra.mxu0 %v3532
    %3840 = vmatpush.bf16.msra.mxu0 %v3529
    %3841 = vmatpush.bf16.msra.mxu0 %v3526
    %3842 = vmatpush.bf16.msra.mxu0 %v3523
    %3843 = vmatpush.bf16.msra.mxu0 %v3520
    %3844 = vmatpush.bf16.msra.mxu0 %v3517
    %3845 = vmatpush.bf16.msra.mxu0 %v3514
    %3846 = vmatmul.bf16.gmra.mxu0 %v2847
    %v3847 = vpop.f32.mrf.mxu0
    %v3848 = vadd.f32 %v3835, %v3847
    %v3849 = vpop.f32.mrf.mxu0
    %3850 = vdwg.mxu0
    %v3851 = vmax.f32 %v3718, 0.0
    %v3852 = vmax.f32 %v3783, 0.0
    %v3853 = vmax.f32 %v3848, 0.0
    %v3854 = vld [vmem:[%s1] sm:$0x1]
    %v3855 = vld [vmem:[#allocation9] sm:$0xff]
    %v3856 = vld [vmem:[#allocation10] sm:$0x3]
    %v3858 = vperm.slane %v3856, 0
    %v3859 = vperm.slane %v3856, 1
    %v3863 = vunpack.c.l.b16 %v3855
    %v3864 = vunpack.c.h.b16 %v3855
    %v3865 = vpack.c.b16 %v3863, %v3863
    %v3866 = vpack.c.b16 %v3864, %v3864
    %vm3867 = vcmask 64512
    %v3869 = vsel %vm3867, %v3854, 0
    %vm3871 = vcmask 1043456
    %v3873 = vsel %vm3871, %v3865, 0
    %v3876 = vsel %vm3871, %v3866, 0
    %3878 = vmatpush.bf16.msra.mxu0 0
    %3879 = vmatpush.bf16.msra.mxu0 0
    %3880 = vmatpush.bf16.msra.mxu0 0
    %3881 = vmatpush.bf16.msra.mxu0 0
    %3882 = vmatpush.bf16.msra.mxu0 0
    %3883 = vmatpush.bf16.msra.mxu0 0
    %3884 = vmatpush.bf16.msra.mxu0 0
    %3885 = vmatpush.bf16.msra.mxu0 %v3873
    %3886 = vmatmul.bf16.gmra.mxu0 %v3869
    %v3887 = vpop.f32.mrf.mxu0
    %v3888 = vadd.f32 %v3858, %v3887
    %v3889 = vpop.f32.mrf.mxu0
    %3890 = vdwg.mxu0
    %3891 = vmatpush.bf16.msra.mxu0 0
    %3892 = vmatpush.bf16.msra.mxu0 0
    %3893 = vmatpush.bf16.msra.mxu0 0
    %3894 = vmatpush.bf16.msra.mxu0 0
    %3895 = vmatpush.bf16.msra.mxu0 0
    %3896 = vmatpush.bf16.msra.mxu0 0
    %3897 = vmatpush.bf16.msra.mxu0 0
    %3898 = vmatpush.bf16.msra.mxu0 %v3876
    %3899 = vmatmul.bf16.gmra.mxu0 %v3869
    %v3900 = vpop.f32.mrf.mxu0
    %v3901 = vadd.f32 %v3859, %v3900
    %v3902 = vpop.f32.mrf.mxu0
    %3903 = vdwg.mxu0
    %v3904 = vmax.f32 %v3888, 0.0
    %v3905 = vmax.f32 %v3901, 0.0
    %v3906 = vpack.c.bf16 %v3904, %v3904
    %v3907 = vpack.c.bf16 %v3905, %v3905
    %v3908 = vld [vmem:[#allocation12] sm:$0xff]
    %v3909 = vld [vmem:[#allocation12 + $0x8] sm:$0xff]
    %v3910 = vld [vmem:[#allocation12 + $0x10] sm:$0xff]
    %v3911 = vld [vmem:[#allocation12 + $0x18] sm:$0xff]
    %v3912 = vld [vmem:[#allocation12 + $0x20] sm:$0xff]
    %v3913 = vld [vmem:[#allocation12 + $0x28] sm:$0xff]
    %v3914 = vld [vmem:[#allocation12 + $0x30] sm:$0xff]
    %v3915 = vld [vmem:[#allocation12 + $0x38] sm:$0xff]
    %v3916 = vld [vmem:[#allocation12 + $0x40] sm:$0xff]
    %v3917 = vld [vmem:[#allocation12 + $0x48] sm:$0xff]
    %v3918 = vld [vmem:[#allocation12 + $0x50] sm:$0xff]
    %v3919 = vld [vmem:[#allocation12 + $0x58] sm:$0xff]
    %v3920 = vld [vmem:[#allocation12 + $0x60] sm:$0xff]
    %v3921 = vld [vmem:[#allocation12 + $0x68] sm:$0xff]
    %v3922 = vld [vmem:[#allocation12 + $0x70] sm:$0xff]
    %v3923 = vld [vmem:[#allocation12 + $0x78] sm:$0xff]
    %v3924 = vld [vmem:[#allocation12 + $0x80] sm:$0xff]
    %v3925 = vld [vmem:[#allocation12 + $0x88] sm:$0xff]
    %v3926 = vld [vmem:[#allocation12 + $0x90] sm:$0xff]
    %v3927 = vld [vmem:[#allocation12 + $0x98] sm:$0xff]
    %v3928 = vld [vmem:[#allocation12 + $0xa0] sm:$0xff]
    %v3929 = vld [vmem:[#allocation12 + $0xa8] sm:$0xff]
    %v3930 = vld [vmem:[#allocation12 + $0xb0] sm:$0xff]
    %v3931 = vld [vmem:[#allocation12 + $0xb8] sm:$0xff]
    %v3932 = vld [vmem:[#allocation12 + $0xc0] sm:$0xff]
    %v3933 = vld [vmem:[#allocation12 + $0xc8] sm:$0xff]
    %v3934 = vld [vmem:[#allocation12 + $0xd0] sm:$0xff]
    %v3935 = vld [vmem:[#allocation12 + $0xd8] sm:$0xff]
    %v3936 = vld [vmem:[#allocation12 + $0xe0] sm:$0xff]
    %v3937 = vld [vmem:[#allocation12 + $0xe8] sm:$0xff]
    %v3938 = vld [vmem:[#allocation12 + $0xf0] sm:$0xff]
    %v3939 = vld [vmem:[#allocation12 + $0xf8] sm:$0xff]
    %v3940 = vld [vmem:[#allocation13] sm:$0x3]
    %v3942 = vperm.slane %v3940, 0
    %v3943 = vperm.slane %v3940, 1
    %v3978 = vunpack.c.l.b16 %v3908
    %v3979 = vunpack.c.h.b16 %v3908
    %v3980 = vunpack.c.l.b16 %v3909
    %v3981 = vunpack.c.h.b16 %v3909
    %v3982 = vunpack.c.l.b16 %v3910
    %v3983 = vunpack.c.h.b16 %v3910
    %v3984 = vunpack.c.l.b16 %v3911
    %v3985 = vunpack.c.h.b16 %v3911
    %v3986 = vunpack.c.l.b16 %v3912
    %v3987 = vunpack.c.h.b16 %v3912
    %v3988 = vunpack.c.l.b16 %v3913
    %v3989 = vunpack.c.h.b16 %v3913
    %v3990 = vunpack.c.l.b16 %v3914
    %v3991 = vunpack.c.h.b16 %v3914
    %v3992 = vunpack.c.l.b16 %v3915
    %v3993 = vunpack.c.h.b16 %v3915
    %v3994 = vunpack.c.l.b16 %v3916
    %v3995 = vunpack.c.h.b16 %v3916
    %v3996 = vunpack.c.l.b16 %v3917
    %v3997 = vunpack.c.h.b16 %v3917
    %v3998 = vunpack.c.l.b16 %v3918
    %v3999 = vunpack.c.h.b16 %v3918
    %v4000 = vunpack.c.l.b16 %v3919
    %v4001 = vunpack.c.h.b16 %v3919
    %v4002 = vunpack.c.l.b16 %v3920
    %v4003 = vunpack.c.h.b16 %v3920
    %v4004 = vunpack.c.l.b16 %v3921
    %v4005 = vunpack.c.h.b16 %v3921
    %v4006 = vunpack.c.l.b16 %v3922
    %v4007 = vunpack.c.h.b16 %v3922
    %v4008 = vunpack.c.l.b16 %v3923
    %v4009 = vunpack.c.h.b16 %v3923
    %v4010 = vunpack.c.l.b16 %v3924
    %v4011 = vunpack.c.h.b16 %v3924
    %v4012 = vunpack.c.l.b16 %v3925
    %v4013 = vunpack.c.h.b16 %v3925
    %v4014 = vunpack.c.l.b16 %v3926
    %v4015 = vunpack.c.h.b16 %v3926
    %v4016 = vunpack.c.l.b16 %v3927
    %v4017 = vunpack.c.h.b16 %v3927
    %v4018 = vunpack.c.l.b16 %v3928
    %v4019 = vunpack.c.h.b16 %v3928
    %v4020 = vunpack.c.l.b16 %v3929
    %v4021 = vunpack.c.h.b16 %v3929
    %v4022 = vunpack.c.l.b16 %v3930
    %v4023 = vunpack.c.h.b16 %v3930
    %v4024 = vunpack.c.l.b16 %v3931
    %v4025 = vunpack.c.h.b16 %v3931
    %v4026 = vunpack.c.l.b16 %v3932
    %v4027 = vunpack.c.h.b16 %v3932
    %v4028 = vunpack.c.l.b16 %v3933
    %v4029 = vunpack.c.h.b16 %v3933
    %v4030 = vunpack.c.l.b16 %v3934
    %v4031 = vunpack.c.h.b16 %v3934
    %v4032 = vunpack.c.l.b16 %v3935
    %v4033 = vunpack.c.h.b16 %v3935
    %v4034 = vunpack.c.l.b16 %v3936
    %v4035 = vunpack.c.h.b16 %v3936
    %v4036 = vunpack.c.l.b16 %v3937
    %v4037 = vunpack.c.h.b16 %v3937
    %v4038 = vunpack.c.l.b16 %v3938
    %v4039 = vunpack.c.h.b16 %v3938
    %v4040 = vunpack.c.l.b16 %v3939
    %v4041 = vunpack.c.h.b16 %v3939
    %v4042 = vpack.c.b16 %v3980, %v3978
    %v4043 = vpack.c.b16 %v3981, %v3979
    %v4044 = vpack.c.b16 %v3984, %v3982
    %v4045 = vpack.c.b16 %v3985, %v3983
    %v4046 = vpack.c.b16 %v3988, %v3986
    %v4047 = vpack.c.b16 %v3989, %v3987
    %v4048 = vpack.c.b16 %v3992, %v3990
    %v4049 = vpack.c.b16 %v3993, %v3991
    %v4050 = vpack.c.b16 %v3996, %v3994
    %v4051 = vpack.c.b16 %v3997, %v3995
    %v4052 = vpack.c.b16 %v4000, %v3998
    %v4053 = vpack.c.b16 %v4001, %v3999
    %v4054 = vpack.c.b16 %v4004, %v4002
    %v4055 = vpack.c.b16 %v4005, %v4003
    %v4056 = vpack.c.b16 %v4008, %v4006
    %v4057 = vpack.c.b16 %v4009, %v4007
    %v4058 = vpack.c.b16 %v4012, %v4010
    %v4059 = vpack.c.b16 %v4013, %v4011
    %v4060 = vpack.c.b16 %v4016, %v4014
    %v4061 = vpack.c.b16 %v4017, %v4015
    %v4062 = vpack.c.b16 %v4020, %v4018
    %v4063 = vpack.c.b16 %v4021, %v4019
    %v4064 = vpack.c.b16 %v4024, %v4022
    %v4065 = vpack.c.b16 %v4025, %v4023
    %v4066 = vpack.c.b16 %v4028, %v4026
    %v4067 = vpack.c.b16 %v4029, %v4027
    %v4068 = vpack.c.b16 %v4032, %v4030
    %v4069 = vpack.c.b16 %v4033, %v4031
    %v4070 = vpack.c.b16 %v4036, %v4034
    %v4071 = vpack.c.b16 %v4037, %v4035
    %v4072 = vpack.c.b16 %v4040, %v4038
    %v4073 = vpack.c.b16 %v4041, %v4039
    %4106 = vmatpush.bf16.msra.mxu0 %v4056
    %4107 = vmatpush.bf16.msra.mxu0 %v4054
    %4108 = vmatpush.bf16.msra.mxu0 %v4052
    %4109 = vmatpush.bf16.msra.mxu0 %v4050
    %4110 = vmatpush.bf16.msra.mxu0 %v4048
    %4111 = vmatpush.bf16.msra.mxu0 %v4046
    %4112 = vmatpush.bf16.msra.mxu0 %v4044
    %4113 = vmatpush.bf16.msra.mxu0 %v4042
    %4114 = vmatmul.bf16.gmra.mxu0 %v3906
    %v4115 = vpop.f32.mrf.mxu0
    %v4116 = vadd.f32 %v3942, %v4115
    %v4117 = vpop.f32.mrf.mxu0
    %4118 = vdwg.mxu0
    %4119 = vmatpush.bf16.msra.mxu0 %v4072
    %4120 = vmatpush.bf16.msra.mxu0 %v4070
    %4121 = vmatpush.bf16.msra.mxu0 %v4068
    %4122 = vmatpush.bf16.msra.mxu0 %v4066
    %4123 = vmatpush.bf16.msra.mxu0 %v4064
    %4124 = vmatpush.bf16.msra.mxu0 %v4062
    %4125 = vmatpush.bf16.msra.mxu0 %v4060
    %4126 = vmatpush.bf16.msra.mxu0 %v4058
    %4127 = vmatmul.bf16.gmra.mxu0 %v3907
    %v4128 = vpop.f32.mrf.mxu0
    %v4129 = vadd.f32 %v4116, %v4128
    %v4130 = vpop.f32.mrf.mxu0
    %4131 = vdwg.mxu0
    %4132 = vmatpush.bf16.msra.mxu0 %v4057
    %4133 = vmatpush.bf16.msra.mxu0 %v4055
    %4134 = vmatpush.bf16.msra.mxu0 %v4053
    %4135 = vmatpush.bf16.msra.mxu0 %v4051
    %4136 = vmatpush.bf16.msra.mxu0 %v4049
    %4137 = vmatpush.bf16.msra.mxu0 %v4047
    %4138 = vmatpush.bf16.msra.mxu0 %v4045
    %4139 = vmatpush.bf16.msra.mxu0 %v4043
    %4140 = vmatmul.bf16.gmra.mxu0 %v3906
    %v4141 = vpop.f32.mrf.mxu0
    %v4142 = vadd.f32 %v3943, %v4141
    %v4143 = vpop.f32.mrf.mxu0
    %4144 = vdwg.mxu0
    %4145 = vmatpush.bf16.msra.mxu0 %v4073
    %4146 = vmatpush.bf16.msra.mxu0 %v4071
    %4147 = vmatpush.bf16.msra.mxu0 %v4069
    %4148 = vmatpush.bf16.msra.mxu0 %v4067
    %4149 = vmatpush.bf16.msra.mxu0 %v4065
    %4150 = vmatpush.bf16.msra.mxu0 %v4063
    %4151 = vmatpush.bf16.msra.mxu0 %v4061
    %4152 = vmatpush.bf16.msra.mxu0 %v4059
    %4153 = vmatmul.bf16.gmra.mxu0 %v3907
    %v4154 = vpop.f32.mrf.mxu0
    %v4155 = vadd.f32 %v4142, %v4154
    %v4156 = vpop.f32.mrf.mxu0
    %4157 = vdwg.mxu0
    %v4158 = vpack.c.bf16 %v4129, %v4129
    %v4159 = vpack.c.bf16 %v4155, %v4155
    %v4160 = vld [vmem:[#allocation15] sm:$0xff]
    %v4161 = vld [vmem:[#allocation15 + $0x8] sm:$0xff]
    %v4162 = vld [vmem:[#allocation15 + $0x10] sm:$0xff]
    %v4163 = vld [vmem:[#allocation15 + $0x18] sm:$0xff]
    %v4164 = vld [vmem:[#allocation15 + $0x20] sm:$0xff]
    %v4165 = vld [vmem:[#allocation15 + $0x28] sm:$0xff]
    %v4166 = vld [vmem:[#allocation15 + $0x30] sm:$0xff]
    %v4167 = vld [vmem:[#allocation15 + $0x38] sm:$0xff]
    %v4168 = vld [vmem:[#allocation15 + $0x40] sm:$0xff]
    %v4169 = vld [vmem:[#allocation15 + $0x48] sm:$0xff]
    %v4170 = vld [vmem:[#allocation15 + $0x50] sm:$0xff]
    %v4171 = vld [vmem:[#allocation15 + $0x58] sm:$0xff]
    %v4172 = vld [vmem:[#allocation15 + $0x60] sm:$0xff]
    %v4173 = vld [vmem:[#allocation15 + $0x68] sm:$0xff]
    %v4174 = vld [vmem:[#allocation15 + $0x70] sm:$0xff]
    %v4175 = vld [vmem:[#allocation15 + $0x78] sm:$0xff]
    %v4176 = vld [vmem:[#allocation15 + $0x80] sm:$0xff]
    %v4177 = vld [vmem:[#allocation15 + $0x88] sm:$0xff]
    %v4178 = vld [vmem:[#allocation15 + $0x90] sm:$0xff]
    %v4179 = vld [vmem:[#allocation15 + $0x98] sm:$0xff]
    %v4180 = vld [vmem:[#allocation15 + $0xa0] sm:$0xff]
    %v4181 = vld [vmem:[#allocation15 + $0xa8] sm:$0xff]
    %v4182 = vld [vmem:[#allocation15 + $0xb0] sm:$0xff]
    %v4183 = vld [vmem:[#allocation15 + $0xb8] sm:$0xff]
    %v4184 = vld [vmem:[#allocation15 + $0xc0] sm:$0xff]
    %v4185 = vld [vmem:[#allocation15 + $0xc8] sm:$0xff]
    %v4186 = vld [vmem:[#allocation15 + $0xd0] sm:$0xff]
    %v4187 = vld [vmem:[#allocation15 + $0xd8] sm:$0xff]
    %v4188 = vld [vmem:[#allocation15 + $0xe0] sm:$0xff]
    %v4189 = vld [vmem:[#allocation15 + $0xe8] sm:$0xff]
    %v4190 = vld [vmem:[#allocation15 + $0xf0] sm:$0xff]
    %v4191 = vld [vmem:[#allocation15 + $0xf8] sm:$0xff]
    %v4192 = vld [vmem:[#allocation15 + $0x100] sm:$0xff]
    %v4193 = vld [vmem:[#allocation15 + $0x108] sm:$0xff]
    %v4194 = vld [vmem:[#allocation15 + $0x110] sm:$0xff]
    %v4195 = vld [vmem:[#allocation15 + $0x118] sm:$0xff]
    %v4196 = vld [vmem:[#allocation15 + $0x120] sm:$0xff]
    %v4197 = vld [vmem:[#allocation15 + $0x128] sm:$0xff]
    %v4198 = vld [vmem:[#allocation15 + $0x130] sm:$0xff]
    %v4199 = vld [vmem:[#allocation15 + $0x138] sm:$0xff]
    %v4200 = vld [vmem:[#allocation15 + $0x140] sm:$0xff]
    %v4201 = vld [vmem:[#allocation15 + $0x148] sm:$0xff]
    %v4202 = vld [vmem:[#allocation15 + $0x150] sm:$0xff]
    %v4203 = vld [vmem:[#allocation15 + $0x158] sm:$0xff]
    %v4204 = vld [vmem:[#allocation15 + $0x160] sm:$0xff]
    %v4205 = vld [vmem:[#allocation15 + $0x168] sm:$0xff]
    %v4206 = vld [vmem:[#allocation15 + $0x170] sm:$0xff]
    %v4207 = vld [vmem:[#allocation15 + $0x178] sm:$0xff]
    %v4208 = vld [vmem:[#allocation15 + $0x180] sm:$0xff]
    %v4209 = vld [vmem:[#allocation15 + $0x188] sm:$0xff]
    %v4210 = vld [vmem:[#allocation15 + $0x190] sm:$0xff]
    %v4211 = vld [vmem:[#allocation15 + $0x198] sm:$0xff]
    %v4212 = vld [vmem:[#allocation15 + $0x1a0] sm:$0xff]
    %v4213 = vld [vmem:[#allocation15 + $0x1a8] sm:$0xff]
    %v4214 = vld [vmem:[#allocation15 + $0x1b0] sm:$0xff]
    %v4215 = vld [vmem:[#allocation15 + $0x1b8] sm:$0xff]
    %v4216 = vld [vmem:[#allocation15 + $0x1c0] sm:$0xff]
    %v4217 = vld [vmem:[#allocation15 + $0x1c8] sm:$0xff]
    %v4218 = vld [vmem:[#allocation15 + $0x1d0] sm:$0xff]
    %v4219 = vld [vmem:[#allocation15 + $0x1d8] sm:$0xff]
    %v4220 = vld [vmem:[#allocation15 + $0x1e0] sm:$0xff]
    %v4221 = vld [vmem:[#allocation15 + $0x1e8] sm:$0xff]
    %v4222 = vld [vmem:[#allocation15 + $0x1f0] sm:$0xff]
    %v4223 = vld [vmem:[#allocation15 + $0x1f8] sm:$0xff]
    %v4224 = vpack.c.bf16 %v3851, %v3851
    %v4225 = vpack.c.bf16 %v3852, %v3852
    %v4226 = vpack.c.bf16 %v3853, %v3853
    %v4227 = vld [vmem:[#allocation16] sm:$0xff]
    %v4228 = vld [vmem:[#allocation16 + $0x8] sm:$0xff]
    %v4229 = vld [vmem:[#allocation16 + $0x10] sm:$0xff]
    %v4230 = vld [vmem:[#allocation16 + $0x18] sm:$0xff]
    %v4231 = vld [vmem:[#allocation16 + $0x20] sm:$0xff]
    %v4232 = vld [vmem:[#allocation16 + $0x28] sm:$0xff]
    %v4233 = vld [vmem:[#allocation16 + $0x30] sm:$0xff]
    %v4234 = vld [vmem:[#allocation16 + $0x38] sm:$0xff]
    %v4235 = vld [vmem:[#allocation16 + $0x40] sm:$0xff]
    %v4236 = vld [vmem:[#allocation16 + $0x48] sm:$0xff]
    %v4237 = vld [vmem:[#allocation16 + $0x50] sm:$0xff]
    %v4238 = vld [vmem:[#allocation16 + $0x58] sm:$0xff]
    %v4239 = vld [vmem:[#allocation16 + $0x60] sm:$0xff]
    %v4240 = vld [vmem:[#allocation16 + $0x68] sm:$0xff]
    %v4241 = vld [vmem:[#allocation16 + $0x70] sm:$0xff]
    %v4242 = vld [vmem:[#allocation16 + $0x78] sm:$0xff]
    %v4243 = vld [vmem:[#allocation16 + $0x80] sm:$0xff]
    %v4244 = vld [vmem:[#allocation16 + $0x88] sm:$0xff]
    %v4245 = vld [vmem:[#allocation16 + $0x90] sm:$0xff]
    %v4246 = vld [vmem:[#allocation16 + $0x98] sm:$0xff]
    %v4247 = vld [vmem:[#allocation16 + $0xa0] sm:$0xff]
    %v4248 = vld [vmem:[#allocation16 + $0xa8] sm:$0xff]
    %v4249 = vld [vmem:[#allocation16 + $0xb0] sm:$0xff]
    %v4250 = vld [vmem:[#allocation16 + $0xb8] sm:$0xff]
    %v4251 = vld [vmem:[#allocation16 + $0xc0] sm:$0xff]
    %v4252 = vld [vmem:[#allocation16 + $0xc8] sm:$0xff]
    %v4253 = vld [vmem:[#allocation16 + $0xd0] sm:$0xff]
    %v4254 = vld [vmem:[#allocation16 + $0xd8] sm:$0xff]
    %v4255 = vld [vmem:[#allocation16 + $0xe0] sm:$0xff]
    %v4256 = vld [vmem:[#allocation16 + $0xe8] sm:$0xff]
    %v4257 = vld [vmem:[#allocation16 + $0xf0] sm:$0xff]
    %v4258 = vld [vmem:[#allocation16 + $0xf8] sm:$0xff]
    %v4259 = vld [vmem:[#allocation16 + $0x100] sm:$0xff]
    %v4260 = vld [vmem:[#allocation16 + $0x108] sm:$0xff]
    %v4261 = vld [vmem:[#allocation16 + $0x110] sm:$0xff]
    %v4262 = vld [vmem:[#allocation16 + $0x118] sm:$0xff]
    %v4263 = vld [vmem:[#allocation16 + $0x120] sm:$0xff]
    %v4264 = vld [vmem:[#allocation16 + $0x128] sm:$0xff]
    %v4265 = vld [vmem:[#allocation16 + $0x130] sm:$0xff]
    %v4266 = vld [vmem:[#allocation16 + $0x138] sm:$0xff]
    %v4267 = vld [vmem:[#allocation16 + $0x140] sm:$0xff]
    %v4268 = vld [vmem:[#allocation16 + $0x148] sm:$0xff]
    %v4269 = vld [vmem:[#allocation16 + $0x150] sm:$0xff]
    %v4270 = vld [vmem:[#allocation16 + $0x158] sm:$0xff]
    %v4271 = vld [vmem:[#allocation16 + $0x160] sm:$0xff]
    %v4272 = vld [vmem:[#allocation16 + $0x168] sm:$0xff]
    %v4273 = vld [vmem:[#allocation16 + $0x170] sm:$0xff]
    %v4274 = vld [vmem:[#allocation16 + $0x178] sm:$0xff]
    %v4275 = vld [vmem:[#allocation16 + $0x180] sm:$0xff]
    %v4276 = vld [vmem:[#allocation16 + $0x188] sm:$0xff]
    %v4277 = vld [vmem:[#allocation16 + $0x190] sm:$0xff]
    %v4278 = vld [vmem:[#allocation16 + $0x198] sm:$0xff]
    %v4279 = vld [vmem:[#allocation16 + $0x1a0] sm:$0xff]
    %v4280 = vld [vmem:[#allocation16 + $0x1a8] sm:$0xff]
    %v4281 = vld [vmem:[#allocation16 + $0x1b0] sm:$0xff]
    %v4282 = vld [vmem:[#allocation16 + $0x1b8] sm:$0xff]
    %v4283 = vld [vmem:[#allocation16 + $0x1c0] sm:$0xff]
    %v4284 = vld [vmem:[#allocation16 + $0x1c8] sm:$0xff]
    %v4285 = vld [vmem:[#allocation16 + $0x1d0] sm:$0xff]
    %v4286 = vld [vmem:[#allocation16 + $0x1d8] sm:$0xff]
    %v4287 = vld [vmem:[#allocation16 + $0x1e0] sm:$0xff]
    %v4288 = vld [vmem:[#allocation16 + $0x1e8] sm:$0xff]
    %v4289 = vld [vmem:[#allocation16 + $0x1f0] sm:$0xff]
    %v4290 = vld [vmem:[#allocation16 + $0x1f8] sm:$0xff]
    %v4291 = vld [vmem:[#allocation16 + $0x200] sm:$0xff]
    %v4292 = vld [vmem:[#allocation16 + $0x208] sm:$0xff]
    %v4293 = vld [vmem:[#allocation16 + $0x210] sm:$0xff]
    %v4294 = vld [vmem:[#allocation16 + $0x218] sm:$0xff]
    %v4295 = vld [vmem:[#allocation16 + $0x220] sm:$0xff]
    %v4296 = vld [vmem:[#allocation16 + $0x228] sm:$0xff]
    %v4297 = vld [vmem:[#allocation16 + $0x230] sm:$0xff]
    %v4298 = vld [vmem:[#allocation16 + $0x238] sm:$0xff]
    %v4299 = vld [vmem:[#allocation16 + $0x240] sm:$0xff]
    %v4300 = vld [vmem:[#allocation16 + $0x248] sm:$0xff]
    %v4301 = vld [vmem:[#allocation16 + $0x250] sm:$0xff]
    %v4302 = vld [vmem:[#allocation16 + $0x258] sm:$0xff]
    %v4303 = vld [vmem:[#allocation16 + $0x260] sm:$0xff]
    %v4304 = vld [vmem:[#allocation16 + $0x268] sm:$0xff]
    %v4305 = vld [vmem:[#allocation16 + $0x270] sm:$0xff]
    %v4306 = vld [vmem:[#allocation16 + $0x278] sm:$0xff]
    %v4307 = vld [vmem:[#allocation16 + $0x280] sm:$0xff]
    %v4308 = vld [vmem:[#allocation16 + $0x288] sm:$0xff]
    %v4309 = vld [vmem:[#allocation16 + $0x290] sm:$0xff]
    %v4310 = vld [vmem:[#allocation16 + $0x298] sm:$0xff]
    %v4311 = vld [vmem:[#allocation16 + $0x2a0] sm:$0xff]
    %v4312 = vld [vmem:[#allocation16 + $0x2a8] sm:$0xff]
    %v4313 = vld [vmem:[#allocation16 + $0x2b0] sm:$0xff]
    %v4314 = vld [vmem:[#allocation16 + $0x2b8] sm:$0xff]
    %v4315 = vld [vmem:[#allocation16 + $0x2c0] sm:$0xff]
    %v4316 = vld [vmem:[#allocation16 + $0x2c8] sm:$0xff]
    %v4317 = vld [vmem:[#allocation16 + $0x2d0] sm:$0xff]
    %v4318 = vld [vmem:[#allocation16 + $0x2d8] sm:$0xff]
    %v4319 = vld [vmem:[#allocation16 + $0x2e0] sm:$0xff]
    %v4320 = vld [vmem:[#allocation16 + $0x2e8] sm:$0xff]
    %v4321 = vld [vmem:[#allocation16 + $0x2f0] sm:$0xff]
    %v4322 = vld [vmem:[#allocation16 + $0x2f8] sm:$0xff]
    %v4419 = vunpack.c.l.b16 %v4227
    %v4420 = vunpack.c.h.b16 %v4227
    %v4421 = vunpack.c.l.b16 %v4228
    %v4422 = vunpack.c.h.b16 %v4228
    %v4423 = vunpack.c.l.b16 %v4229
    %v4424 = vunpack.c.h.b16 %v4229
    %v4425 = vunpack.c.l.b16 %v4230
    %v4426 = vunpack.c.h.b16 %v4230
    %v4427 = vunpack.c.l.b16 %v4231
    %v4428 = vunpack.c.h.b16 %v4231
    %v4429 = vunpack.c.l.b16 %v4232
    %v4430 = vunpack.c.h.b16 %v4232
    %v4431 = vunpack.c.l.b16 %v4233
    %v4432 = vunpack.c.h.b16 %v4233
    %v4433 = vunpack.c.l.b16 %v4234
    %v4434 = vunpack.c.h.b16 %v4234
    %v4435 = vunpack.c.l.b16 %v4235
    %v4436 = vunpack.c.h.b16 %v4235
    %v4437 = vunpack.c.l.b16 %v4236
    %v4438 = vunpack.c.h.b16 %v4236
    %v4439 = vunpack.c.l.b16 %v4237
    %v4440 = vunpack.c.h.b16 %v4237
    %v4441 = vunpack.c.l.b16 %v4238
    %v4442 = vunpack.c.h.b16 %v4238
    %v4443 = vunpack.c.l.b16 %v4239
    %v4444 = vunpack.c.h.b16 %v4239
    %v4445 = vunpack.c.l.b16 %v4240
    %v4446 = vunpack.c.h.b16 %v4240
    %v4447 = vunpack.c.l.b16 %v4241
    %v4448 = vunpack.c.h.b16 %v4241
    %v4449 = vunpack.c.l.b16 %v4242
    %v4450 = vunpack.c.h.b16 %v4242
    %v4451 = vunpack.c.l.b16 %v4243
    %v4452 = vunpack.c.h.b16 %v4243
    %v4453 = vunpack.c.l.b16 %v4244
    %v4454 = vunpack.c.h.b16 %v4244
    %v4455 = vunpack.c.l.b16 %v4245
    %v4456 = vunpack.c.h.b16 %v4245
    %v4457 = vunpack.c.l.b16 %v4246
    %v4458 = vunpack.c.h.b16 %v4246
    %v4459 = vunpack.c.l.b16 %v4247
    %v4460 = vunpack.c.h.b16 %v4247
    %v4461 = vunpack.c.l.b16 %v4248
    %v4462 = vunpack.c.h.b16 %v4248
    %v4463 = vunpack.c.l.b16 %v4249
    %v4464 = vunpack.c.h.b16 %v4249
    %v4465 = vunpack.c.l.b16 %v4250
    %v4466 = vunpack.c.h.b16 %v4250
    %v4467 = vunpack.c.l.b16 %v4251
    %v4468 = vunpack.c.h.b16 %v4251
    %v4469 = vunpack.c.l.b16 %v4252
    %v4470 = vunpack.c.h.b16 %v4252
    %v4471 = vunpack.c.l.b16 %v4253
    %v4472 = vunpack.c.h.b16 %v4253
    %v4473 = vunpack.c.l.b16 %v4254
    %v4474 = vunpack.c.h.b16 %v4254
    %v4475 = vunpack.c.l.b16 %v4255
    %v4476 = vunpack.c.h.b16 %v4255
    %v4477 = vunpack.c.l.b16 %v4256
    %v4478 = vunpack.c.h.b16 %v4256
    %v4479 = vunpack.c.l.b16 %v4257
    %v4480 = vunpack.c.h.b16 %v4257
    %v4481 = vunpack.c.l.b16 %v4258
    %v4482 = vunpack.c.h.b16 %v4258
    %v4483 = vunpack.c.l.b16 %v4259
    %v4484 = vunpack.c.h.b16 %v4259
    %v4485 = vunpack.c.l.b16 %v4260
    %v4486 = vunpack.c.h.b16 %v4260
    %v4487 = vunpack.c.l.b16 %v4261
    %v4488 = vunpack.c.h.b16 %v4261
    %v4489 = vunpack.c.l.b16 %v4262
    %v4490 = vunpack.c.h.b16 %v4262
    %v4491 = vunpack.c.l.b16 %v4263
    %v4492 = vunpack.c.h.b16 %v4263
    %v4493 = vunpack.c.l.b16 %v4264
    %v4494 = vunpack.c.h.b16 %v4264
    %v4495 = vunpack.c.l.b16 %v4265
    %v4496 = vunpack.c.h.b16 %v4265
    %v4497 = vunpack.c.l.b16 %v4266
    %v4498 = vunpack.c.h.b16 %v4266
    %v4499 = vunpack.c.l.b16 %v4267
    %v4500 = vunpack.c.h.b16 %v4267
    %v4501 = vunpack.c.l.b16 %v4268
    %v4502 = vunpack.c.h.b16 %v4268
    %v4503 = vunpack.c.l.b16 %v4269
    %v4504 = vunpack.c.h.b16 %v4269
    %v4505 = vunpack.c.l.b16 %v4270
    %v4506 = vunpack.c.h.b16 %v4270
    %v4507 = vunpack.c.l.b16 %v4271
    %v4508 = vunpack.c.h.b16 %v4271
    %v4509 = vunpack.c.l.b16 %v4272
    %v4510 = vunpack.c.h.b16 %v4272
    %v4511 = vunpack.c.l.b16 %v4273
    %v4512 = vunpack.c.h.b16 %v4273
    %v4513 = vunpack.c.l.b16 %v4274
    %v4514 = vunpack.c.h.b16 %v4274
    %v4515 = vunpack.c.l.b16 %v4275
    %v4516 = vunpack.c.h.b16 %v4275
    %v4517 = vunpack.c.l.b16 %v4276
    %v4518 = vunpack.c.h.b16 %v4276
    %v4519 = vunpack.c.l.b16 %v4277
    %v4520 = vunpack.c.h.b16 %v4277
    %v4521 = vunpack.c.l.b16 %v4278
    %v4522 = vunpack.c.h.b16 %v4278
    %v4523 = vunpack.c.l.b16 %v4279
    %v4524 = vunpack.c.h.b16 %v4279
    %v4525 = vunpack.c.l.b16 %v4280
    %v4526 = vunpack.c.h.b16 %v4280
    %v4527 = vunpack.c.l.b16 %v4281
    %v4528 = vunpack.c.h.b16 %v4281
    %v4529 = vunpack.c.l.b16 %v4282
    %v4530 = vunpack.c.h.b16 %v4282
    %v4531 = vunpack.c.l.b16 %v4283
    %v4532 = vunpack.c.h.b16 %v4283
    %v4533 = vunpack.c.l.b16 %v4284
    %v4534 = vunpack.c.h.b16 %v4284
    %v4535 = vunpack.c.l.b16 %v4285
    %v4536 = vunpack.c.h.b16 %v4285
    %v4537 = vunpack.c.l.b16 %v4286
    %v4538 = vunpack.c.h.b16 %v4286
    %v4539 = vunpack.c.l.b16 %v4287
    %v4540 = vunpack.c.h.b16 %v4287
    %v4541 = vunpack.c.l.b16 %v4288
    %v4542 = vunpack.c.h.b16 %v4288
    %v4543 = vunpack.c.l.b16 %v4289
    %v4544 = vunpack.c.h.b16 %v4289
    %v4545 = vunpack.c.l.b16 %v4290
    %v4546 = vunpack.c.h.b16 %v4290
    %v4547 = vunpack.c.l.b16 %v4291
    %v4548 = vunpack.c.h.b16 %v4291
    %v4549 = vunpack.c.l.b16 %v4292
    %v4550 = vunpack.c.h.b16 %v4292
    %v4551 = vunpack.c.l.b16 %v4293
    %v4552 = vunpack.c.h.b16 %v4293
    %v4553 = vunpack.c.l.b16 %v4294
    %v4554 = vunpack.c.h.b16 %v4294
    %v4555 = vunpack.c.l.b16 %v4295
    %v4556 = vunpack.c.h.b16 %v4295
    %v4557 = vunpack.c.l.b16 %v4296
    %v4558 = vunpack.c.h.b16 %v4296
    %v4559 = vunpack.c.l.b16 %v4297
    %v4560 = vunpack.c.h.b16 %v4297
    %v4561 = vunpack.c.l.b16 %v4298
    %v4562 = vunpack.c.h.b16 %v4298
    %v4563 = vunpack.c.l.b16 %v4299
    %v4564 = vunpack.c.h.b16 %v4299
    %v4565 = vunpack.c.l.b16 %v4300
    %v4566 = vunpack.c.h.b16 %v4300
    %v4567 = vunpack.c.l.b16 %v4301
    %v4568 = vunpack.c.h.b16 %v4301
    %v4569 = vunpack.c.l.b16 %v4302
    %v4570 = vunpack.c.h.b16 %v4302
    %v4571 = vunpack.c.l.b16 %v4303
    %v4572 = vunpack.c.h.b16 %v4303
    %v4573 = vunpack.c.l.b16 %v4304
    %v4574 = vunpack.c.h.b16 %v4304
    %v4575 = vunpack.c.l.b16 %v4305
    %v4576 = vunpack.c.h.b16 %v4305
    %v4577 = vunpack.c.l.b16 %v4306
    %v4578 = vunpack.c.h.b16 %v4306
    %v4579 = vunpack.c.l.b16 %v4307
    %v4580 = vunpack.c.h.b16 %v4307
    %v4581 = vunpack.c.l.b16 %v4308
    %v4582 = vunpack.c.h.b16 %v4308
    %v4583 = vunpack.c.l.b16 %v4309
    %v4584 = vunpack.c.h.b16 %v4309
    %v4585 = vunpack.c.l.b16 %v4310
    %v4586 = vunpack.c.h.b16 %v4310
    %v4587 = vunpack.c.l.b16 %v4311
    %v4588 = vunpack.c.h.b16 %v4311
    %v4589 = vunpack.c.l.b16 %v4312
    %v4590 = vunpack.c.h.b16 %v4312
    %v4591 = vunpack.c.l.b16 %v4313
    %v4592 = vunpack.c.h.b16 %v4313
    %v4593 = vunpack.c.l.b16 %v4314
    %v4594 = vunpack.c.h.b16 %v4314
    %v4595 = vunpack.c.l.b16 %v4315
    %v4596 = vunpack.c.h.b16 %v4315
    %v4597 = vunpack.c.l.b16 %v4316
    %v4598 = vunpack.c.h.b16 %v4316
    %v4599 = vunpack.c.l.b16 %v4317
    %v4600 = vunpack.c.h.b16 %v4317
    %v4601 = vunpack.c.l.b16 %v4318
    %v4602 = vunpack.c.h.b16 %v4318
    %v4603 = vunpack.c.l.b16 %v4319
    %v4604 = vunpack.c.h.b16 %v4319
    %v4605 = vunpack.c.l.b16 %v4320
    %v4606 = vunpack.c.h.b16 %v4320
    %v4607 = vunpack.c.l.b16 %v4321
    %v4608 = vunpack.c.h.b16 %v4321
    %v4609 = vunpack.c.l.b16 %v4322
    %v4610 = vunpack.c.h.b16 %v4322
    %v4611 = vpack.c.b16 %v4423, %v4419
    %v4612 = vpack.c.b16 %v4424, %v4420
    %v4613 = vpack.c.b16 %v4425, %v4421
    %v4614 = vpack.c.b16 %v4426, %v4422
    %v4615 = vpack.c.b16 %v4431, %v4427
    %v4616 = vpack.c.b16 %v4432, %v4428
    %v4617 = vpack.c.b16 %v4433, %v4429
    %v4618 = vpack.c.b16 %v4434, %v4430
    %v4619 = vpack.c.b16 %v4439, %v4435
    %v4620 = vpack.c.b16 %v4440, %v4436
    %v4621 = vpack.c.b16 %v4441, %v4437
    %v4622 = vpack.c.b16 %v4442, %v4438
    %v4623 = vpack.c.b16 %v4447, %v4443
    %v4624 = vpack.c.b16 %v4448, %v4444
    %v4625 = vpack.c.b16 %v4449, %v4445
    %v4626 = vpack.c.b16 %v4450, %v4446
    %v4627 = vpack.c.b16 %v4455, %v4451
    %v4628 = vpack.c.b16 %v4456, %v4452
    %v4629 = vpack.c.b16 %v4457, %v4453
    %v4630 = vpack.c.b16 %v4458, %v4454
    %v4631 = vpack.c.b16 %v4463, %v4459
    %v4632 = vpack.c.b16 %v4464, %v4460
    %v4633 = vpack.c.b16 %v4465, %v4461
    %v4634 = vpack.c.b16 %v4466, %v4462
    %v4635 = vpack.c.b16 %v4471, %v4467
    %v4636 = vpack.c.b16 %v4472, %v4468
    %v4637 = vpack.c.b16 %v4473, %v4469
    %v4638 = vpack.c.b16 %v4474, %v4470
    %v4639 = vpack.c.b16 %v4479, %v4475
    %v4640 = vpack.c.b16 %v4480, %v4476
    %v4641 = vpack.c.b16 %v4481, %v4477
    %v4642 = vpack.c.b16 %v4482, %v4478
    %v4643 = vpack.c.b16 %v4487, %v4483
    %v4644 = vpack.c.b16 %v4488, %v4484
    %v4645 = vpack.c.b16 %v4489, %v4485
    %v4646 = vpack.c.b16 %v4490, %v4486
    %v4647 = vpack.c.b16 %v4495, %v4491
    %v4648 = vpack.c.b16 %v4496, %v4492
    %v4649 = vpack.c.b16 %v4497, %v4493
    %v4650 = vpack.c.b16 %v4498, %v4494
    %v4651 = vpack.c.b16 %v4503, %v4499
    %v4652 = vpack.c.b16 %v4504, %v4500
    %v4653 = vpack.c.b16 %v4505, %v4501
    %v4654 = vpack.c.b16 %v4506, %v4502
    %v4655 = vpack.c.b16 %v4511, %v4507
    %v4656 = vpack.c.b16 %v4512, %v4508
    %v4657 = vpack.c.b16 %v4513, %v4509
    %v4658 = vpack.c.b16 %v4514, %v4510
    %v4659 = vpack.c.b16 %v4519, %v4515
    %v4660 = vpack.c.b16 %v4520, %v4516
    %v4661 = vpack.c.b16 %v4521, %v4517
    %v4662 = vpack.c.b16 %v4522, %v4518
    %v4663 = vpack.c.b16 %v4527, %v4523
    %v4664 = vpack.c.b16 %v4528, %v4524
    %v4665 = vpack.c.b16 %v4529, %v4525
    %v4666 = vpack.c.b16 %v4530, %v4526
    %v4667 = vpack.c.b16 %v4535, %v4531
    %v4668 = vpack.c.b16 %v4536, %v4532
    %v4669 = vpack.c.b16 %v4537, %v4533
    %v4670 = vpack.c.b16 %v4538, %v4534
    %v4671 = vpack.c.b16 %v4543, %v4539
    %v4672 = vpack.c.b16 %v4544, %v4540
    %v4673 = vpack.c.b16 %v4545, %v4541
    %v4674 = vpack.c.b16 %v4546, %v4542
    %v4675 = vpack.c.b16 %v4551, %v4547
    %v4676 = vpack.c.b16 %v4552, %v4548
    %v4677 = vpack.c.b16 %v4553, %v4549
    %v4678 = vpack.c.b16 %v4554, %v4550
    %v4679 = vpack.c.b16 %v4559, %v4555
    %v4680 = vpack.c.b16 %v4560, %v4556
    %v4681 = vpack.c.b16 %v4561, %v4557
    %v4682 = vpack.c.b16 %v4562, %v4558
    %v4683 = vpack.c.b16 %v4567, %v4563
    %v4684 = vpack.c.b16 %v4568, %v4564
    %v4685 = vpack.c.b16 %v4569, %v4565
    %v4686 = vpack.c.b16 %v4570, %v4566
    %v4687 = vpack.c.b16 %v4575, %v4571
    %v4688 = vpack.c.b16 %v4576, %v4572
    %v4689 = vpack.c.b16 %v4577, %v4573
    %v4690 = vpack.c.b16 %v4578, %v4574
    %v4691 = vpack.c.b16 %v4583, %v4579
    %v4692 = vpack.c.b16 %v4584, %v4580
    %v4693 = vpack.c.b16 %v4585, %v4581
    %v4694 = vpack.c.b16 %v4586, %v4582
    %v4695 = vpack.c.b16 %v4591, %v4587
    %v4696 = vpack.c.b16 %v4592, %v4588
    %v4697 = vpack.c.b16 %v4593, %v4589
    %v4698 = vpack.c.b16 %v4594, %v4590
    %v4699 = vpack.c.b16 %v4599, %v4595
    %v4700 = vpack.c.b16 %v4600, %v4596
    %v4701 = vpack.c.b16 %v4601, %v4597
    %v4702 = vpack.c.b16 %v4602, %v4598
    %v4703 = vpack.c.b16 %v4607, %v4603
    %v4704 = vpack.c.b16 %v4608, %v4604
    %v4705 = vpack.c.b16 %v4609, %v4605
    %v4706 = vpack.c.b16 %v4610, %v4606
    %4803 = vmatpush.bf16.msra.mxu0 %v4639
    %4804 = vmatpush.bf16.msra.mxu0 %v4635
    %4805 = vmatpush.bf16.msra.mxu0 %v4631
    %4806 = vmatpush.bf16.msra.mxu0 %v4627
    %4807 = vmatpush.bf16.msra.mxu0 %v4623
    %4808 = vmatpush.bf16.msra.mxu0 %v4619
    %4809 = vmatpush.bf16.msra.mxu0 %v4615
    %4810 = vmatpush.bf16.msra.mxu0 %v4611
    %4811 = vmatmul.bf16.gmra.mxu0 %v4224
    %v4812 = vpop.f32.mrf.mxu0
    %v4813 = vadd.f32 0.0, %v4812
    %v4814 = vpop.f32.mrf.mxu0
    %4815 = vdwg.mxu0
    %4816 = vmatpush.bf16.msra.mxu0 %v4671
    %4817 = vmatpush.bf16.msra.mxu0 %v4667
    %4818 = vmatpush.bf16.msra.mxu0 %v4663
    %4819 = vmatpush.bf16.msra.mxu0 %v4659
    %4820 = vmatpush.bf16.msra.mxu0 %v4655
    %4821 = vmatpush.bf16.msra.mxu0 %v4651
    %4822 = vmatpush.bf16.msra.mxu0 %v4647
    %4823 = vmatpush.bf16.msra.mxu0 %v4643
    %4824 = vmatmul.bf16.gmra.mxu0 %v4225
    %v4825 = vpop.f32.mrf.mxu0
    %v4826 = vadd.f32 %v4813, %v4825
    %v4827 = vpop.f32.mrf.mxu0
    %4828 = vdwg.mxu0
    %4829 = vmatpush.bf16.msra.mxu0 %v4703
    %4830 = vmatpush.bf16.msra.mxu0 %v4699
    %4831 = vmatpush.bf16.msra.mxu0 %v4695
    %4832 = vmatpush.bf16.msra.mxu0 %v4691
    %4833 = vmatpush.bf16.msra.mxu0 %v4687
    %4834 = vmatpush.bf16.msra.mxu0 %v4683
    %4835 = vmatpush.bf16.msra.mxu0 %v4679
    %4836 = vmatpush.bf16.msra.mxu0 %v4675
    %4837 = vmatmul.bf16.gmra.mxu0 %v4226
    %v4838 = vpop.f32.mrf.mxu0
    %v4839 = vadd.f32 %v4826, %v4838
    %v4840 = vpop.f32.mrf.mxu0
    %4841 = vdwg.mxu0
    %4842 = vmatpush.bf16.msra.mxu0 %v4640
    %4843 = vmatpush.bf16.msra.mxu0 %v4636
    %4844 = vmatpush.bf16.msra.mxu0 %v4632
    %4845 = vmatpush.bf16.msra.mxu0 %v4628
    %4846 = vmatpush.bf16.msra.mxu0 %v4624
    %4847 = vmatpush.bf16.msra.mxu0 %v4620
    %4848 = vmatpush.bf16.msra.mxu0 %v4616
    %4849 = vmatpush.bf16.msra.mxu0 %v4612
    %4850 = vmatmul.bf16.gmra.mxu0 %v4224
    %v4851 = vpop.f32.mrf.mxu0
    %v4852 = vadd.f32 0.0, %v4851
    %v4853 = vpop.f32.mrf.mxu0
    %4854 = vdwg.mxu0
    %4855 = vmatpush.bf16.msra.mxu0 %v4672
    %4856 = vmatpush.bf16.msra.mxu0 %v4668
    %4857 = vmatpush.bf16.msra.mxu0 %v4664
    %4858 = vmatpush.bf16.msra.mxu0 %v4660
    %4859 = vmatpush.bf16.msra.mxu0 %v4656
    %4860 = vmatpush.bf16.msra.mxu0 %v4652
    %4861 = vmatpush.bf16.msra.mxu0 %v4648
    %4862 = vmatpush.bf16.msra.mxu0 %v4644
    %4863 = vmatmul.bf16.gmra.mxu0 %v4225
    %v4864 = vpop.f32.mrf.mxu0
    %v4865 = vadd.f32 %v4852, %v4864
    %v4866 = vpop.f32.mrf.mxu0
    %4867 = vdwg.mxu0
    %4868 = vmatpush.bf16.msra.mxu0 %v4704
    %4869 = vmatpush.bf16.msra.mxu0 %v4700
    %4870 = vmatpush.bf16.msra.mxu0 %v4696
    %4871 = vmatpush.bf16.msra.mxu0 %v4692
    %4872 = vmatpush.bf16.msra.mxu0 %v4688
    %4873 = vmatpush.bf16.msra.mxu0 %v4684
    %4874 = vmatpush.bf16.msra.mxu0 %v4680
    %4875 = vmatpush.bf16.msra.mxu0 %v4676
    %4876 = vmatmul.bf16.gmra.mxu0 %v4226
    %v4877 = vpop.f32.mrf.mxu0
    %v4878 = vadd.f32 %v4865, %v4877
    %v4879 = vpop.f32.mrf.mxu0
    %4880 = vdwg.mxu0
    %4881 = vmatpush.bf16.msra.mxu0 %v4641
    %4882 = vmatpush.bf16.msra.mxu0 %v4637
    %4883 = vmatpush.bf16.msra.mxu0 %v4633
    %4884 = vmatpush.bf16.msra.mxu0 %v4629
    %4885 = vmatpush.bf16.msra.mxu0 %v4625
    %4886 = vmatpush.bf16.msra.mxu0 %v4621
    %4887 = vmatpush.bf16.msra.mxu0 %v4617
    %4888 = vmatpush.bf16.msra.mxu0 %v4613
    %4889 = vmatmul.bf16.gmra.mxu0 %v4224
    %v4890 = vpop.f32.mrf.mxu0
    %v4891 = vadd.f32 0.0, %v4890
    %v4892 = vpop.f32.mrf.mxu0
    %4893 = vdwg.mxu0
    %4894 = vmatpush.bf16.msra.mxu0 %v4673
    %4895 = vmatpush.bf16.msra.mxu0 %v4669
    %4896 = vmatpush.bf16.msra.mxu0 %v4665
    %4897 = vmatpush.bf16.msra.mxu0 %v4661
    %4898 = vmatpush.bf16.msra.mxu0 %v4657
    %4899 = vmatpush.bf16.msra.mxu0 %v4653
    %4900 = vmatpush.bf16.msra.mxu0 %v4649
    %4901 = vmatpush.bf16.msra.mxu0 %v4645
    %4902 = vmatmul.bf16.gmra.mxu0 %v4225
    %v4903 = vpop.f32.mrf.mxu0
    %v4904 = vadd.f32 %v4891, %v4903
    %v4905 = vpop.f32.mrf.mxu0
    %4906 = vdwg.mxu0
    %4907 = vmatpush.bf16.msra.mxu0 %v4705
    %4908 = vmatpush.bf16.msra.mxu0 %v4701
    %4909 = vmatpush.bf16.msra.mxu0 %v4697
    %4910 = vmatpush.bf16.msra.mxu0 %v4693
    %4911 = vmatpush.bf16.msra.mxu0 %v4689
    %4912 = vmatpush.bf16.msra.mxu0 %v4685
    %4913 = vmatpush.bf16.msra.mxu0 %v4681
    %4914 = vmatpush.bf16.msra.mxu0 %v4677
    %4915 = vmatmul.bf16.gmra.mxu0 %v4226
    %v4916 = vpop.f32.mrf.mxu0
    %v4917 = vadd.f32 %v4904, %v4916
    %v4918 = vpop.f32.mrf.mxu0
    %4919 = vdwg.mxu0
    %4920 = vmatpush.bf16.msra.mxu0 %v4642
    %4921 = vmatpush.bf16.msra.mxu0 %v4638
    %4922 = vmatpush.bf16.msra.mxu0 %v4634
    %4923 = vmatpush.bf16.msra.mxu0 %v4630
    %4924 = vmatpush.bf16.msra.mxu0 %v4626
    %4925 = vmatpush.bf16.msra.mxu0 %v4622
    %4926 = vmatpush.bf16.msra.mxu0 %v4618
    %4927 = vmatpush.bf16.msra.mxu0 %v4614
    %4928 = vmatmul.bf16.gmra.mxu0 %v4224
    %v4929 = vpop.f32.mrf.mxu0
    %v4930 = vadd.f32 0.0, %v4929
    %v4931 = vpop.f32.mrf.mxu0
    %4932 = vdwg.mxu0
    %4933 = vmatpush.bf16.msra.mxu0 %v4674
    %4934 = vmatpush.bf16.msra.mxu0 %v4670
    %4935 = vmatpush.bf16.msra.mxu0 %v4666
    %4936 = vmatpush.bf16.msra.mxu0 %v4662
    %4937 = vmatpush.bf16.msra.mxu0 %v4658
    %4938 = vmatpush.bf16.msra.mxu0 %v4654
    %4939 = vmatpush.bf16.msra.mxu0 %v4650
    %4940 = vmatpush.bf16.msra.mxu0 %v4646
    %4941 = vmatmul.bf16.gmra.mxu0 %v4225
    %v4942 = vpop.f32.mrf.mxu0
    %v4943 = vadd.f32 %v4930, %v4942
    %v4944 = vpop.f32.mrf.mxu0
    %4945 = vdwg.mxu0
    %4946 = vmatpush.bf16.msra.mxu0 %v4706
    %4947 = vmatpush.bf16.msra.mxu0 %v4702
    %4948 = vmatpush.bf16.msra.mxu0 %v4698
    %4949 = vmatpush.bf16.msra.mxu0 %v4694
    %4950 = vmatpush.bf16.msra.mxu0 %v4690
    %4951 = vmatpush.bf16.msra.mxu0 %v4686
    %4952 = vmatpush.bf16.msra.mxu0 %v4682
    %4953 = vmatpush.bf16.msra.mxu0 %v4678
    %4954 = vmatmul.bf16.gmra.mxu0 %v4226
    %v4955 = vpop.f32.mrf.mxu0
    %v4956 = vadd.f32 %v4943, %v4955
    %v4957 = vpop.f32.mrf.mxu0
    %4958 = vdwg.mxu0
    %v5023 = vunpack.c.l.b16 %v4160
    %v5024 = vunpack.c.h.b16 %v4160
    %v5025 = vunpack.c.l.b16 %v4161
    %v5026 = vunpack.c.h.b16 %v4161
    %v5027 = vunpack.c.l.b16 %v4162
    %v5028 = vunpack.c.h.b16 %v4162
    %v5029 = vunpack.c.l.b16 %v4163
    %v5030 = vunpack.c.h.b16 %v4163
    %v5031 = vunpack.c.l.b16 %v4164
    %v5032 = vunpack.c.h.b16 %v4164
    %v5033 = vunpack.c.l.b16 %v4165
    %v5034 = vunpack.c.h.b16 %v4165
    %v5035 = vunpack.c.l.b16 %v4166
    %v5036 = vunpack.c.h.b16 %v4166
    %v5037 = vunpack.c.l.b16 %v4167
    %v5038 = vunpack.c.h.b16 %v4167
    %v5039 = vunpack.c.l.b16 %v4168
    %v5040 = vunpack.c.h.b16 %v4168
    %v5041 = vunpack.c.l.b16 %v4169
    %v5042 = vunpack.c.h.b16 %v4169
    %v5043 = vunpack.c.l.b16 %v4170
    %v5044 = vunpack.c.h.b16 %v4170
    %v5045 = vunpack.c.l.b16 %v4171
    %v5046 = vunpack.c.h.b16 %v4171
    %v5047 = vunpack.c.l.b16 %v4172
    %v5048 = vunpack.c.h.b16 %v4172
    %v5049 = vunpack.c.l.b16 %v4173
    %v5050 = vunpack.c.h.b16 %v4173
    %v5051 = vunpack.c.l.b16 %v4174
    %v5052 = vunpack.c.h.b16 %v4174
    %v5053 = vunpack.c.l.b16 %v4175
    %v5054 = vunpack.c.h.b16 %v4175
    %v5055 = vunpack.c.l.b16 %v4176
    %v5056 = vunpack.c.h.b16 %v4176
    %v5057 = vunpack.c.l.b16 %v4177
    %v5058 = vunpack.c.h.b16 %v4177
    %v5059 = vunpack.c.l.b16 %v4178
    %v5060 = vunpack.c.h.b16 %v4178
    %v5061 = vunpack.c.l.b16 %v4179
    %v5062 = vunpack.c.h.b16 %v4179
    %v5063 = vunpack.c.l.b16 %v4180
    %v5064 = vunpack.c.h.b16 %v4180
    %v5065 = vunpack.c.l.b16 %v4181
    %v5066 = vunpack.c.h.b16 %v4181
    %v5067 = vunpack.c.l.b16 %v4182
    %v5068 = vunpack.c.h.b16 %v4182
    %v5069 = vunpack.c.l.b16 %v4183
    %v5070 = vunpack.c.h.b16 %v4183
    %v5071 = vunpack.c.l.b16 %v4184
    %v5072 = vunpack.c.h.b16 %v4184
    %v5073 = vunpack.c.l.b16 %v4185
    %v5074 = vunpack.c.h.b16 %v4185
    %v5075 = vunpack.c.l.b16 %v4186
    %v5076 = vunpack.c.h.b16 %v4186
    %v5077 = vunpack.c.l.b16 %v4187
    %v5078 = vunpack.c.h.b16 %v4187
    %v5079 = vunpack.c.l.b16 %v4188
    %v5080 = vunpack.c.h.b16 %v4188
    %v5081 = vunpack.c.l.b16 %v4189
    %v5082 = vunpack.c.h.b16 %v4189
    %v5083 = vunpack.c.l.b16 %v4190
    %v5084 = vunpack.c.h.b16 %v4190
    %v5085 = vunpack.c.l.b16 %v4191
    %v5086 = vunpack.c.h.b16 %v4191
    %v5087 = vunpack.c.l.b16 %v4192
    %v5088 = vunpack.c.h.b16 %v4192
    %v5089 = vunpack.c.l.b16 %v4193
    %v5090 = vunpack.c.h.b16 %v4193
    %v5091 = vunpack.c.l.b16 %v4194
    %v5092 = vunpack.c.h.b16 %v4194
    %v5093 = vunpack.c.l.b16 %v4195
    %v5094 = vunpack.c.h.b16 %v4195
    %v5095 = vunpack.c.l.b16 %v4196
    %v5096 = vunpack.c.h.b16 %v4196
    %v5097 = vunpack.c.l.b16 %v4197
    %v5098 = vunpack.c.h.b16 %v4197
    %v5099 = vunpack.c.l.b16 %v4198
    %v5100 = vunpack.c.h.b16 %v4198
    %v5101 = vunpack.c.l.b16 %v4199
    %v5102 = vunpack.c.h.b16 %v4199
    %v5103 = vunpack.c.l.b16 %v4200
    %v5104 = vunpack.c.h.b16 %v4200
    %v5105 = vunpack.c.l.b16 %v4201
    %v5106 = vunpack.c.h.b16 %v4201
    %v5107 = vunpack.c.l.b16 %v4202
    %v5108 = vunpack.c.h.b16 %v4202
    %v5109 = vunpack.c.l.b16 %v4203
    %v5110 = vunpack.c.h.b16 %v4203
    %v5111 = vunpack.c.l.b16 %v4204
    %v5112 = vunpack.c.h.b16 %v4204
    %v5113 = vunpack.c.l.b16 %v4205
    %v5114 = vunpack.c.h.b16 %v4205
    %v5115 = vunpack.c.l.b16 %v4206
    %v5116 = vunpack.c.h.b16 %v4206
    %v5117 = vunpack.c.l.b16 %v4207
    %v5118 = vunpack.c.h.b16 %v4207
    %v5119 = vunpack.c.l.b16 %v4208
    %v5120 = vunpack.c.h.b16 %v4208
    %v5121 = vunpack.c.l.b16 %v4209
    %v5122 = vunpack.c.h.b16 %v4209
    %v5123 = vunpack.c.l.b16 %v4210
    %v5124 = vunpack.c.h.b16 %v4210
    %v5125 = vunpack.c.l.b16 %v4211
    %v5126 = vunpack.c.h.b16 %v4211
    %v5127 = vunpack.c.l.b16 %v4212
    %v5128 = vunpack.c.h.b16 %v4212
    %v5129 = vunpack.c.l.b16 %v4213
    %v5130 = vunpack.c.h.b16 %v4213
    %v5131 = vunpack.c.l.b16 %v4214
    %v5132 = vunpack.c.h.b16 %v4214
    %v5133 = vunpack.c.l.b16 %v4215
    %v5134 = vunpack.c.h.b16 %v4215
    %v5135 = vunpack.c.l.b16 %v4216
    %v5136 = vunpack.c.h.b16 %v4216
    %v5137 = vunpack.c.l.b16 %v4217
    %v5138 = vunpack.c.h.b16 %v4217
    %v5139 = vunpack.c.l.b16 %v4218
    %v5140 = vunpack.c.h.b16 %v4218
    %v5141 = vunpack.c.l.b16 %v4219
    %v5142 = vunpack.c.h.b16 %v4219
    %v5143 = vunpack.c.l.b16 %v4220
    %v5144 = vunpack.c.h.b16 %v4220
    %v5145 = vunpack.c.l.b16 %v4221
    %v5146 = vunpack.c.h.b16 %v4221
    %v5147 = vunpack.c.l.b16 %v4222
    %v5148 = vunpack.c.h.b16 %v4222
    %v5149 = vunpack.c.l.b16 %v4223
    %v5150 = vunpack.c.h.b16 %v4223
    %v5151 = vpack.c.b16 %v5027, %v5023
    %v5152 = vpack.c.b16 %v5028, %v5024
    %v5153 = vpack.c.b16 %v5029, %v5025
    %v5154 = vpack.c.b16 %v5030, %v5026
    %v5155 = vpack.c.b16 %v5035, %v5031
    %v5156 = vpack.c.b16 %v5036, %v5032
    %v5157 = vpack.c.b16 %v5037, %v5033
    %v5158 = vpack.c.b16 %v5038, %v5034
    %v5159 = vpack.c.b16 %v5043, %v5039
    %v5160 = vpack.c.b16 %v5044, %v5040
    %v5161 = vpack.c.b16 %v5045, %v5041
    %v5162 = vpack.c.b16 %v5046, %v5042
    %v5163 = vpack.c.b16 %v5051, %v5047
    %v5164 = vpack.c.b16 %v5052, %v5048
    %v5165 = vpack.c.b16 %v5053, %v5049
    %v5166 = vpack.c.b16 %v5054, %v5050
    %v5167 = vpack.c.b16 %v5059, %v5055
    %v5168 = vpack.c.b16 %v5060, %v5056
    %v5169 = vpack.c.b16 %v5061, %v5057
    %v5170 = vpack.c.b16 %v5062, %v5058
    %v5171 = vpack.c.b16 %v5067, %v5063
    %v5172 = vpack.c.b16 %v5068, %v5064
    %v5173 = vpack.c.b16 %v5069, %v5065
    %v5174 = vpack.c.b16 %v5070, %v5066
    %v5175 = vpack.c.b16 %v5075, %v5071
    %v5176 = vpack.c.b16 %v5076, %v5072
    %v5177 = vpack.c.b16 %v5077, %v5073
    %v5178 = vpack.c.b16 %v5078, %v5074
    %v5179 = vpack.c.b16 %v5083, %v5079
    %v5180 = vpack.c.b16 %v5084, %v5080
    %v5181 = vpack.c.b16 %v5085, %v5081
    %v5182 = vpack.c.b16 %v5086, %v5082
    %v5183 = vpack.c.b16 %v5091, %v5087
    %v5184 = vpack.c.b16 %v5092, %v5088
    %v5185 = vpack.c.b16 %v5093, %v5089
    %v5186 = vpack.c.b16 %v5094, %v5090
    %v5187 = vpack.c.b16 %v5099, %v5095
    %v5188 = vpack.c.b16 %v5100, %v5096
    %v5189 = vpack.c.b16 %v5101, %v5097
    %v5190 = vpack.c.b16 %v5102, %v5098
    %v5191 = vpack.c.b16 %v5107, %v5103
    %v5192 = vpack.c.b16 %v5108, %v5104
    %v5193 = vpack.c.b16 %v5109, %v5105
    %v5194 = vpack.c.b16 %v5110, %v5106
    %v5195 = vpack.c.b16 %v5115, %v5111
    %v5196 = vpack.c.b16 %v5116, %v5112
    %v5197 = vpack.c.b16 %v5117, %v5113
    %v5198 = vpack.c.b16 %v5118, %v5114
    %v5199 = vpack.c.b16 %v5123, %v5119
    %v5200 = vpack.c.b16 %v5124, %v5120
    %v5201 = vpack.c.b16 %v5125, %v5121
    %v5202 = vpack.c.b16 %v5126, %v5122
    %v5203 = vpack.c.b16 %v5131, %v5127
    %v5204 = vpack.c.b16 %v5132, %v5128
    %v5205 = vpack.c.b16 %v5133, %v5129
    %v5206 = vpack.c.b16 %v5134, %v5130
    %v5207 = vpack.c.b16 %v5139, %v5135
    %v5208 = vpack.c.b16 %v5140, %v5136
    %v5209 = vpack.c.b16 %v5141, %v5137
    %v5210 = vpack.c.b16 %v5142, %v5138
    %v5211 = vpack.c.b16 %v5147, %v5143
    %v5212 = vpack.c.b16 %v5148, %v5144
    %v5213 = vpack.c.b16 %v5149, %v5145
    %v5214 = vpack.c.b16 %v5150, %v5146
    %5279 = vmatpush.bf16.msra.mxu0 %v5179
    %5280 = vmatpush.bf16.msra.mxu0 %v5175
    %5281 = vmatpush.bf16.msra.mxu0 %v5171
    %5282 = vmatpush.bf16.msra.mxu0 %v5167
    %5283 = vmatpush.bf16.msra.mxu0 %v5163
    %5284 = vmatpush.bf16.msra.mxu0 %v5159
    %5285 = vmatpush.bf16.msra.mxu0 %v5155
    %5286 = vmatpush.bf16.msra.mxu0 %v5151
    %5287 = vmatmul.bf16.gmra.mxu0 %v4158
    %v5288 = vpop.f32.mrf.mxu0
    %v5289 = vadd.f32 %v4839, %v5288
    %v5290 = vpop.f32.mrf.mxu0
    %5291 = vdwg.mxu0
    %5292 = vmatpush.bf16.msra.mxu0 %v5211
    %5293 = vmatpush.bf16.msra.mxu0 %v5207
    %5294 = vmatpush.bf16.msra.mxu0 %v5203
    %5295 = vmatpush.bf16.msra.mxu0 %v5199
    %5296 = vmatpush.bf16.msra.mxu0 %v5195
    %5297 = vmatpush.bf16.msra.mxu0 %v5191
    %5298 = vmatpush.bf16.msra.mxu0 %v5187
    %5299 = vmatpush.bf16.msra.mxu0 %v5183
    %5300 = vmatmul.bf16.gmra.mxu0 %v4159
    %v5301 = vpop.f32.mrf.mxu0
    %v5302 = vadd.f32 %v5289, %v5301
    %v5303 = vpop.f32.mrf.mxu0
    %5304 = vdwg.mxu0
    %5305 = vmatpush.bf16.msra.mxu0 %v5180
    %5306 = vmatpush.bf16.msra.mxu0 %v5176
    %5307 = vmatpush.bf16.msra.mxu0 %v5172
    %5308 = vmatpush.bf16.msra.mxu0 %v5168
    %5309 = vmatpush.bf16.msra.mxu0 %v5164
    %5310 = vmatpush.bf16.msra.mxu0 %v5160
    %5311 = vmatpush.bf16.msra.mxu0 %v5156
    %5312 = vmatpush.bf16.msra.mxu0 %v5152
    %5313 = vmatmul.bf16.gmra.mxu0 %v4158
    %v5314 = vpop.f32.mrf.mxu0
    %v5315 = vadd.f32 %v4878, %v5314
    %v5316 = vpop.f32.mrf.mxu0
    %5317 = vdwg.mxu0
    %5318 = vmatpush.bf16.msra.mxu0 %v5212
    %5319 = vmatpush.bf16.msra.mxu0 %v5208
    %5320 = vmatpush.bf16.msra.mxu0 %v5204
    %5321 = vmatpush.bf16.msra.mxu0 %v5200
    %5322 = vmatpush.bf16.msra.mxu0 %v5196
    %5323 = vmatpush.bf16.msra.mxu0 %v5192
    %5324 = vmatpush.bf16.msra.mxu0 %v5188
    %5325 = vmatpush.bf16.msra.mxu0 %v5184
    %5326 = vmatmul.bf16.gmra.mxu0 %v4159
    %v5327 = vpop.f32.mrf.mxu0
    %v5328 = vadd.f32 %v5315, %v5327
    %v5329 = vpop.f32.mrf.mxu0
    %5330 = vdwg.mxu0
    %5331 = vmatpush.bf16.msra.mxu0 %v5181
    %5332 = vmatpush.bf16.msra.mxu0 %v5177
    %5333 = vmatpush.bf16.msra.mxu0 %v5173
    %5334 = vmatpush.bf16.msra.mxu0 %v5169
    %5335 = vmatpush.bf16.msra.mxu0 %v5165
    %5336 = vmatpush.bf16.msra.mxu0 %v5161
    %5337 = vmatpush.bf16.msra.mxu0 %v5157
    %5338 = vmatpush.bf16.msra.mxu0 %v5153
    %5339 = vmatmul.bf16.gmra.mxu0 %v4158
    %v5340 = vpop.f32.mrf.mxu0
    %v5341 = vadd.f32 %v4917, %v5340
    %v5342 = vpop.f32.mrf.mxu0
    %5343 = vdwg.mxu0
    %5344 = vmatpush.bf16.msra.mxu0 %v5213
    %5345 = vmatpush.bf16.msra.mxu0 %v5209
    %5346 = vmatpush.bf16.msra.mxu0 %v5205
    %5347 = vmatpush.bf16.msra.mxu0 %v5201
    %5348 = vmatpush.bf16.msra.mxu0 %v5197
    %5349 = vmatpush.bf16.msra.mxu0 %v5193
    %5350 = vmatpush.bf16.msra.mxu0 %v5189
    %5351 = vmatpush.bf16.msra.mxu0 %v5185
    %5352 = vmatmul.bf16.gmra.mxu0 %v4159
    %v5353 = vpop.f32.mrf.mxu0
    %v5354 = vadd.f32 %v5341, %v5353
    %v5355 = vpop.f32.mrf.mxu0
    %5356 = vdwg.mxu0
    %5357 = vmatpush.bf16.msra.mxu0 %v5182
    %5358 = vmatpush.bf16.msra.mxu0 %v5178
    %5359 = vmatpush.bf16.msra.mxu0 %v5174
    %5360 = vmatpush.bf16.msra.mxu0 %v5170
    %5361 = vmatpush.bf16.msra.mxu0 %v5166
    %5362 = vmatpush.bf16.msra.mxu0 %v5162
    %5363 = vmatpush.bf16.msra.mxu0 %v5158
    %5364 = vmatpush.bf16.msra.mxu0 %v5154
    %5365 = vmatmul.bf16.gmra.mxu0 %v4158
    %v5366 = vpop.f32.mrf.mxu0
    %v5367 = vadd.f32 %v4956, %v5366
    %v5368 = vpop.f32.mrf.mxu0
    %5369 = vdwg.mxu0
    %5370 = vmatpush.bf16.msra.mxu0 %v5214
    %5371 = vmatpush.bf16.msra.mxu0 %v5210
    %5372 = vmatpush.bf16.msra.mxu0 %v5206
    %5373 = vmatpush.bf16.msra.mxu0 %v5202
    %5374 = vmatpush.bf16.msra.mxu0 %v5198
    %5375 = vmatpush.bf16.msra.mxu0 %v5194
    %5376 = vmatpush.bf16.msra.mxu0 %v5190
    %5377 = vmatpush.bf16.msra.mxu0 %v5186
    %5378 = vmatmul.bf16.gmra.mxu0 %v4159
    %v5379 = vpop.f32.mrf.mxu0
    %v5380 = vadd.f32 %v5367, %v5379
    %v5381 = vpop.f32.mrf.mxu0
    %5382 = vdwg.mxu0
    %v5383 = vld [vmem:[#allocation18] sm:$0xf]
    %v5385 = vperm.slane %v5383, 0
    %v5386 = vperm.slane %v5383, 1
    %v5387 = vperm.slane %v5383, 2
    %v5388 = vperm.slane %v5383, 3
    %v5393 = vadd.f32 %v5302, %v5385
    %v5394 = vadd.f32 %v5328, %v5386
    %v5395 = vadd.f32 %v5354, %v5387
    %v5396 = vadd.f32 %v5380, %v5388
    %v5397 = vmax.f32 %v5393, 0.0
    %v5398 = vmax.f32 %v5394, 0.0
    %v5399 = vmax.f32 %v5395, 0.0
    %v5400 = vmax.f32 %v5396, 0.0
    %v5401 = vpack.c.bf16 %v5397, %v5397
    %v5402 = vpack.c.bf16 %v5398, %v5398
    %v5403 = vpack.c.bf16 %v5399, %v5399
    %v5404 = vpack.c.bf16 %v5400, %v5400
    %v5405 = vld [vmem:[#allocation19] sm:$0xf]
    %v5406 = vld [vmem:[#allocation19 + $0x4] sm:$0xf]
    %v5407 = vld [vmem:[#allocation19 + $0x8] sm:$0xf]
    %v5408 = vld [vmem:[#allocation19 + $0xc] sm:$0xf]
    %v5409 = vld [vmem:[#allocation19 + $0x10] sm:$0xf]
    %v5410 = vld [vmem:[#allocation19 + $0x14] sm:$0xf]
    %v5411 = vld [vmem:[#allocation19 + $0x18] sm:$0xf]
    %v5412 = vld [vmem:[#allocation19 + $0x1c] sm:$0xf]
    %v5413 = vld [vmem:[#allocation19 + $0x20] sm:$0xf]
    %v5414 = vld [vmem:[#allocation19 + $0x24] sm:$0xf]
    %v5415 = vld [vmem:[#allocation19 + $0x28] sm:$0xf]
    %v5416 = vld [vmem:[#allocation19 + $0x2c] sm:$0xf]
    %v5417 = vld [vmem:[#allocation19 + $0x30] sm:$0xf]
    %v5418 = vld [vmem:[#allocation19 + $0x34] sm:$0xf]
    %v5419 = vld [vmem:[#allocation19 + $0x38] sm:$0xf]
    %v5420 = vld [vmem:[#allocation19 + $0x3c] sm:$0xf]
    %v5421 = vld [vmem:[#allocation19 + $0x40] sm:$0xf]
    %v5422 = vld [vmem:[#allocation19 + $0x44] sm:$0xf]
    %v5423 = vld [vmem:[#allocation19 + $0x48] sm:$0xf]
    %v5424 = vld [vmem:[#allocation19 + $0x4c] sm:$0xf]
    %v5425 = vld [vmem:[#allocation19 + $0x50] sm:$0xf]
    %v5426 = vld [vmem:[#allocation19 + $0x54] sm:$0xf]
    %v5427 = vld [vmem:[#allocation19 + $0x58] sm:$0xf]
    %v5428 = vld [vmem:[#allocation19 + $0x5c] sm:$0xf]
    %v5429 = vld [vmem:[#allocation19 + $0x60] sm:$0xf]
    %v5430 = vld [vmem:[#allocation19 + $0x64] sm:$0xf]
    %v5431 = vld [vmem:[#allocation19 + $0x68] sm:$0xf]
    %v5432 = vld [vmem:[#allocation19 + $0x6c] sm:$0xf]
    %v5433 = vld [vmem:[#allocation19 + $0x70] sm:$0xf]
    %v5434 = vld [vmem:[#allocation19 + $0x74] sm:$0xf]
    %v5435 = vld [vmem:[#allocation19 + $0x78] sm:$0xf]
    %v5436 = vld [vmem:[#allocation19 + $0x7c] sm:$0xf]
    %v5437 = vld [vmem:[#allocation19 + $0x80] sm:$0xf]
    %v5438 = vld [vmem:[#allocation19 + $0x84] sm:$0xf]
    %v5439 = vld [vmem:[#allocation19 + $0x88] sm:$0xf]
    %v5440 = vld [vmem:[#allocation19 + $0x8c] sm:$0xf]
    %v5441 = vld [vmem:[#allocation19 + $0x90] sm:$0xf]
    %v5442 = vld [vmem:[#allocation19 + $0x94] sm:$0xf]
    %v5443 = vld [vmem:[#allocation19 + $0x98] sm:$0xf]
    %v5444 = vld [vmem:[#allocation19 + $0x9c] sm:$0xf]
    %v5445 = vld [vmem:[#allocation19 + $0xa0] sm:$0xf]
    %v5446 = vld [vmem:[#allocation19 + $0xa4] sm:$0xf]
    %v5447 = vld [vmem:[#allocation19 + $0xa8] sm:$0xf]
    %v5448 = vld [vmem:[#allocation19 + $0xac] sm:$0xf]
    %v5449 = vld [vmem:[#allocation19 + $0xb0] sm:$0xf]
    %v5450 = vld [vmem:[#allocation19 + $0xb4] sm:$0xf]
    %v5451 = vld [vmem:[#allocation19 + $0xb8] sm:$0xf]
    %v5452 = vld [vmem:[#allocation19 + $0xbc] sm:$0xf]
    %v5453 = vld [vmem:[#allocation19 + $0xc0] sm:$0xf]
    %v5454 = vld [vmem:[#allocation19 + $0xc4] sm:$0xf]
    %v5455 = vld [vmem:[#allocation19 + $0xc8] sm:$0xf]
    %v5456 = vld [vmem:[#allocation19 + $0xcc] sm:$0xf]
    %v5457 = vld [vmem:[#allocation19 + $0xd0] sm:$0xf]
    %v5458 = vld [vmem:[#allocation19 + $0xd4] sm:$0xf]
    %v5459 = vld [vmem:[#allocation19 + $0xd8] sm:$0xf]
    %v5460 = vld [vmem:[#allocation19 + $0xdc] sm:$0xf]
    %v5461 = vld [vmem:[#allocation19 + $0xe0] sm:$0xf]
    %v5462 = vld [vmem:[#allocation19 + $0xe4] sm:$0xf]
    %v5463 = vld [vmem:[#allocation19 + $0xe8] sm:$0xf]
    %v5464 = vld [vmem:[#allocation19 + $0xec] sm:$0xf]
    %v5465 = vld [vmem:[#allocation19 + $0xf0] sm:$0xf]
    %v5466 = vld [vmem:[#allocation19 + $0xf4] sm:$0xf]
    %v5467 = vld [vmem:[#allocation19 + $0xf8] sm:$0xf]
    %v5468 = vld [vmem:[#allocation19 + $0xfc] sm:$0xf]
    %v5469 = vld [vmem:[#allocation21] sm:$0x1]
    %v5471 = vperm.slane %v5469, 0
    %v5537 = vunpack.c.l.b16 %v5405
    %v5538 = vunpack.c.l.b16 %v5406
    %v5539 = vunpack.c.l.b16 %v5407
    %v5540 = vunpack.c.l.b16 %v5408
    %v5541 = vunpack.c.l.b16 %v5409
    %v5542 = vunpack.c.l.b16 %v5410
    %v5543 = vunpack.c.l.b16 %v5411
    %v5544 = vunpack.c.l.b16 %v5412
    %v5545 = vunpack.c.l.b16 %v5413
    %v5546 = vunpack.c.l.b16 %v5414
    %v5547 = vunpack.c.l.b16 %v5415
    %v5548 = vunpack.c.l.b16 %v5416
    %v5549 = vunpack.c.l.b16 %v5417
    %v5550 = vunpack.c.l.b16 %v5418
    %v5551 = vunpack.c.l.b16 %v5419
    %v5552 = vunpack.c.l.b16 %v5420
    %v5553 = vunpack.c.l.b16 %v5421
    %v5554 = vunpack.c.l.b16 %v5422
    %v5555 = vunpack.c.l.b16 %v5423
    %v5556 = vunpack.c.l.b16 %v5424
    %v5557 = vunpack.c.l.b16 %v5425
    %v5558 = vunpack.c.l.b16 %v5426
    %v5559 = vunpack.c.l.b16 %v5427
    %v5560 = vunpack.c.l.b16 %v5428
    %v5561 = vunpack.c.l.b16 %v5429
    %v5562 = vunpack.c.l.b16 %v5430
    %v5563 = vunpack.c.l.b16 %v5431
    %v5564 = vunpack.c.l.b16 %v5432
    %v5565 = vunpack.c.l.b16 %v5433
    %v5566 = vunpack.c.l.b16 %v5434
    %v5567 = vunpack.c.l.b16 %v5435
    %v5568 = vunpack.c.l.b16 %v5436
    %v5569 = vunpack.c.l.b16 %v5437
    %v5570 = vunpack.c.l.b16 %v5438
    %v5571 = vunpack.c.l.b16 %v5439
    %v5572 = vunpack.c.l.b16 %v5440
    %v5573 = vunpack.c.l.b16 %v5441
    %v5574 = vunpack.c.l.b16 %v5442
    %v5575 = vunpack.c.l.b16 %v5443
    %v5576 = vunpack.c.l.b16 %v5444
    %v5577 = vunpack.c.l.b16 %v5445
    %v5578 = vunpack.c.l.b16 %v5446
    %v5579 = vunpack.c.l.b16 %v5447
    %v5580 = vunpack.c.l.b16 %v5448
    %v5581 = vunpack.c.l.b16 %v5449
    %v5582 = vunpack.c.l.b16 %v5450
    %v5583 = vunpack.c.l.b16 %v5451
    %v5584 = vunpack.c.l.b16 %v5452
    %v5585 = vunpack.c.l.b16 %v5453
    %v5586 = vunpack.c.l.b16 %v5454
    %v5587 = vunpack.c.l.b16 %v5455
    %v5588 = vunpack.c.l.b16 %v5456
    %v5589 = vunpack.c.l.b16 %v5457
    %v5590 = vunpack.c.l.b16 %v5458
    %v5591 = vunpack.c.l.b16 %v5459
    %v5592 = vunpack.c.l.b16 %v5460
    %v5593 = vunpack.c.l.b16 %v5461
    %v5594 = vunpack.c.l.b16 %v5462
    %v5595 = vunpack.c.l.b16 %v5463
    %v5596 = vunpack.c.l.b16 %v5464
    %v5597 = vunpack.c.l.b16 %v5465
    %v5598 = vunpack.c.l.b16 %v5466
    %v5599 = vunpack.c.l.b16 %v5467
    %v5600 = vunpack.c.l.b16 %v5468
    %v5601 = vpack.c.b16 %v5538, %v5537
    %v5602 = vpack.c.b16 %v5540, %v5539
    %v5603 = vpack.c.b16 %v5542, %v5541
    %v5604 = vpack.c.b16 %v5544, %v5543
    %v5605 = vpack.c.b16 %v5546, %v5545
    %v5606 = vpack.c.b16 %v5548, %v5547
    %v5607 = vpack.c.b16 %v5550, %v5549
    %v5608 = vpack.c.b16 %v5552, %v5551
    %v5609 = vpack.c.b16 %v5554, %v5553
    %v5610 = vpack.c.b16 %v5556, %v5555
    %v5611 = vpack.c.b16 %v5558, %v5557
    %v5612 = vpack.c.b16 %v5560, %v5559
    %v5613 = vpack.c.b16 %v5562, %v5561
    %v5614 = vpack.c.b16 %v5564, %v5563
    %v5615 = vpack.c.b16 %v5566, %v5565
    %v5616 = vpack.c.b16 %v5568, %v5567
    %v5617 = vpack.c.b16 %v5570, %v5569
    %v5618 = vpack.c.b16 %v5572, %v5571
    %v5619 = vpack.c.b16 %v5574, %v5573
    %v5620 = vpack.c.b16 %v5576, %v5575
    %v5621 = vpack.c.b16 %v5578, %v5577
    %v5622 = vpack.c.b16 %v5580, %v5579
    %v5623 = vpack.c.b16 %v5582, %v5581
    %v5624 = vpack.c.b16 %v5584, %v5583
    %v5625 = vpack.c.b16 %v5586, %v5585
    %v5626 = vpack.c.b16 %v5588, %v5587
    %v5627 = vpack.c.b16 %v5590, %v5589
    %v5628 = vpack.c.b16 %v5592, %v5591
    %v5629 = vpack.c.b16 %v5594, %v5593
    %v5630 = vpack.c.b16 %v5596, %v5595
    %v5631 = vpack.c.b16 %v5598, %v5597
    %v5632 = vpack.c.b16 %v5600, %v5599
    %5665 = vmatpush.bf16.msra.mxu0 %v5608
    %5666 = vmatpush.bf16.msra.mxu0 %v5607
    %5667 = vmatpush.bf16.msra.mxu0 %v5606
    %5668 = vmatpush.bf16.msra.mxu0 %v5605
    %5669 = vmatpush.bf16.msra.mxu0 %v5604
    %5670 = vmatpush.bf16.msra.mxu0 %v5603
    %5671 = vmatpush.bf16.msra.mxu0 %v5602
    %5672 = vmatpush.bf16.msra.mxu0 %v5601
    %5673 = vmatmul.bf16.gmra.mxu0 %v5401
    %v5674 = vpop.f32.mrf.mxu0
    %v5675 = vadd.f32 %v5471, %v5674
    %v5676 = vpop.f32.mrf.mxu0
    %5677 = vdwg.mxu0
    %5678 = vmatpush.bf16.msra.mxu0 %v5616
    %5679 = vmatpush.bf16.msra.mxu0 %v5615
    %5680 = vmatpush.bf16.msra.mxu0 %v5614
    %5681 = vmatpush.bf16.msra.mxu0 %v5613
    %5682 = vmatpush.bf16.msra.mxu0 %v5612
    %5683 = vmatpush.bf16.msra.mxu0 %v5611
    %5684 = vmatpush.bf16.msra.mxu0 %v5610
    %5685 = vmatpush.bf16.msra.mxu0 %v5609
    %5686 = vmatmul.bf16.gmra.mxu0 %v5402
    %v5687 = vpop.f32.mrf.mxu0
    %v5688 = vadd.f32 %v5675, %v5687
    %v5689 = vpop.f32.mrf.mxu0
    %5690 = vdwg.mxu0
    %5691 = vmatpush.bf16.msra.mxu0 %v5624
    %5692 = vmatpush.bf16.msra.mxu0 %v5623
    %5693 = vmatpush.bf16.msra.mxu0 %v5622
    %5694 = vmatpush.bf16.msra.mxu0 %v5621
    %5695 = vmatpush.bf16.msra.mxu0 %v5620
    %5696 = vmatpush.bf16.msra.mxu0 %v5619
    %5697 = vmatpush.bf16.msra.mxu0 %v5618
    %5698 = vmatpush.bf16.msra.mxu0 %v5617
    %5699 = vmatmul.bf16.gmra.mxu0 %v5403
    %v5700 = vpop.f32.mrf.mxu0
    %v5701 = vadd.f32 %v5688, %v5700
    %v5702 = vpop.f32.mrf.mxu0
    %5703 = vdwg.mxu0
    %5704 = vmatpush.bf16.msra.mxu0 %v5632
    %5705 = vmatpush.bf16.msra.mxu0 %v5631
    %5706 = vmatpush.bf16.msra.mxu0 %v5630
    %5707 = vmatpush.bf16.msra.mxu0 %v5629
    %5708 = vmatpush.bf16.msra.mxu0 %v5628
    %5709 = vmatpush.bf16.msra.mxu0 %v5627
    %5710 = vmatpush.bf16.msra.mxu0 %v5626
    %5711 = vmatpush.bf16.msra.mxu0 %v5625
    %5712 = vmatmul.bf16.gmra.mxu0 %v5404
    %v5713 = vpop.f32.mrf.mxu0
    %v5714 = vadd.f32 %v5701, %v5713
    %v5715 = vpop.f32.mrf.mxu0
    %5716 = vdwg.mxu0
    %5717 = vst [vmem:[%s15] sm:$0x3] %v5714
    // Predicated region
    $region114: #{vision_ff_forward.1} parent=1 // pred_check
      _
    $region115: #{vision_ff_forward.1} parent=1 // pred_check_branch
      %5719 = sbr.rel (0) target = $region117
    $region116: #{vision_ff_forward.1} parent=1 // pred_region
      _
    $region117: #{vision_ff_forward.1} parent=1 // pred_fallthru
      _
    // Predicated region
    $region118: #{vision_ff_forward.1} parent=1 // pred_check
      _
    $region119: #{vision_ff_forward.1} parent=1 // pred_check_branch
      %5721 = sbr.rel (0) target = $region121
    $region120: #{vision_ff_forward.1} parent=1 // pred_region
      _
    $region121: #{vision_ff_forward.1} parent=1 // pred_fallthru
      _
    %5722 = vsyncpa [#allocation3], 1
    %5723 = vsyncpa [#allocation5], 1
    %5724 = vsyncpa [#allocation8], 1
    %5725 = vsyncpa [#allocation11], 1
    %5726 = vsyncpa [#allocation14], 1
    %5727 = vsyncpa [#allocation17], 1
    %5728 = vsyncpa [#allocation20], 1

</llo_original>
